<compile_context>
chip_gen: v5e
topology: v5e:2x2
jax: 0.10.0
libtpu: 0.0.40
codegen_flags: <defaults>
</compile_context>

<pallas_src>
import numpy as np
import jax
import jax.numpy as jnp
from jax import lax
from jax.experimental import pallas as pl
from jax.experimental.pallas import tpu as pltpu

# Full-precision f32 matmuls everywhere (kernel and reference) so the check is tight.
jax.config.update("jax_default_matmul_precision", "highest")

LANE_TILE = 128
MAX_LANE_TILE = 128 * 1024          # ~25 MiB of double-buffered streams -> safe on v7x's 64 MiB VMEM
SMALL_BUCKET = 512                  # smallest lane-tile size class (tiny biases / norm params)
_BYTES_PER_LANE = 3 * 2 * 8 * 4     # {delta,last,out} x double-buffer x 8 sublane-padded rows x f32


def _round_up(x, m):
    return -(-int(x) // m) * m


def _auto_max_lane_tile():
    """Largest lane tile: ~40% of this generation's VMEM for the 3 double-buffered streams."""
    vmem_bytes = 64 << 20                       # v7x-safe fallback if the query is unavailable
    try:
        info = pltpu.get_tpu_info()
        vmem_bytes = int(getattr(info, "vmem_capacity_bytes", vmem_bytes))
    except Exception:
        pass
    budget = (vmem_bytes * 2) // 5
    t = (budget // _BYTES_PER_LANE) // LANE_TILE * LANE_TILE
    return int(max(8 * LANE_TILE, min(t, MAX_LANE_TILE)))


# --------------------------------------------------------------------------- kernel

def _fused_hyper_attn_kernel(phase_ref, first_ref, lastsc_ref, key_ref,
                             dcol_ref, ocol_ref,             # scalar prefetch (SMEM)
                             aux_ref, delta_ref, last_ref,   # VMEM input blocks
                             out_ref,                        # VMEM output block
                             m_ref):                         # (K, K) f32 scratch, carried per key
    del key_ref, dcol_ref, ocol_ref   # used by the index_maps only
    i = pl.program_id(0)
    phase = phase_ref[i]

    def finalize(scores):
        # M = gamma * softmax(scores * D**-0.5) + diag(dcoef); later: out = last + M @ delta
        a = aux_ref[0]                                       # (K, 3): [gamma, D**-0.5, dcoef]
        g, sc, dc = a[:, 0:1], a[:, 1:2], a[:, 2:3]
        s = scores * sc
        s = s - jnp.max(s, axis=-1, keepdims=True)
        e = jnp.exp(s)
        attn = e / jnp.sum(e, axis=-1, keepdims=True)
        kdim = scores.shape[0]
        rows = lax.broadcasted_iota(jnp.int32, (kdim, kdim), 0)
        cols = lax.broadcasted_iota(jnp.int32, (kdim, kdim), 1)
        eye = jnp.where(rows == cols, 1.0, 0.0).astype(jnp.float32)
        return g * attn + dc * eye

    # ---- phase 0: score accumulation for multi-tile keys; finalize at the key's last score tile.
    @pl.when(phase == 0)
    def _scores():
        @pl.when(first_ref[i] == 1)
        def _zero():
            m_ref[...] = jnp.zeros_like(m_ref)

        blk = delta_ref[...]                                  # (K, T) f32
        # delta @ delta.T without a transpose: contract both operands on the lane axis.
        m_ref[...] += lax.dot_general(blk, blk, (((1,), (1,)), ((), ())),
                                      preferred_element_type=jnp.float32)

        @pl.when(lastsc_ref[i] == 1)
        def _fin():
            m_ref[...] = finalize(m_ref[...])

    # ---- phase 1: combine for multi-tile keys (dcoef already folded into M's diagonal).
    @pl.when(phase == 1)
    def _combine():
        out_ref[...] = last_ref[...] + jnp.dot(m_ref[...], delta_ref[...],
                                               preferred_element_type=jnp.float32)

    # ---- phase 2: single-tile keys -> score + softmax + combine fused into ONE grid step.
    @pl.when(phase == 2)
    def _fused():
        blk = delta_ref[...]
        scores = lax.dot_general(blk, blk, (((1,), (1,)), ((), ())),
                                 preferred_element_type=jnp.float32)
        m = finalize(scores)
        out_ref[...] = last_ref[...] + jnp.dot(m, blk, preferred_element_type=jnp.float32)


# --------------------------------------------------------------------------- pallas_call builder

# `last` is overall input index 8 (after the 6 scalar-prefetch args, aux, delta) under the
# "indices include scalar-prefetch operands" convention; {2: 0} covers the other convention;
# None drops the alias entirely.  Shape/dtype checks make a wrong index error out (no silent alias).
_ALIAS_STYLES = ({8: 0}, {2: 0}, None)
_alias_style = 0
_FUSED_CALL_CACHE = {}


def _get_fused_call(K, T, total_blocks, num_work, alias_style):
    sig = (K, T, total_blocks, num_work, alias_style)
    fn = _FUSED_CALL_CACHE.get(sig)
    if fn is not None:
        return fn

    grid_spec = pltpu.PrefetchScalarGridSpec(
        num_scalar_prefetch=6,
        grid=(num_work,),
        in_specs=[
            # per-key aux [gamma, D**-0.5, dcoef]; re-DMA'd only when the key id changes
            pl.BlockSpec((1, K, 3), lambda i, ph, fs, ls, ky, dc, oc: (ky[i], 0, 0)),
            # delta tile (read in every phase)
            pl.BlockSpec((K, T), lambda i, ph, fs, ls, ky, dc, oc: (0, dc[i])),
            # last tile; during a key's score steps it is parked on the key's first combine column
            # so its DMA overlaps the score pass and is reused unchanged at the first combine step
            pl.BlockSpec((K, T), lambda i, ph, fs, ls, ky, dc, oc: (0, oc[i])),
        ],
        out_specs=pl.BlockSpec((K, T), lambda i, ph, fs, ls, ky, dc, oc: (0, oc[i])),
        scratch_shapes=[pltpu.VMEM((K, K), jnp.float32)],
    )
    # VMEM budget: 3 streams x 2 buffers x 8 sublane-padded rows x T x 4B, plus headroom.
    # Stays well under v7x's 64 MiB physical VMEM even at the 128K-lane cap.
    vmem_limit = int(min(max(32 << 20, _BYTES_PER_LANE * T + (8 << 20)), 56 << 20))
    alias = _ALIAS_STYLES[alias_style] or {}
    fn = pl.pallas_call(
        _fused_hyper_attn_kernel,
        out_shape=jax.ShapeDtypeStruct((K, total_blocks * T), jnp.float32),
        grid_spec=grid_spec,
        input_output_aliases=dict(alias),
        # sequential grid: the (K,K) scratch is carried across tiles/phases of each key
        compiler_params=pltpu.CompilerParams(
            dimension_semantics=("arbitrary",),
            vmem_limit_bytes=vmem_limit,
        ),
    )
    _FUSED_CALL_CACHE[sig] = fn
    return fn


def _invoke_fused(K, T, total_blocks, num_work, args):
    """Call the fused kernel; if the alias-index convention is rejected, fall back gracefully."""
    global _alias_style
    while True:
        try:
            fn = _get_fused_call(K, T, total_blocks, num_work, _alias_style)
            return fn(*args)
        except Exception:
            if _alias_style >= len(_ALIAS_STYLES) - 1:
                raise
            _alias_style += 1


# --------------------------------------------------------------------------- module

class HyperAttentionPallas:
    """JAX/Pallas port of HyperAttention.forward (PyTorch reference in models/hypernet.py)."""

    def __init__(self, param_names, K, init_gamma=1.0, norm=True, max_tile_d=None):
        self.K = K
        self.norm = norm
        if max_tile_d is None:
            max_tile_d = _auto_max_lane_tile()
        max_tile_d = int(min(max(max_tile_d, LANE_TILE), MAX_LANE_TILE))
        self.max_tile = (max_tile_d // LANE_TILE) * LANE_TILE
        # geometric (x4) size-class boundaries: tiny params tile at 512 lanes, big tensors up to
        # max_tile; bounds per-key zero-padding traffic while keeping O(1) launches per round.
        bounds, b = [], SMALL_BUCKET
        while b < self.max_tile:
            bounds.append(b)
            b *= 4
        bounds.append(self.max_tile)
        self.bucket_bounds = bounds

        layer_names = []
        for name in param_names:
            parts = name.split('.')
            if parts[0] in ['semseg', 'normals', 'depth', 'edge', 'human_parts', 'sal']:
                layer_names.append('.'.join(parts[1:-1]))
            else:
                layer_names.append('.'.join(parts[:-1]))
        self.layer_names = sorted(set(layer_names))
        self.gamma_names = [n.replace('.', '_') for n in self.layer_names]
        # Deterministic parameter init: gamma_name = ones(K) * init_gamma
        self.gamma = {gn: jnp.ones((K,), jnp.float32) * init_gamma for gn in self.gamma_names}

    # ------------------------------------------------------------------ forward
    def forward(self, last_param_dict_list, delta_dict_list, avg_delta_list=None):
        K = self.K
        assert K == len(last_param_dict_list)
        new_param = [dict(d) for d in last_param_dict_list]

        # Reference iteration order: sorted layer names, dict-order keys, substring match.
        work = []
        for name in self.layer_names:
            layer_gamma = jnp.clip(self.gamma[name.replace('.', '_')], 0.0, 1.0)  # (K,)
            for key in delta_dict_list[0].keys():
                if name in key:
                    work.append((key, layer_gamma))

        # A key may substring-match several layer names and is then updated sequentially
        # (faithful `+=` semantics).  Split the work into rounds with unique keys; each round is
        # batched into a handful of fused pallas_calls (one per size class).
        rounds, cur, seen = [], [], set()
        for item in work:
            if item[0] in seen:
                rounds.append(cur)
                cur, seen = [], set()
            cur.append(item)
            seen.add(item[0])
        if cur:
            rounds.append(cur)

        for round_items in rounds:
            self._run_round(round_items, new_param, delta_dict_list, avg_delta_list)
        return new_param

    # ------------------------------------------------------------------ one round = few fused calls
    def _bucket_for(self, D):
        for b in self.bucket_bounds:
            if D <= b:
                return b
        return self.bucket_bounds[-1]

    def _run_round(self, items, new_param, delta_dict_list, avg_delta_list):
        sized = []
        for key, gamma in items:
            shp = tuple(delta_dict_list[0][key].shape)
            D = int(np.prod(shp)) if len(shp) else 1
            sized.append((key, gamma, D, shp))

        buckets = {}
        for ent in sized:
            buckets.setdefault(self._bucket_for(ent[2]), []).append(ent)

        # Keys within a round are unique, so bucket execution order does not matter.
        for bound in sorted(buckets):
            ents = buckets[bound]
            max_d = max(e[2] for e in ents)
            T = min(bound, _round_up(max_d, LANE_TILE))
            self._run_bucket(ents, T, new_param, delta_dict_list, avg_delta_list)

    def _run_bucket(self, ents, T, new_param, delta_dict_list, avg_delta_list):
        K = self.K
        use_avg = (not self.norm) and (avg_delta_list is not None)

        aux_rows, key_info = [], []
        delta_rows = [[] for _ in range(K)]
        last_rows = [[] for _ in range(K)]
        m_phase, m_first, m_lastsc, m_key, m_dcol, m_ocol = ([] for _ in range(6))
        col = 0  # running column offset, in blocks of T

        # Invariant required by the carried (K,K) scratch and the parked out/last block index:
        # all phase-0 items of a key (in tile order) immediately precede its phase-1 items, and
        # every out column index forms one contiguous run of grid steps.
        for w_idx, (key, gamma, D, ori_shape) in enumerate(ents):
            n_tiles = -(-D // T)
            W = n_tiles * T
            pad = W - D

            for j in range(K):
                dflat = jnp.reshape(delta_dict_list[j][key], (-1,)).astype(jnp.float32)
                lflat = jnp.reshape(new_param[j][key], (-1,)).astype(jnp.float32)
                if use_avg:
                    lflat = lflat + jnp.reshape(avg_delta_list[j][key], (-1,)).astype(jnp.float32)
                if pad:
                    z = jnp.zeros((pad,), jnp.float32)
                    dflat = jnp.concatenate([dflat, z])
                    lflat = jnp.concatenate([lflat, z])
                delta_rows[j].append(dflat)
                last_rows[j].append(lflat)

            if use_avg:
                dcoef = jnp.zeros((K,), jnp.float32)       # out = (last+avg) + g*(attn@delta)
            elif self.norm:
                dcoef = 1.0 - gamma                        # out = last + (1-g)*delta + g*(attn@delta)
            else:
                dcoef = jnp.ones((K,), jnp.float32)        # out = last + delta + g*(attn@delta)
            scale = jnp.full((K,), float(D) ** (-0.5), jnp.float32)
            aux_rows.append(jnp.stack([gamma.astype(jnp.float32), scale,
                                       dcoef.astype(jnp.float32)], axis=-1))    # (K, 3)

            if n_tiles == 1:                               # fused score+softmax+combine
                m_phase.append(2); m_first.append(0); m_lastsc.append(0)
                m_key.append(w_idx); m_dcol.append(col); m_ocol.append(col)
            else:
                for t in range(n_tiles):                   # phase 0: scores
                    m_phase.append(0)
                    m_first.append(1 if t == 0 else 0)
                    m_lastsc.append(1 if t == n_tiles - 1 else 0)
                    m_key.append(w_idx)
                    m_dcol.append(col + t)
                    m_ocol.append(col)                     # warm up the key's first out/last tile
                for t in range(n_tiles):                   # phase 1: combine
                    m_phase.append(1); m_first.append(0); m_lastsc.append(0)
                    m_key.append(w_idx); m_dcol.append(col + t); m_ocol.append(col + t)

            key_info.append((key, D, ori_shape, col * T))
            col += n_tiles

        delta_all = jnp.stack([jnp.concatenate(r) for r in delta_rows])   # (K, col*T)
        last_all = jnp.stack([jnp.concatenate(r) for r in last_rows])     # (K, col*T)
        aux_all = jnp.stack(aux_rows)                                     # (num_keys, K, 3)

        meta = [jnp.asarray(np.asarray(m, dtype=np.int32))
                for m in (m_phase, m_first, m_lastsc, m_key, m_dcol, m_ocol)]
        num_work = len(m_phase)

        out_all = _invoke_fused(K, T, col, num_work,
                                tuple(meta) + (aux_all, delta_all, last_all))

        for key, D, ori_shape, start in key_info:
            for i in range(K):
                new_param[i][key] = (out_all[i, start:start + D]
                                     .reshape(ori_shape)
                                     .astype(new_param[i][key].dtype))


# ---------------- pure-JAX reference (mirrors the PyTorch code) ----------------

def _cross_attention_ref(q, k, v):
    scale = q.shape[-1] ** (-0.5)
    attn = (q @ k.T) * scale
    attn = jax.nn.softmax(attn, axis=-1)
    return attn @ v


def _reference_forward(model, last_list, delta_list, avg_list=None):
    new_list = [dict(d) for d in last_list]
    for name in model.layer_names:
        g = jnp.clip(model.gamma[name.replace('.', '_')], 0.0, 1.0)
        layer_keys = [kk for kk in delta_list[0].keys() if name in kk]
        for kk in layer_keys:
            cross = jnp.stack([delta_list[j][kk].reshape(-1) for j in range(model.K)])
            for i in range(model.K):
                self_d = delta_list[i][kk].reshape(1, -1)
                ca = _cross_attention_ref(self_d, cross, cross)
                gamma = g[i]
                ori = delta_list[i][kk].shape
                if model.norm:
                    nd = (1 - gamma) * delta_list[i][kk] + gamma * ca.reshape(ori)
                elif avg_list is not None:
                    nd = avg_list[i][kk] + gamma * ca.reshape(ori)
                else:
                    nd = delta_list[i][kk] + gamma * ca.reshape(ori)
                new_list[i][kk] = new_list[i][kk] + nd
    return new_list


def _compare(out_list, ref_list, K, shapes):
    ok = True
    for i in range(K):
        for pname in shapes:
            got = np.asarray(out_list[i][pname])
            exp = np.asarray(ref_list[i][pname])
            if got.shape != exp.shape or not np.allclose(got, exp, atol=1e-4, rtol=1e-4):
                ok = False
    return ok


if __name__ == "__main__":
    K = 3  # number of tasks / dict entries
    shapes = {
        'backbone.conv1.weight': (4, 4, 3, 3),        # 144
        'backbone.conv1.bias': (4,),                  # 4
        'backbone.layer1.conv.weight': (8, 8, 3, 3),  # 576  -> multi-tile when max_tile_d=512
        'head.fc.weight': (8, 16),                    # 128
        'head.fc.bias': (8,),                         # 8
        'head.big.weight': (16, 80),                  # 1280 -> multi-tile when max_tile_d=512
        'semseg.decoder.weight': (4, 8),              # 32
        'semseg.decoder.bias': (4,),                  # 4
    }
    param_names = list(shapes.keys())

    key = jax.random.PRNGKey(0)
    last_list, delta_list, avg_list = [], [], []
    for i in range(K):
        lp, dl, av = {}, {}, {}
        for pname, shp in shapes.items():
            key, k1, k2, k3 = jax.random.split(key, 4)
            lp[pname] = jax.random.normal(k1, shp, jnp.float32)
            dl[pname] = jax.random.normal(k2, shp, jnp.float32) * 0.1
            av[pname] = jax.random.normal(k3, shp, jnp.float32) * 0.05
        last_list.append(lp)
        delta_list.append(dl)
        avg_list.append(av)

    ok = True

    # 1) norm=True, auto tile sizes (every key fits one tile -> fused phase-2 path + bucketing)
    model = HyperAttentionPallas(param_names, K, init_gamma=0.5, norm=True)
    out_list = model.forward(last_list, delta_list)
    jax.block_until_ready(jax.tree_util.tree_leaves(out_list))
    ref_list = _reference_forward(model, last_list, delta_list)
    ok = ok and _compare(out_list, ref_list, K, shapes)

    # 2) norm=False + avg_delta path (avg folded into `last` on the host, dcoef = 0)
    model2 = HyperAttentionPallas(param_names, K, init_gamma=0.7, norm=False)
    out_list2 = model2.forward(last_list, delta_list, avg_list)
    jax.block_until_ready(jax.tree_util.tree_leaves(out_list2))
    ref_list2 = _reference_forward(model2, last_list, delta_list, avg_list)
    ok = ok and _compare(out_list2, ref_list2, K, shapes)

    # 3) norm=True with a tiny forced tile so the multi-tile score/combine path (phases 0/1),
    #    the carried scratch and the parked out/last warm-up are all exercised.
    model3 = HyperAttentionPallas(param_names, K, init_gamma=0.3, norm=True, max_tile_d=512)
    out_list3 = model3.forward(last_list, delta_list)
    jax.block_until_ready(jax.tree_util.tree_leaves(out_list3))
    ref_list3 = _reference_forward(model3, last_list, delta_list)
    ok = ok and _compare(out_list3, ref_list3, K, shapes)

    if ok:
        print("KERNEL_OK")
    else:
        raise SystemExit("Pallas output mismatch vs pure-JAX reference")
</pallas_src>

<mosaic_0001>
module attributes {stable_mosaic.version = 11 : i64} {
  func.func @_fused_hyper_attn_kernel(%arg0: i32, %arg1: memref<6xi32, #tpu.memory_space<smem>>, %arg2: memref<6xi32, #tpu.memory_space<smem>>, %arg3: memref<6xi32, #tpu.memory_space<smem>>, %arg4: memref<6xi32, #tpu.memory_space<smem>>, %arg5: memref<6xi32, #tpu.memory_space<smem>>, %arg6: memref<6xi32, #tpu.memory_space<smem>>, %arg7: memref<1x3x3xf32, #tpu.memory_space<vmem>>, %arg8: memref<3x256xf32, #tpu.memory_space<vmem>>, %arg9: memref<3x256xf32, #tpu.memory_space<vmem>>, %arg10: memref<3x256xf32, #tpu.memory_space<vmem>>, %arg11: memref<3x3xf32, #tpu.memory_space<vmem>>) attributes {dimension_semantics = [#tpu.dimension_semantics<arbitrary>], iteration_bounds = array<i64: 6>, scalar_prefetch = 6 : i64, scratch_operands = 1 : i64, tpu.core_type = #tpu.core_type<tc>, window_params = [{transform_indices = @transform_0, window_bounds = array<i64: 1, 3, 3>}, {transform_indices = @transform_1, window_bounds = array<i64: 3, 256>}, {transform_indices = @transform_2, window_bounds = array<i64: 3, 256>}, {transform_indices = @transform_3, window_bounds = array<i64: 3, 256>}]} {
    %0 = arith.index_cast %arg0 : i32 to index
    %1 = memref.load %arg1[%0] : memref<6xi32, #tpu.memory_space<smem>>
    %c0_i32 = arith.constant 0 : i32
    %2 = arith.cmpi eq, %1, %c0_i32 : i32
    %3 = arith.extui %2 : i1 to i32
    %c0_i32_0 = arith.constant 0 : i32
    %4 = arith.cmpi ne, %3, %c0_i32_0 : i32
    scf.if %4 {
      %11 = arith.index_cast %arg0 : i32 to index
      %12 = memref.load %arg2[%11] : memref<6xi32, #tpu.memory_space<smem>>
      %c1_i32_3 = arith.constant 1 : i32
      %13 = arith.cmpi eq, %12, %c1_i32_3 : i32
      %14 = arith.extui %13 : i1 to i32
      %c0_i32_4 = arith.constant 0 : i32
      %15 = arith.cmpi ne, %14, %c0_i32_4 : i32
      scf.if %15 {
        %cst_12 = arith.constant 0.000000e+00 : f32
        %26 = vector.broadcast %cst_12 : f32 to vector<3x3xf32>
        %c0_13 = arith.constant 0 : index
        %c0_14 = arith.constant 0 : index
        %27 = vector.load %arg11[%c0_13, %c0_14] : memref<3x3xf32, #tpu.memory_space<vmem>>, vector<3x3xf32>
        tpu.vector_store %arg11[%c0_13, %c0_14], %26 {strides = array<i32>} : memref<3x3xf32, #tpu.memory_space<vmem>>, vector<3x3xf32>,
      } else {
      }
      %c0 = arith.constant 0 : index
      %c0_5 = arith.constant 0 : index
      %16 = vector.load %arg8[%c0, %c0_5] : memref<3x256xf32, #tpu.memory_space<vmem>>, vector<3x256xf32>
      %c0_6 = arith.constant 0 : index
      %c0_7 = arith.constant 0 : index
      %17 = vector.load %arg11[%c0_6, %c0_7] : memref<3x3xf32, #tpu.memory_space<vmem>>, vector<3x3xf32>
      %cst = arith.constant dense<0.000000e+00> : vector<3x3xf32>
      %18 = tpu.matmul %16, %16, %cst {dimension_numbers = #tpu.dot_dimension_numbers<[1], [1], [0], [0], [0, 0, 1, 0], [], []>, precision = #tpu.contract_precision<fp32>} : vector<3x256xf32>, vector<3x256xf32>, vector<3x3xf32> -> vector<3x3xf32>
      %19 = arith.addf %17, %18 : vector<3x3xf32>
      %c0_8 = arith.constant 0 : index
      %c0_9 = arith.constant 0 : index
      %20 = vector.load %arg11[%c0_8, %c0_9] : memref<3x3xf32, #tpu.memory_space<vmem>>, vector<3x3xf32>
      tpu.vector_store %arg11[%c0_8, %c0_9], %19 {strides = array<i32>} : memref<3x3xf32, #tpu.memory_space<vmem>>, vector<3x3xf32>,
      %21 = arith.index_cast %arg0 : i32 to index
      %22 = memref.load %arg3[%21] : memref<6xi32, #tpu.memory_space<smem>>
      %c1_i32_10 = arith.constant 1 : i32
      %23 = arith.cmpi eq, %22, %c1_i32_10 : i32
      %24 = arith.extui %23 : i1 to i32
      %c0_i32_11 = arith.constant 0 : i32
      %25 = arith.cmpi ne, %24, %c0_i32_11 : i32
      scf.if %25 {
        %c0_12 = arith.constant 0 : index
        %c0_13 = arith.constant 0 : index
        %26 = vector.load %arg11[%c0_12, %c0_13] : memref<3x3xf32, #tpu.memory_space<vmem>>, vector<3x3xf32>
        %c0_14 = arith.constant 0 : index
        %c0_15 = arith.constant 0 : index
        %c0_16 = arith.constant 0 : index
        %27 = vector.load %arg7[%c0_14, %c0_15, %c0_16] : memref<1x3x3xf32, #tpu.memory_space<vmem>>, vector<1x3x3xf32>
        %28 = vector.shape_cast %27 : vector<1x3x3xf32> to vector<3x3xf32>
        %29 = vector.extract_strided_slice %28 {offsets = [0, 0], sizes = [3, 1], strides = [1, 1]} : vector<3x3xf32> to vector<3x1xf32>
        %30 = vector.extract_strided_slice %28 {offsets = [0, 1], sizes = [3, 1], strides = [1, 1]} : vector<3x3xf32> to vector<3x1xf32>
        %31 = vector.extract_strided_slice %28 {offsets = [0, 2], sizes = [3, 1], strides = [1, 1]} : vector<3x3xf32> to vector<3x1xf32>
        %32 = vector.broadcast %30 : vector<3x1xf32> to vector<3x3xf32>
        %33 = arith.mulf %26, %32 : vector<3x3xf32>
        %cst_17 = arith.constant dense<0xFF800000> : vector<3xf32>
        %34 = vector.multi_reduction <maximumf>, %33, %cst_17 [1] : vector<3x3xf32> to vector<3xf32>
        %35 = vector.shape_cast %34 : vector<3xf32> to vector<3x1xf32>
        %36 = vector.broadcast %35 : vector<3x1xf32> to vector<3x3xf32>
        %37 = arith.subf %33, %36 : vector<3x3xf32>
        %38 = math.exp %37 : vector<3x3xf32>
        %cst_18 = arith.constant dense<0.000000e+00> : vector<3xf32>
        %39 = vector.multi_reduction <add>, %38, %cst_18 [1] : vector<3x3xf32> to vector<3xf32>
        %40 = vector.shape_cast %39 : vector<3xf32> to vector<3x1xf32>
        %41 = vector.broadcast %40 : vector<3x1xf32> to vector<3x3xf32>
        %42 = arith.divf %38, %41 : vector<3x3xf32>
        %43 = tpu.iota {dimensions = array<i32: 0>} : vector<3x3xi32>
        %44 = tpu.iota {dimensions = array<i32: 1>} : vector<3x3xi32>
        %45 = arith.cmpi eq, %43, %44 : vector<3x3xi32>
        %cst_19 = arith.constant 1.000000e+00 : f32
        %cst_20 = arith.constant 0.000000e+00 : f32
        %46 = vector.broadcast %cst_19 : f32 to vector<3x3xf32>
        %47 = vector.broadcast %cst_20 : f32 to vector<3x3xf32>
        %48 = arith.select %45, %46, %47 : vector<3x3xi1>, vector<3x3xf32>
        %49 = vector.broadcast %29 : vector<3x1xf32> to vector<3x3xf32>
        %50 = arith.mulf %49, %42 : vector<3x3xf32>
        %51 = vector.broadcast %31 : vector<3x1xf32> to vector<3x3xf32>
        %52 = arith.mulf %51, %48 : vector<3x3xf32>
        %53 = arith.addf %50, %52 : vector<3x3xf32>
        %c0_21 = arith.constant 0 : index
        %c0_22 = arith.constant 0 : index
        %54 = vector.load %arg11[%c0_21, %c0_22] : memref<3x3xf32, #tpu.memory_space<vmem>>, vector<3x3xf32>
        tpu.vector_store %arg11[%c0_21, %c0_22], %53 {strides = array<i32>} : memref<3x3xf32, #tpu.memory_space<vmem>>, vector<3x3xf32>,
      } else {
      }
    } else {
    }
    %c1_i32 = arith.constant 1 : i32
    %5 = arith.cmpi eq, %1, %c1_i32 : i32
    %6 = arith.extui %5 : i1 to i32
    %c0_i32_1 = arith.constant 0 : i32
    %7 = arith.cmpi ne, %6, %c0_i32_1 : i32
    scf.if %7 {
      %c0 = arith.constant 0 : index
      %c0_3 = arith.constant 0 : index
      %11 = vector.load %arg9[%c0, %c0_3] : memref<3x256xf32, #tpu.memory_space<vmem>>, vector<3x256xf32>
      %c0_4 = arith.constant 0 : index
      %c0_5 = arith.constant 0 : index
      %12 = vector.load %arg11[%c0_4, %c0_5] : memref<3x3xf32, #tpu.memory_space<vmem>>, vector<3x3xf32>
      %c0_6 = arith.constant 0 : index
      %c0_7 = arith.constant 0 : index
      %13 = vector.load %arg8[%c0_6, %c0_7] : memref<3x256xf32, #tpu.memory_space<vmem>>, vector<3x256xf32>
      %cst = arith.constant dense<0.000000e+00> : vector<3x256xf32>
      %14 = tpu.matmul %12, %13, %cst {dimension_numbers = #tpu.dot_dimension_numbers<[1], [0], [0], [1], [0, 0, 1, 1], [], []>, precision = #tpu.contract_precision<fp32>} : vector<3x3xf32>, vector<3x256xf32>, vector<3x256xf32> -> vector<3x256xf32>
      %15 = arith.addf %11, %14 : vector<3x256xf32>
      %c0_8 = arith.constant 0 : index
      %c0_9 = arith.constant 0 : index
      %16 = vector.load %arg10[%c0_8, %c0_9] : memref<3x256xf32, #tpu.memory_space<vmem>>, vector<3x256xf32>
      tpu.vector_store %arg10[%c0_8, %c0_9], %15 {strides = array<i32>} : memref<3x256xf32, #tpu.memory_space<vmem>>, vector<3x256xf32>,
    } else {
    }
    %c2_i32 = arith.constant 2 : i32
    %8 = arith.cmpi eq, %1, %c2_i32 : i32
    %9 = arith.extui %8 : i1 to i32
    %c0_i32_2 = arith.constant 0 : i32
    %10 = arith.cmpi ne, %9, %c0_i32_2 : i32
    scf.if %10 {
      %c0 = arith.constant 0 : index
      %c0_3 = arith.constant 0 : index
      %11 = vector.load %arg8[%c0, %c0_3] : memref<3x256xf32, #tpu.memory_space<vmem>>, vector<3x256xf32>
      %cst = arith.constant dense<0.000000e+00> : vector<3x3xf32>
      %12 = tpu.matmul %11, %11, %cst {dimension_numbers = #tpu.dot_dimension_numbers<[1], [1], [0], [0], [0, 0, 1, 0], [], []>, precision = #tpu.contract_precision<fp32>} : vector<3x256xf32>, vector<3x256xf32>, vector<3x3xf32> -> vector<3x3xf32>
      %c0_4 = arith.constant 0 : index
      %c0_5 = arith.constant 0 : index
      %c0_6 = arith.constant 0 : index
      %13 = vector.load %arg7[%c0_4, %c0_5, %c0_6] : memref<1x3x3xf32, #tpu.memory_space<vmem>>, vector<1x3x3xf32>
      %14 = vector.shape_cast %13 : vector<1x3x3xf32> to vector<3x3xf32>
      %15 = vector.extract_strided_slice %14 {offsets = [0, 0], sizes = [3, 1], strides = [1, 1]} : vector<3x3xf32> to vector<3x1xf32>
      %16 = vector.extract_strided_slice %14 {offsets = [0, 1], sizes = [3, 1], strides = [1, 1]} : vector<3x3xf32> to vector<3x1xf32>
      %17 = vector.extract_strided_slice %14 {offsets = [0, 2], sizes = [3, 1], strides = [1, 1]} : vector<3x3xf32> to vector<3x1xf32>
      %18 = vector.broadcast %16 : vector<3x1xf32> to vector<3x3xf32>
      %19 = arith.mulf %12, %18 : vector<3x3xf32>
      %cst_7 = arith.constant dense<0xFF800000> : vector<3xf32>
      %20 = vector.multi_reduction <maximumf>, %19, %cst_7 [1] : vector<3x3xf32> to vector<3xf32>
      %21 = vector.shape_cast %20 : vector<3xf32> to vector<3x1xf32>
      %22 = vector.broadcast %21 : vector<3x1xf32> to vector<3x3xf32>
      %23 = arith.subf %19, %22 : vector<3x3xf32>
      %24 = math.exp %23 : vector<3x3xf32>
      %cst_8 = arith.constant dense<0.000000e+00> : vector<3xf32>
      %25 = vector.multi_reduction <add>, %24, %cst_8 [1] : vector<3x3xf32> to vector<3xf32>
      %26 = vector.shape_cast %25 : vector<3xf32> to vector<3x1xf32>
      %27 = vector.broadcast %26 : vector<3x1xf32> to vector<3x3xf32>
      %28 = arith.divf %24, %27 : vector<3x3xf32>
      %29 = tpu.iota {dimensions = array<i32: 0>} : vector<3x3xi32>
      %30 = tpu.iota {dimensions = array<i32: 1>} : vector<3x3xi32>
      %31 = arith.cmpi eq, %29, %30 : vector<3x3xi32>
      %cst_9 = arith.constant 1.000000e+00 : f32
      %cst_10 = arith.constant 0.000000e+00 : f32
      %32 = vector.broadcast %cst_9 : f32 to vector<3x3xf32>
      %33 = vector.broadcast %cst_10 : f32 to vector<3x3xf32>
      %34 = arith.select %31, %32, %33 : vector<3x3xi1>, vector<3x3xf32>
      %35 = vector.broadcast %15 : vector<3x1xf32> to vector<3x3xf32>
      %36 = arith.mulf %35, %28 : vector<3x3xf32>
      %37 = vector.broadcast %17 : vector<3x1xf32> to vector<3x3xf32>
      %38 = arith.mulf %37, %34 : vector<3x3xf32>
      %39 = arith.addf %36, %38 : vector<3x3xf32>
      %c0_11 = arith.constant 0 : index
      %c0_12 = arith.constant 0 : index
      %40 = vector.load %arg9[%c0_11, %c0_12] : memref<3x256xf32, #tpu.memory_space<vmem>>, vector<3x256xf32>
      %cst_13 = arith.constant dense<0.000000e+00> : vector<3x256xf32>
      %41 = tpu.matmul %39, %11, %cst_13 {dimension_numbers = #tpu.dot_dimension_numbers<[1], [0], [0], [1], [0, 0, 1, 1], [], []>, precision = #tpu.contract_precision<fp32>} : vector<3x3xf32>, vector<3x256xf32>, vector<3x256xf32> -> vector<3x256xf32>
      %42 = arith.addf %40, %41 : vector<3x256xf32>
      %c0_14 = arith.constant 0 : index
      %c0_15 = arith.constant 0 : index
      %43 = vector.load %arg10[%c0_14, %c0_15] : memref<3x256xf32, #tpu.memory_space<vmem>>, vector<3x256xf32>
      tpu.vector_store %arg10[%c0_14, %c0_15], %42 {strides = array<i32>} : memref<3x256xf32, #tpu.memory_space<vmem>>, vector<3x256xf32>,
    } else {
    }
    return
  }
  func.func @transform_0(%arg0: i32, %arg1: memref<6xi32, #tpu.memory_space<smem>>, %arg2: memref<6xi32, #tpu.memory_space<smem>>, %arg3: memref<6xi32, #tpu.memory_space<smem>>, %arg4: memref<6xi32, #tpu.memory_space<smem>>, %arg5: memref<6xi32, #tpu.memory_space<smem>>, %arg6: memref<6xi32, #tpu.memory_space<smem>>) -> (i32, i32, i32) {
    %0 = arith.index_cast %arg0 : i32 to index
    %1 = memref.load %arg4[%0] : memref<6xi32, #tpu.memory_space<smem>>
    %c0_i32 = arith.constant 0 : i32
    %c0_i32_0 = arith.constant 0 : i32
    %c0_i32_1 = arith.constant 0 : i32
    return %1, %c0_i32, %c0_i32_0 : i32, i32, i32
  }
  func.func @transform_1(%arg0: i32, %arg1: memref<6xi32, #tpu.memory_space<smem>>, %arg2: memref<6xi32, #tpu.memory_space<smem>>, %arg3: memref<6xi32, #tpu.memory_space<smem>>, %arg4: memref<6xi32, #tpu.memory_space<smem>>, %arg5: memref<6xi32, #tpu.memory_space<smem>>, %arg6: memref<6xi32, #tpu.memory_space<smem>>) -> (i32, i32) {
    %0 = arith.index_cast %arg0 : i32 to index
    %1 = memref.load %arg5[%0] : memref<6xi32, #tpu.memory_space<smem>>
    %c0_i32 = arith.constant 0 : i32
    %c0_i32_0 = arith.constant 0 : i32
    return %c0_i32, %1 : i32, i32
  }
  func.func @transform_2(%arg0: i32, %arg1: memref<6xi32, #tpu.memory_space<smem>>, %arg2: memref<6xi32, #tpu.memory_space<smem>>, %arg3: memref<6xi32, #tpu.memory_space<smem>>, %arg4: memref<6xi32, #tpu.memory_space<smem>>, %arg5: memref<6xi32, #tpu.memory_space<smem>>, %arg6: memref<6xi32, #tpu.memory_space<smem>>) -> (i32, i32) {
    %0 = arith.index_cast %arg0 : i32 to index
    %1 = memref.load %arg6[%0] : memref<6xi32, #tpu.memory_space<smem>>
    %c0_i32 = arith.constant 0 : i32
    %c0_i32_0 = arith.constant 0 : i32
    return %c0_i32, %1 : i32, i32
  }
  func.func @transform_3(%arg0: i32, %arg1: memref<6xi32, #tpu.memory_space<smem>>, %arg2: memref<6xi32, #tpu.memory_space<smem>>, %arg3: memref<6xi32, #tpu.memory_space<smem>>, %arg4: memref<6xi32, #tpu.memory_space<smem>>, %arg5: memref<6xi32, #tpu.memory_space<smem>>, %arg6: memref<6xi32, #tpu.memory_space<smem>>) -> (i32, i32) {
    %0 = arith.index_cast %arg0 : i32 to index
    %1 = memref.load %arg6[%0] : memref<6xi32, #tpu.memory_space<smem>>
    %c0_i32 = arith.constant 0 : i32
    %c0_i32_0 = arith.constant 0 : i32
    return %c0_i32, %1 : i32, i32
  }
}

module attributes {stable_mosaic.version = 11 : i64} {
  func.func @_fused_hyper_attn_kernel(%arg0: i32, %arg1: memref<6xi32, #tpu.memory_space<smem>>, %arg2: memref<6xi32, #tpu.memory_space<smem>>, %arg3: memref<6xi32, #tpu.memory_space<smem>>, %arg4: memref<6xi32, #tpu.memory_space<smem>>, %arg5: memref<6xi32, #tpu.memory_space<smem>>, %arg6: memref<6xi32, #tpu.memory_space<smem>>, %arg7: memref<1x3x3xf32, #tpu.memory_space<vmem>>, %arg8: memref<3x256xf32, #tpu.memory_space<vmem>>, %arg9: memref<3x256xf32, #tpu.memory_space<vmem>>, %arg10: memref<3x256xf32, #tpu.memory_space<vmem>>, %arg11: memref<3x3xf32, #tpu.memory_space<vmem>>) attributes {dimension_semantics = [#tpu.dimension_semantics<arbitrary>], iteration_bounds = array<i64: 6>, scalar_prefetch = 6 : i64, scratch_operands = 1 : i64, tpu.core_type = #tpu.core_type<tc>, window_params = [{transform_indices = @transform_0, window_bounds = array<i64: 1, 3, 3>}, {transform_indices = @transform_1, window_bounds = array<i64: 3, 256>}, {transform_indices = @transform_2, window_bounds = array<i64: 3, 256>}, {transform_indices = @transform_3, window_bounds = array<i64: 3, 256>}]} {
    %0 = arith.index_cast %arg0 : i32 to index
    %1 = memref.load %arg1[%0] : memref<6xi32, #tpu.memory_space<smem>>
    %c0_i32 = arith.constant 0 : i32
    %2 = arith.cmpi eq, %1, %c0_i32 : i32
    %3 = arith.extui %2 : i1 to i32
    %c0_i32_0 = arith.constant 0 : i32
    %4 = arith.cmpi ne, %3, %c0_i32_0 : i32
    scf.if %4 {
      %11 = arith.index_cast %arg0 : i32 to index
      %12 = memref.load %arg2[%11] : memref<6xi32, #tpu.memory_space<smem>>
      %c1_i32_3 = arith.constant 1 : i32
      %13 = arith.cmpi eq, %12, %c1_i32_3 : i32
      %14 = arith.extui %13 : i1 to i32
      %c0_i32_4 = arith.constant 0 : i32
      %15 = arith.cmpi ne, %14, %c0_i32_4 : i32
      scf.if %15 {
        %cst_12 = arith.constant 0.000000e+00 : f32
        %26 = vector.broadcast %cst_12 : f32 to vector<3x3xf32>
        %c0_13 = arith.constant 0 : index
        %c0_14 = arith.constant 0 : index
        %27 = vector.load %arg11[%c0_13, %c0_14] : memref<3x3xf32, #tpu.memory_space<vmem>>, vector<3x3xf32>
        tpu.vector_store %arg11[%c0_13, %c0_14], %26 {strides = array<i32>} : memref<3x3xf32, #tpu.memory_space<vmem>>, vector<3x3xf32>,
      } else {
      }
      %c0 = arith.constant 0 : index
      %c0_5 = arith.constant 0 : index
      %16 = vector.load %arg8[%c0, %c0_5] : memref<3x256xf32, #tpu.memory_space<vmem>>, vector<3x256xf32>
      %c0_6 = arith.constant 0 : index
      %c0_7 = arith.constant 0 : index
      %17 = vector.load %arg11[%c0_6, %c0_7] : memref<3x3xf32, #tpu.memory_space<vmem>>, vector<3x3xf32>
      %cst = arith.constant dense<0.000000e+00> : vector<3x3xf32>
      %18 = tpu.matmul %16, %16, %cst {dimension_numbers = #tpu.dot_dimension_numbers<[1], [1], [0], [0], [0, 0, 1, 0], [], []>, precision = #tpu.contract_precision<fp32>} : vector<3x256xf32>, vector<3x256xf32>, vector<3x3xf32> -> vector<3x3xf32>
      %19 = arith.addf %17, %18 : vector<3x3xf32>
      %c0_8 = arith.constant 0 : index
      %c0_9 = arith.constant 0 : index
      %20 = vector.load %arg11[%c0_8, %c0_9] : memref<3x3xf32, #tpu.memory_space<vmem>>, vector<3x3xf32>
      tpu.vector_store %arg11[%c0_8, %c0_9], %19 {strides = array<i32>} : memref<3x3xf32, #tpu.memory_space<vmem>>, vector<3x3xf32>,
      %21 = arith.index_cast %arg0 : i32 to index
      %22 = memref.load %arg3[%21] : memref<6xi32, #tpu.memory_space<smem>>
      %c1_i32_10 = arith.constant 1 : i32
      %23 = arith.cmpi eq, %22, %c1_i32_10 : i32
      %24 = arith.extui %23 : i1 to i32
      %c0_i32_11 = arith.constant 0 : i32
      %25 = arith.cmpi ne, %24, %c0_i32_11 : i32
      scf.if %25 {
        %c0_12 = arith.constant 0 : index
        %c0_13 = arith.constant 0 : index
        %26 = vector.load %arg11[%c0_12, %c0_13] : memref<3x3xf32, #tpu.memory_space<vmem>>, vector<3x3xf32>
        %c0_14 = arith.constant 0 : index
        %c0_15 = arith.constant 0 : index
        %c0_16 = arith.constant 0 : index
        %27 = vector.load %arg7[%c0_14, %c0_15, %c0_16] : memref<1x3x3xf32, #tpu.memory_space<vmem>>, vector<1x3x3xf32>
        %28 = vector.shape_cast %27 : vector<1x3x3xf32> to vector<3x3xf32>
        %29 = vector.extract_strided_slice %28 {offsets = [0, 0], sizes = [3, 1], strides = [1, 1]} : vector<3x3xf32> to vector<3x1xf32>
        %30 = vector.extract_strided_slice %28 {offsets = [0, 1], sizes = [3, 1], strides = [1, 1]} : vector<3x3xf32> to vector<3x1xf32>
        %31 = vector.extract_strided_slice %28 {offsets = [0, 2], sizes = [3, 1], strides = [1, 1]} : vector<3x3xf32> to vector<3x1xf32>
        %32 = vector.broadcast %30 : vector<3x1xf32> to vector<3x3xf32>
        %33 = arith.mulf %26, %32 : vector<3x3xf32>
        %cst_17 = arith.constant dense<0xFF800000> : vector<3xf32>
        %34 = vector.multi_reduction <maximumf>, %33, %cst_17 [1] : vector<3x3xf32> to vector<3xf32>
        %35 = vector.shape_cast %34 : vector<3xf32> to vector<3x1xf32>
        %36 = vector.broadcast %35 : vector<3x1xf32> to vector<3x3xf32>
        %37 = arith.subf %33, %36 : vector<3x3xf32>
        %38 = math.exp %37 : vector<3x3xf32>
        %cst_18 = arith.constant dense<0.000000e+00> : vector<3xf32>
        %39 = vector.multi_reduction <add>, %38, %cst_18 [1] : vector<3x3xf32> to vector<3xf32>
        %40 = vector.shape_cast %39 : vector<3xf32> to vector<3x1xf32>
        %41 = vector.broadcast %40 : vector<3x1xf32> to vector<3x3xf32>
        %42 = arith.divf %38, %41 : vector<3x3xf32>
        %43 = tpu.iota {dimensions = array<i32: 0>} : vector<3x3xi32>
        %44 = tpu.iota {dimensions = array<i32: 1>} : vector<3x3xi32>
        %45 = arith.cmpi eq, %43, %44 : vector<3x3xi32>
        %cst_19 = arith.constant 1.000000e+00 : f32
        %cst_20 = arith.constant 0.000000e+00 : f32
        %46 = vector.broadcast %cst_19 : f32 to vector<3x3xf32>
        %47 = vector.broadcast %cst_20 : f32 to vector<3x3xf32>
        %48 = arith.select %45, %46, %47 : vector<3x3xi1>, vector<3x3xf32>
        %49 = vector.broadcast %29 : vector<3x1xf32> to vector<3x3xf32>
        %50 = arith.mulf %49, %42 : vector<3x3xf32>
        %51 = vector.broadcast %31 : vector<3x1xf32> to vector<3x3xf32>
        %52 = arith.mulf %51, %48 : vector<3x3xf32>
        %53 = arith.addf %50, %52 : vector<3x3xf32>
        %c0_21 = arith.constant 0 : index
        %c0_22 = arith.constant 0 : index
        %54 = vector.load %arg11[%c0_21, %c0_22] : memref<3x3xf32, #tpu.memory_space<vmem>>, vector<3x3xf32>
        tpu.vector_store %arg11[%c0_21, %c0_22], %53 {strides = array<i32>} : memref<3x3xf32, #tpu.memory_space<vmem>>, vector<3x3xf32>,
      } else {
      }
    } else {
    }
    %c1_i32 = arith.constant 1 : i32
    %5 = arith.cmpi eq, %1, %c1_i32 : i32
    %6 = arith.extui %5 : i1 to i32
    %c0_i32_1 = arith.constant 0 : i32
    %7 = arith.cmpi ne, %6, %c0_i32_1 : i32
    scf.if %7 {
      %c0 = arith.constant 0 : index
      %c0_3 = arith.constant 0 : index
      %11 = vector.load %arg9[%c0, %c0_3] : memref<3x256xf32, #tpu.memory_space<vmem>>, vector<3x256xf32>
      %c0_4 = arith.constant 0 : index
      %c0_5 = arith.constant 0 : index
      %12 = vector.load %arg11[%c0_4, %c0_5] : memref<3x3xf32, #tpu.memory_space<vmem>>, vector<3x3xf32>
      %c0_6 = arith.constant 0 : index
      %c0_7 = arith.constant 0 : index
      %13 = vector.load %arg8[%c0_6, %c0_7] : memref<3x256xf32, #tpu.memory_space<vmem>>, vector<3x256xf32>
      %cst = arith.constant dense<0.000000e+00> : vector<3x256xf32>
      %14 = tpu.matmul %12, %13, %cst {dimension_numbers = #tpu.dot_dimension_numbers<[1], [0], [0], [1], [0, 0, 1, 1], [], []>, precision = #tpu.contract_precision<fp32>} : vector<3x3xf32>, vector<3x256xf32>, vector<3x256xf32> -> vector<3x256xf32>
      %15 = arith.addf %11, %14 : vector<3x256xf32>
      %c0_8 = arith.constant 0 : index
      %c0_9 = arith.constant 0 : index
      %16 = vector.load %arg10[%c0_8, %c0_9] : memref<3x256xf32, #tpu.memory_space<vmem>>, vector<3x256xf32>
      tpu.vector_store %arg10[%c0_8, %c0_9], %15 {strides = array<i32>} : memref<3x256xf32, #tpu.memory_space<vmem>>, vector<3x256xf32>,
    } else {
    }
    %c2_i32 = arith.constant 2 : i32
    %8 = arith.cmpi eq, %1, %c2_i32 : i32
    %9 = arith.extui %8 : i1 to i32
    %c0_i32_2 = arith.constant 0 : i32
    %10 = arith.cmpi ne, %9, %c0_i32_2 : i32
    scf.if %10 {
      %c0 = arith.constant 0 : index
      %c0_3 = arith.constant 0 : index
      %11 = vector.load %arg8[%c0, %c0_3] : memref<3x256xf32, #tpu.memory_space<vmem>>, vector<3x256xf32>
      %cst = arith.constant dense<0.000000e+00> : vector<3x3xf32>
      %12 = tpu.matmul %11, %11, %cst {dimension_numbers = #tpu.dot_dimension_numbers<[1], [1], [0], [0], [0, 0, 1, 0], [], []>, precision = #tpu.contract_precision<fp32>} : vector<3x256xf32>, vector<3x256xf32>, vector<3x3xf32> -> vector<3x3xf32>
      %c0_4 = arith.constant 0 : index
      %c0_5 = arith.constant 0 : index
      %c0_6 = arith.constant 0 : index
      %13 = vector.load %arg7[%c0_4, %c0_5, %c0_6] : memref<1x3x3xf32, #tpu.memory_space<vmem>>, vector<1x3x3xf32>
      %14 = vector.shape_cast %13 : vector<1x3x3xf32> to vector<3x3xf32>
      %15 = vector.extract_strided_slice %14 {offsets = [0, 0], sizes = [3, 1], strides = [1, 1]} : vector<3x3xf32> to vector<3x1xf32>
      %16 = vector.extract_strided_slice %14 {offsets = [0, 1], sizes = [3, 1], strides = [1, 1]} : vector<3x3xf32> to vector<3x1xf32>
      %17 = vector.extract_strided_slice %14 {offsets = [0, 2], sizes = [3, 1], strides = [1, 1]} : vector<3x3xf32> to vector<3x1xf32>
      %18 = vector.broadcast %16 : vector<3x1xf32> to vector<3x3xf32>
      %19 = arith.mulf %12, %18 : vector<3x3xf32>
      %cst_7 = arith.constant dense<0xFF800000> : vector<3xf32>
      %20 = vector.multi_reduction <maximumf>, %19, %cst_7 [1] : vector<3x3xf32> to vector<3xf32>
      %21 = vector.shape_cast %20 : vector<3xf32> to vector<3x1xf32>
      %22 = vector.broadcast %21 : vector<3x1xf32> to vector<3x3xf32>
      %23 = arith.subf %19, %22 : vector<3x3xf32>
      %24 = math.exp %23 : vector<3x3xf32>
      %cst_8 = arith.constant dense<0.000000e+00> : vector<3xf32>
      %25 = vector.multi_reduction <add>, %24, %cst_8 [1] : vector<3x3xf32> to vector<3xf32>
      %26 = vector.shape_cast %25 : vector<3xf32> to vector<3x1xf32>
      %27 = vector.broadcast %26 : vector<3x1xf32> to vector<3x3xf32>
      %28 = arith.divf %24, %27 : vector<3x3xf32>
      %29 = tpu.iota {dimensions = array<i32: 0>} : vector<3x3xi32>
      %30 = tpu.iota {dimensions = array<i32: 1>} : vector<3x3xi32>
      %31 = arith.cmpi eq, %29, %30 : vector<3x3xi32>
      %cst_9 = arith.constant 1.000000e+00 : f32
      %cst_10 = arith.constant 0.000000e+00 : f32
      %32 = vector.broadcast %cst_9 : f32 to vector<3x3xf32>
      %33 = vector.broadcast %cst_10 : f32 to vector<3x3xf32>
      %34 = arith.select %31, %32, %33 : vector<3x3xi1>, vector<3x3xf32>
      %35 = vector.broadcast %15 : vector<3x1xf32> to vector<3x3xf32>
      %36 = arith.mulf %35, %28 : vector<3x3xf32>
      %37 = vector.broadcast %17 : vector<3x1xf32> to vector<3x3xf32>
      %38 = arith.mulf %37, %34 : vector<3x3xf32>
      %39 = arith.addf %36, %38 : vector<3x3xf32>
      %c0_11 = arith.constant 0 : index
      %c0_12 = arith.constant 0 : index
      %40 = vector.load %arg9[%c0_11, %c0_12] : memref<3x256xf32, #tpu.memory_space<vmem>>, vector<3x256xf32>
      %cst_13 = arith.constant dense<0.000000e+00> : vector<3x256xf32>
      %41 = tpu.matmul %39, %11, %cst_13 {dimension_numbers = #tpu.dot_dimension_numbers<[1], [0], [0], [1], [0, 0, 1, 1], [], []>, precision = #tpu.contract_precision<fp32>} : vector<3x3xf32>, vector<3x256xf32>, vector<3x256xf32> -> vector<3x256xf32>
      %42 = arith.addf %40, %41 : vector<3x256xf32>
      %c0_14 = arith.constant 0 : index
      %c0_15 = arith.constant 0 : index
      %43 = vector.load %arg10[%c0_14, %c0_15] : memref<3x256xf32, #tpu.memory_space<vmem>>, vector<3x256xf32>
      tpu.vector_store %arg10[%c0_14, %c0_15], %42 {strides = array<i32>} : memref<3x256xf32, #tpu.memory_space<vmem>>, vector<3x256xf32>,
    } else {
    }
    return
  }
  func.func @transform_0(%arg0: i32, %arg1: memref<6xi32, #tpu.memory_space<smem>>, %arg2: memref<6xi32, #tpu.memory_space<smem>>, %arg3: memref<6xi32, #tpu.memory_space<smem>>, %arg4: memref<6xi32, #tpu.memory_space<smem>>, %arg5: memref<6xi32, #tpu.memory_space<smem>>, %arg6: memref<6xi32, #tpu.memory_space<smem>>) -> (i32, i32, i32) {
    %0 = arith.index_cast %arg0 : i32 to index
    %1 = memref.load %arg4[%0] : memref<6xi32, #tpu.memory_space<smem>>
    %c0_i32 = arith.constant 0 : i32
    %c0_i32_0 = arith.constant 0 : i32
    %c0_i32_1 = arith.constant 0 : i32
    return %1, %c0_i32, %c0_i32_0 : i32, i32, i32
  }
  func.func @transform_1(%arg0: i32, %arg1: memref<6xi32, #tpu.memory_space<smem>>, %arg2: memref<6xi32, #tpu.memory_space<smem>>, %arg3: memref<6xi32, #tpu.memory_space<smem>>, %arg4: memref<6xi32, #tpu.memory_space<smem>>, %arg5: memref<6xi32, #tpu.memory_space<smem>>, %arg6: memref<6xi32, #tpu.memory_space<smem>>) -> (i32, i32) {
    %0 = arith.index_cast %arg0 : i32 to index
    %1 = memref.load %arg5[%0] : memref<6xi32, #tpu.memory_space<smem>>
    %c0_i32 = arith.constant 0 : i32
    %c0_i32_0 = arith.constant 0 : i32
    return %c0_i32, %1 : i32, i32
  }
  func.func @transform_2(%arg0: i32, %arg1: memref<6xi32, #tpu.memory_space<smem>>, %arg2: memref<6xi32, #tpu.memory_space<smem>>, %arg3: memref<6xi32, #tpu.memory_space<smem>>, %arg4: memref<6xi32, #tpu.memory_space<smem>>, %arg5: memref<6xi32, #tpu.memory_space<smem>>, %arg6: memref<6xi32, #tpu.memory_space<smem>>) -> (i32, i32) {
    %0 = arith.index_cast %arg0 : i32 to index
    %1 = memref.load %arg6[%0] : memref<6xi32, #tpu.memory_space<smem>>
    %c0_i32 = arith.constant 0 : i32
    %c0_i32_0 = arith.constant 0 : i32
    return %c0_i32, %1 : i32, i32
  }
  func.func @transform_3(%arg0: i32, %arg1: memref<6xi32, #tpu.memory_space<smem>>, %arg2: memref<6xi32, #tpu.memory_space<smem>>, %arg3: memref<6xi32, #tpu.memory_space<smem>>, %arg4: memref<6xi32, #tpu.memory_space<smem>>, %arg5: memref<6xi32, #tpu.memory_space<smem>>, %arg6: memref<6xi32, #tpu.memory_space<smem>>) -> (i32, i32) {
    %0 = arith.index_cast %arg0 : i32 to index
    %1 = memref.load %arg6[%0] : memref<6xi32, #tpu.memory_space<smem>>
    %c0_i32 = arith.constant 0 : i32
    %c0_i32_0 = arith.constant 0 : i32
    return %c0_i32, %1 : i32, i32
  }
}

</mosaic_0001>

<llo_original>
// kernel: tpu_custom_call.1
$region0: #{tpu_custom_call.1}
  #allocation0 [shape = 'u32[]', space=smem, size = 0x4, offset = 0x4, fixed_abs, tag = 'smem constant byte address 0x4 - core index']
  #allocation1 [shape = 'u32[72,128]{1,0:T(1,128)}', space=vmem, size = 0x9000, scoped, tag = 'internal scratch']
  #allocation2 [shape = 'f32[3,3]{1,0:T(4,128)}', space=vmem, size = 0x800, scoped, tag = 'scratch operand']
  #allocation3 [shape = 's32[1]{0}', space=sflag, size = 0x4, scoped, tag = 'scoped memory for tpu_custom_call.1']
  #allocation4 [shape = 'u8[512]{0}', space=smem, size = 0x200, scoped, tag = 'prefetched SMEM operand 0']
  #allocation5 [shape = 'u8[512]{0}', space=smem, size = 0x200, scoped, tag = 'prefetched SMEM operand 1']
  #allocation6 [shape = 'u8[512]{0}', space=smem, size = 0x200, scoped, tag = 'prefetched SMEM operand 2']
  #allocation7 [shape = 'u8[512]{0}', space=smem, size = 0x200, scoped, tag = 'prefetched SMEM operand 3']
  #allocation8 [shape = 'u8[512]{0}', space=smem, size = 0x200, scoped, tag = 'prefetched SMEM operand 4']
  #allocation9 [shape = 'u8[512]{0}', space=smem, size = 0x200, scoped, tag = 'prefetched SMEM operand 5']
  %s0 = inlined_call_operand.vmem [shape: s32[6], index: 0, kind: input, shape index: {}]
  %s1 = inlined_call_operand.vmem [shape: s32[6], index: 1, kind: input, shape index: {}]
  %s2 = inlined_call_operand.vmem [shape: s32[6], index: 2, kind: input, shape index: {}]
  %s3 = inlined_call_operand.vmem [shape: s32[6], index: 3, kind: input, shape index: {}]
  %s4 = inlined_call_operand.vmem [shape: s32[6], index: 4, kind: input, shape index: {}]
  %s5 = inlined_call_operand.vmem [shape: s32[6], index: 5, kind: input, shape index: {}]
  %s6 = inlined_call_operand.vmem [shape: f32[6,3,3], index: 6, kind: input, shape index: {}]
  %s7 = inlined_call_operand.vmem [shape: f32[3,1536], index: 7, kind: input, shape index: {}]
  %s8 = inlined_call_operand.hbm [shape: f32[3,1536], index: 8, kind: input, shape index: {}, may-alias: {8,9}]
  %s9 = inlined_call_operand.hbm [shape: f32[3,1536], index: 9, kind: output, shape index: {}, may-alias: {8,9}]
  %s10 = sld [smem:[#allocation0]]
  $region69: #{tpu_custom_call.1} parent=0
    _
  %s12 = ssub.s32 1, %s10
  %s13 = scalar_select 0, %s12, %s10
  %s15 = sshll.u32 %s0, 4
  %s16 = int_to_ptr.vmem [resolvable:$true] %s15
  %18 = dma.vmem_to_smem %s16, 16, [#allocation4], [#allocation3]
  %s20 = sshll.u32 %s1, 4
  %s21 = int_to_ptr.vmem [resolvable:$true] %s20
  %23 = dma.vmem_to_smem %s21, 16, [#allocation5], [#allocation3]
  %s25 = sshll.u32 %s2, 4
  %s26 = int_to_ptr.vmem [resolvable:$true] %s25
  %28 = dma.vmem_to_smem %s26, 16, [#allocation6], [#allocation3]
  %s30 = sshll.u32 %s3, 4
  %s31 = int_to_ptr.vmem [resolvable:$true] %s30
  %33 = dma.vmem_to_smem %s31, 16, [#allocation7], [#allocation3]
  %s35 = sshll.u32 %s4, 4
  %s36 = int_to_ptr.vmem [resolvable:$true] %s35
  %38 = dma.vmem_to_smem %s36, 16, [#allocation8], [#allocation3]
  %s40 = sshll.u32 %s5, 4
  %s41 = int_to_ptr.vmem [resolvable:$true] %s40
  %43 = dma.vmem_to_smem %s41, 16, [#allocation9], [#allocation3]
  %45 = dma.done [#allocation3], 96
  %46 = sfence
  $region1: #{tpu_custom_call.1} parent=0
    #allocation10 [shape = 'u8[8192]{0}', space=vmem, size = 0x2000, scoped, tag = 'input window, operand 8']
    #allocation11 [shape = 's32[2]{0}', space=sflag, size = 0x8, scoped, tag = 'scoped memory for tpu_custom_call.1']
    #allocation12 [shape = 's32[2]{0}', space=sflag, size = 0x8, scoped, tag = 'scoped memory for tpu_custom_call.1']
    #allocation13 [shape = 'u8[8192]{0}', space=vmem, size = 0x2000, scoped, tag = 'output window, operand 0']
    %47 = vsyncpa [#allocation11], 0
    %s48 = scalar_lea.sflag [#allocation11], 1
    %49 = vsyncpa %s48, 0
    %50 = vsyncpa [#allocation12], 0
    %s51 = scalar_lea.sflag [#allocation12], 1
    %52 = vsyncpa %s51, 0
    loop: start=0, step=1, limit=8
    $region2: #{tpu_custom_call.1} parent=1 // loop_pre_header
      _
    $region3: #{tpu_custom_call.1} parent=1 // loop_header
      %s54 = sphi 0, %s58
      %p55 = scmp.ge.s32.totalorder %s54, 8
      %s66 = sphi 0, %s68
      %s69 = sphi 0, %s66
      %s70 = sphi 0, %s69
      %s86 = sphi 0, %s70
      %s94 = sphi 0, %s96
      %s97 = sphi 0, %s94
      %s98 = sphi 0, %s97
      %s114 = sphi 0, %s98
      %s122 = sphi 0, %s124
      %s125 = sphi 0, %s122
      %s126 = sphi 0, %s125
      %s142 = sphi 0, %s126
      %s150 = sphi 0, %s152
      %s153 = sphi 0, %s150
      %s154 = sphi 0, %s153
      %s170 = sphi 0, %s154
    $region4: #{tpu_custom_call.1} parent=1 // loop_header_branch
      %57 = sbr.rel (%p55) target = $region8
    $region5: #{tpu_custom_call.1} parent=1 // loop_body
      %s59 = ssub.s32 %s54, 1
      %s60 = ssub.s32 %s54, 2
      %s61 = sadd.s32 %s54, 1
      %s62 = sld [smem:[#allocation7 + %s54]]
      %s63 = sld [smem:[#allocation7 + %s61]]
      %s64 = ssub.s32 %s62, %s63
      %p65 = scmp.eq.s32.totalorder %s64, 0
      %s67 = sadd.s32 %s66, 1
      %s68 = scalar_select %p65, %s66, %s67
      %p71 = pneg %p65
      %p72 = scmp.eq.s32.totalorder %s54, 5
      %p73 = por %p71, %p72
      %p74 = scmp.ne.s32.totalorder %s66, %s69
      %p75 = scmp.eq.s32.totalorder %s54, 0
      %p76 = por %p74, %p75
      %p77 = scmp.ne.s32.totalorder %s66, %s69
      %p78 = scmp.eq.s32.totalorder %s59, 5
      %p79 = por %p77, %p78
      %p80 = scmp.ne.s32.totalorder %s69, %s70
      %p81 = scmp.eq.s32.totalorder %s59, 0
      %p82 = por %p80, %p81
      %p83 = scmp.ne.s32.totalorder %s69, %s70
      %p84 = scmp.eq.s32.totalorder %s60, 5
      %p85 = por %p83, %p84
      %p87 = scmp.ne.s32.totalorder %s70, %s86
      %p88 = scmp.eq.s32.totalorder %s60, 0
      %p89 = por %p87, %p88
      %s90 = sld [smem:[#allocation8 + %s54]]
      %s91 = sld [smem:[#allocation8 + %s61]]
      %s92 = ssub.s32 %s90, %s91
      %p93 = scmp.eq.s32.totalorder %s92, 0
      %s95 = sadd.s32 %s94, 1
      %s96 = scalar_select %p93, %s94, %s95
      %p99 = pneg %p93
      %p100 = scmp.eq.s32.totalorder %s54, 5
      %p101 = por %p99, %p100
      %p102 = scmp.ne.s32.totalorder %s94, %s97
      %p103 = scmp.eq.s32.totalorder %s54, 0
      %p104 = por %p102, %p103
      %p105 = scmp.ne.s32.totalorder %s94, %s97
      %p106 = scmp.eq.s32.totalorder %s59, 5
      %p107 = por %p105, %p106
      %p108 = scmp.ne.s32.totalorder %s97, %s98
      %p109 = scmp.eq.s32.totalorder %s59, 0
      %p110 = por %p108, %p109
      %p111 = scmp.ne.s32.totalorder %s97, %s98
      %p112 = scmp.eq.s32.totalorder %s60, 5
      %p113 = por %p111, %p112
      %p115 = scmp.ne.s32.totalorder %s98, %s114
      %p116 = scmp.eq.s32.totalorder %s60, 0
      %p117 = por %p115, %p116
      %s118 = sld [smem:[#allocation9 + %s54]]
      %s119 = sld [smem:[#allocation9 + %s61]]
      %s120 = ssub.s32 %s118, %s119
      %p121 = scmp.eq.s32.totalorder %s120, 0
      %s123 = sadd.s32 %s122, 1
      %s124 = scalar_select %p121, %s122, %s123
      %p127 = pneg %p121
      %p128 = scmp.eq.s32.totalorder %s54, 5
      %p129 = por %p127, %p128
      %p130 = scmp.ne.s32.totalorder %s122, %s125
      %p131 = scmp.eq.s32.totalorder %s54, 0
      %p132 = por %p130, %p131
      %p133 = scmp.ne.s32.totalorder %s122, %s125
      %p134 = scmp.eq.s32.totalorder %s59, 5
      %p135 = por %p133, %p134
      %p136 = scmp.ne.s32.totalorder %s125, %s126
      %p137 = scmp.eq.s32.totalorder %s59, 0
      %p138 = por %p136, %p137
      %p139 = scmp.ne.s32.totalorder %s125, %s126
      %p140 = scmp.eq.s32.totalorder %s60, 5
      %p141 = por %p139, %p140
      %p143 = scmp.ne.s32.totalorder %s126, %s142
      %p144 = scmp.eq.s32.totalorder %s60, 0
      %p145 = por %p143, %p144
      %s146 = sld [smem:[#allocation9 + %s54]]
      %s147 = sld [smem:[#allocation9 + %s61]]
      %s148 = ssub.s32 %s146, %s147
      %p149 = scmp.eq.s32.totalorder %s148, 0
      %s151 = sadd.s32 %s150, 1
      %s152 = scalar_select %p149, %s150, %s151
      %p155 = pneg %p149
      %p156 = scmp.eq.s32.totalorder %s54, 5
      %p157 = por %p155, %p156
      %p158 = scmp.ne.s32.totalorder %s150, %s153
      %p159 = scmp.eq.s32.totalorder %s54, 0
      %p160 = por %p158, %p159
      %p161 = scmp.ne.s32.totalorder %s150, %s153
      %p162 = scmp.eq.s32.totalorder %s59, 5
      %p163 = por %p161, %p162
      %p164 = scmp.ne.s32.totalorder %s153, %s154
      %p165 = scmp.eq.s32.totalorder %s59, 0
      %p166 = por %p164, %p165
      %p167 = scmp.ne.s32.totalorder %s153, %s154
      %p168 = scmp.eq.s32.totalorder %s60, 5
      %p169 = por %p167, %p168
      %p171 = scmp.ne.s32.totalorder %s154, %s170
      %p172 = scmp.eq.s32.totalorder %s60, 0
      %p173 = por %p171, %p172
      %p174 = scmp.le.s32.totalorder 1, %s54
      %p175 = scmp.lt.s32.totalorder %s54, 7
      %p176 = pnand %p174, %p175
      %p177 = pneg %p176
      // Predicated region
      $region9: #{tpu_custom_call.1} parent=5 // pred_check
        _
      $region10: #{tpu_custom_call.1} parent=5 // pred_check_branch
        %179 = sbr.rel (%p176) target = $region12
      $region11: #{tpu_custom_call.1} parent=5 // pred_region
        %s180 = ssub.s32 %s54, 1
      $region12: #{tpu_custom_call.1} parent=5 // pred_fallthru
        _
      %p181 = scmp.lt.s32.totalorder %s54, 6
      // Predicated region
      $region13: #{tpu_custom_call.1} parent=5 // pred_check
        %p182 = pneg %p181
      $region14: #{tpu_custom_call.1} parent=5 // pred_check_branch
        %184 = sbr.rel (%p182) target = $region16
      $region15: #{tpu_custom_call.1} parent=5 // pred_region
        // Predicated region
        $region17: #{tpu_custom_call.1} parent=15 // pred_check
          %p185 = pneg %p76
        $region18: #{tpu_custom_call.1} parent=15 // pred_check_branch
          %187 = sbr.rel (%p185) target = $region20
        $region19: #{tpu_custom_call.1} parent=15 // pred_region
          %s188 = sld [smem:[#allocation7 + %s54]]
          %p189 = scmp.lt.s32.totalorder %s188, 5
          %s190 = scalar_select %p189, %s188, 5
          %s191 = smul.addr %s190, 4
          %s192 = scalar_lea.vmem %s6, %s191
          %s193 = sld [smem:[#allocation7 + %s54]]
        $region20: #{tpu_custom_call.1} parent=15 // pred_fallthru
          _
        // Predicated region
        $region21: #{tpu_custom_call.1} parent=15 // pred_check
          %p194 = pneg %p104
        $region22: #{tpu_custom_call.1} parent=15 // pred_check_branch
          %196 = sbr.rel (%p194) target = $region24
        $region23: #{tpu_custom_call.1} parent=15 // pred_region
          %s197 = sld [smem:[#allocation8 + %s54]]
          %s198 = smul.u32 2, %s197
          %p199 = scmp.lt.s32.totalorder %s198, 11
          %s200 = scalar_select %p199, %s198, 11
          %s201 = smul.addr %s200, 4
          %s202 = scalar_lea.vmem %s7, %s201
          %s203 = sld [smem:[#allocation8 + %s54]]
          %s204 = smul.u32 2, %s203
        $region24: #{tpu_custom_call.1} parent=15 // pred_fallthru
          _
        // Predicated region
        $region25: #{tpu_custom_call.1} parent=15 // pred_check
          %p205 = pneg %p132
        $region26: #{tpu_custom_call.1} parent=15 // pred_check_branch
          %207 = sbr.rel (%p205) target = $region28
        $region27: #{tpu_custom_call.1} parent=15 // pred_region
          %s208 = sand.u32 %s122, 1
          %s209 = scalar_lea.sflag [#allocation11], %s208
          %s210 = sand.u32 %s122, 1
          %s211 = smul.addr %s210, 8
          %s212 = scalar_lea.vmem [#allocation10], %s211
          %s213 = sld [smem:[#allocation9 + %s54]]
          %s214 = smul.u32 2, %s213
          %216 = vsyncadd %s209, 0
          %s217 = smul.addr %s214, 4
          %s218 = scalar_lea.hbm %s8, %s217
          %s220 = sshll.u32 %s218, 4
          %s221 = int_to_ptr.hbm [resolvable:$true] %s220
          %s222 = sshll.u32 %s212, 4
          %s223 = int_to_ptr.vmem [resolvable:$true] %s222
          %225 = dma.hbm_to_vmem [thread:$0]  %s221, 128, %s223, %s209
        $region28: #{tpu_custom_call.1} parent=15 // pred_fallthru
          _
      $region16: #{tpu_custom_call.1} parent=5 // pred_fallthru
        _
      %p226 = scmp.le.s32.totalorder 1, %s54
      %p227 = scmp.lt.s32.totalorder %s54, 7
      %p228 = pnand %p226, %p227
      %p229 = pneg %p228
      // Predicated region
      $region29: #{tpu_custom_call.1} parent=5 // pred_check
        _
      $region30: #{tpu_custom_call.1} parent=5 // pred_check_branch
        %231 = sbr.rel (%p228) target = $region32
      $region31: #{tpu_custom_call.1} parent=5 // pred_region
        %s232 = ssub.s32 %s54, 1
        %s233 = sand.u32 %s125, 1
        %s234 = scalar_lea.sflag [#allocation11], %s233
        %s235 = sand.u32 %s125, 1
        %s236 = smul.addr %s235, 8
        %s237 = scalar_lea.vmem [#allocation10], %s236
        // Predicated region
        $region33: #{tpu_custom_call.1} parent=31 // pred_check
          %p238 = pneg %p138
        $region34: #{tpu_custom_call.1} parent=31 // pred_check_branch
          %240 = sbr.rel (%p238) target = $region36
        $region35: #{tpu_custom_call.1} parent=31 // pred_region
          %242 = dma.done %s234, 128
        $region36: #{tpu_custom_call.1} parent=31 // pred_fallthru
          _
        %s243 = sld [smem:[#allocation7 + %s59]]
        %p244 = scmp.lt.s32.totalorder %s243, 5
        %s245 = scalar_select %p244, %s243, 5
        %s246 = smul.addr %s245, 4
        %s247 = scalar_lea.vmem %s6, %s246
        %p248 = pneg %p82
        %p249 = pneg %p79
        %s250 = sld [smem:[#allocation8 + %s59]]
        %s251 = smul.u32 2, %s250
        %p252 = scmp.lt.s32.totalorder %s251, 11
        %s253 = scalar_select %p252, %s251, 11
        %s254 = smul.addr %s253, 4
        %s255 = scalar_lea.vmem %s7, %s254
        %p256 = pneg %p110
        %p257 = pneg %p107
        %s258 = sand.u32 %s125, 1
        %s259 = scalar_lea.sflag [#allocation11], %s258
        %s260 = sand.u32 %s125, 1
        %s261 = smul.addr %s260, 8
        %s262 = scalar_lea.vmem [#allocation10], %s261
        %p263 = pneg %p138
        %p264 = pneg %p135
        %p265 = pneg %p166
        %p266 = pneg %p163
        %s267 = sand.u32 %s153, 1
        %s268 = scalar_lea.sflag [#allocation12], %s267
        %s269 = sand.u32 %s153, 1
        %s270 = smul.addr %s269, 8
        %s271 = scalar_lea.vmem [#allocation13], %s270
        %s272 = sld [smem:[#allocation7 + %s59]]
        %p273 = scmp.lt.s32.totalorder %s272, 5
        %s274 = scalar_select %p273, %s272, 5
        %s275 = smul.addr %s274, 4
        %s276 = scalar_lea.vmem %s6, %s275
        %s277 = sld [smem:[#allocation7 + %s59]]
        %s278 = sld [smem:[#allocation8 + %s59]]
        %s279 = smul.u32 2, %s278
        %p280 = scmp.lt.s32.totalorder %s279, 11
        %s281 = scalar_select %p280, %s279, 11
        %s282 = smul.addr %s281, 4
        %s283 = scalar_lea.vmem %s7, %s282
        %s284 = sld [smem:[#allocation8 + %s59]]
        %s285 = smul.u32 2, %s284
        %s286 = sld [smem:[#allocation9 + %s59]]
        %s287 = smul.u32 2, %s286
        %s288 = sld [smem:[#allocation9 + %s59]]
        %s289 = smul.u32 2, %s288
        %s290 = sld [smem:[#allocation4 + %s59]]
        %p291 = scmp.eq.s32.totalorder %s290, 0
        // Predicated region
        $region37: #{tpu_custom_call.1} parent=31 // pred_check
          %p292 = pneg %p291
        $region38: #{tpu_custom_call.1} parent=31 // pred_check_branch
          %294 = sbr.rel (%p292) target = $region40
        $region39: #{tpu_custom_call.1} parent=31 // pred_region
          %s295 = sld [smem:[#allocation5 + %s59]]
          %p296 = scmp.eq.s32.totalorder %s295, 1
          // Predicated region
          $region41: #{tpu_custom_call.1} parent=39 // pred_check
            %p297 = pneg %p296
          $region42: #{tpu_custom_call.1} parent=39 // pred_check_branch
            %299 = sbr.rel (%p297) target = $region44
          $region43: #{tpu_custom_call.1} parent=39 // pred_region
            %vm300 = vcmask 18432
            %301 = vst.msk [vmem:[#allocation2] sm:$0x7] %vm300, 0.0
          $region44: #{tpu_custom_call.1} parent=39 // pred_fallthru
            _
          %v302 = vld [vmem:[%s283] sm:$0x77]
          %v303 = vld [vmem:[#allocation2] sm:$0x7]
          %305 = vst [vmem:[#allocation1] ss:$2 sm:$0xff] %v302
          %v306 = vld.sshfl [vmem:[#allocation1] sm:$0xff pattern:$0x75316420]
          %v307 = vld.sshfl [vmem:[#allocation1 + $0x8] sm:$0xff pattern:$0x75316420]
          %310 = vst [vmem:[#allocation1] ss:$2 sm:$0xff] %v302
          %v311 = vld.sshfl [vmem:[#allocation1] sm:$0xff pattern:$0x75316420]
          %v312 = vld.sshfl [vmem:[#allocation1 + $0x8] sm:$0xff pattern:$0x75316420]
          %315 = vmatpush.xpose.msra.mxu0 0.0
          %316 = vmatpush.xpose.msra.mxu0 0.0
          %317 = vmatpush.xpose.msra.mxu0 0.0
          %318 = vmatpush.xpose.msra.mxu0 0.0
          %319 = vmatpush.xpose.msra.mxu0 0.0
          %320 = vmatpush.xpose.msra.mxu0 0.0
          %321 = vmatpush.xpose.msra.mxu0 0.0
          %322 = vmatpush.xpose.msra.mxu0 0.0
          %323 = vmatpush.xpose.msra.mxu0 0.0
          %324 = vmatpush.xpose.msra.mxu0 0.0
          %325 = vmatpush.xpose.msra.mxu0 0.0
          %326 = vmatpush.xpose.msra.mxu0 0.0
          %327 = vmatpush.xpose.msra.mxu0 0.0
          %328 = vmatpush.xpose.msra.mxu0 0.0
          %329 = vmatpush.xpose.msra.mxu0 0.0
          %v330 = vand.u32 %v311, 4294901760
          %331 = vmatpush.xpose.msra.mxu0 %v330
          %v332 = vand.u32 %v306, 4294901760
          %v333 = vsub.f32 %v306, %v332
          %v334 = vand.u32 %v333, 4294901760
          %v335 = vsub.f32 %v333, %v334
          %v336 = vand.u32 %v335, 4294901760
          %337 = vmatmul.f32.gmra.mxu0 %v336
          %v338 = vpop.f32.mrf.mxu0
          %v339 = vadd.f32 0.0, %v338
          %340 = vdwg.mxu0
          %341 = vmatpush.xpose.msra.mxu0 0.0
          %342 = vmatpush.xpose.msra.mxu0 0.0
          %343 = vmatpush.xpose.msra.mxu0 0.0
          %344 = vmatpush.xpose.msra.mxu0 0.0
          %345 = vmatpush.xpose.msra.mxu0 0.0
          %346 = vmatpush.xpose.msra.mxu0 0.0
          %347 = vmatpush.xpose.msra.mxu0 0.0
          %348 = vmatpush.xpose.msra.mxu0 0.0
          %349 = vmatpush.xpose.msra.mxu0 0.0
          %350 = vmatpush.xpose.msra.mxu0 0.0
          %351 = vmatpush.xpose.msra.mxu0 0.0
          %352 = vmatpush.xpose.msra.mxu0 0.0
          %353 = vmatpush.xpose.msra.mxu0 0.0
          %354 = vmatpush.xpose.msra.mxu0 0.0
          %355 = vmatpush.xpose.msra.mxu0 0.0
          %v356 = vand.u32 %v311, 4294901760
          %v357 = vsub.f32 %v311, %v356
          %v358 = vand.u32 %v357, 4294901760
          %v359 = vsub.f32 %v357, %v358
          %v360 = vand.u32 %v359, 4294901760
          %361 = vmatpush.xpose.msra.mxu0 %v360
          %v362 = vand.u32 %v306, 4294901760
          %363 = vmatmul.f32.gmra.mxu0 %v362
          %v364 = vpop.f32.mrf.mxu0
          %v365 = vadd.f32 %v339, %v364
          %366 = vdwg.mxu0
          %367 = vmatpush.xpose.msra.mxu0 0.0
          %368 = vmatpush.xpose.msra.mxu0 0.0
          %369 = vmatpush.xpose.msra.mxu0 0.0
          %370 = vmatpush.xpose.msra.mxu0 0.0
          %371 = vmatpush.xpose.msra.mxu0 0.0
          %372 = vmatpush.xpose.msra.mxu0 0.0
          %373 = vmatpush.xpose.msra.mxu0 0.0
          %374 = vmatpush.xpose.msra.mxu0 0.0
          %375 = vmatpush.xpose.msra.mxu0 0.0
          %376 = vmatpush.xpose.msra.mxu0 0.0
          %377 = vmatpush.xpose.msra.mxu0 0.0
          %378 = vmatpush.xpose.msra.mxu0 0.0
          %379 = vmatpush.xpose.msra.mxu0 0.0
          %380 = vmatpush.xpose.msra.mxu0 0.0
          %381 = vmatpush.xpose.msra.mxu0 0.0
          %v382 = vand.u32 %v311, 4294901760
          %v383 = vsub.f32 %v311, %v382
          %384 = vmatpush.xpose.msra.mxu0 %v383
          %v385 = vand.u32 %v306, 4294901760
          %v386 = vsub.f32 %v306, %v385
          %387 = vmatmul.f32.gmra.mxu0 %v386
          %v388 = vpop.f32.mrf.mxu0
          %v389 = vadd.f32 %v365, %v388
          %390 = vdwg.mxu0
          %391 = vmatpush.xpose.msra.mxu0 0.0
          %392 = vmatpush.xpose.msra.mxu0 0.0
          %393 = vmatpush.xpose.msra.mxu0 0.0
          %394 = vmatpush.xpose.msra.mxu0 0.0
          %395 = vmatpush.xpose.msra.mxu0 0.0
          %396 = vmatpush.xpose.msra.mxu0 0.0
          %397 = vmatpush.xpose.msra.mxu0 0.0
          %398 = vmatpush.xpose.msra.mxu0 0.0
          %399 = vmatpush.xpose.msra.mxu0 0.0
          %400 = vmatpush.xpose.msra.mxu0 0.0
          %401 = vmatpush.xpose.msra.mxu0 0.0
          %402 = vmatpush.xpose.msra.mxu0 0.0
          %403 = vmatpush.xpose.msra.mxu0 0.0
          %404 = vmatpush.xpose.msra.mxu0 0.0
          %405 = vmatpush.xpose.msra.mxu0 0.0
          %v406 = vand.u32 %v311, 4294901760
          %407 = vmatpush.xpose.msra.mxu0 %v406
          %v408 = vand.u32 %v306, 4294901760
          %v409 = vsub.f32 %v306, %v408
          %v410 = vand.u32 %v409, 4294901760
          %411 = vmatmul.f32.gmra.mxu0 %v410
          %v412 = vpop.f32.mrf.mxu0
          %v413 = vadd.f32 %v389, %v412
          %414 = vdwg.mxu0
          %415 = vmatpush.xpose.msra.mxu0 0.0
          %416 = vmatpush.xpose.msra.mxu0 0.0
          %417 = vmatpush.xpose.msra.mxu0 0.0
          %418 = vmatpush.xpose.msra.mxu0 0.0
          %419 = vmatpush.xpose.msra.mxu0 0.0
          %420 = vmatpush.xpose.msra.mxu0 0.0
          %421 = vmatpush.xpose.msra.mxu0 0.0
          %422 = vmatpush.xpose.msra.mxu0 0.0
          %423 = vmatpush.xpose.msra.mxu0 0.0
          %424 = vmatpush.xpose.msra.mxu0 0.0
          %425 = vmatpush.xpose.msra.mxu0 0.0
          %426 = vmatpush.xpose.msra.mxu0 0.0
          %427 = vmatpush.xpose.msra.mxu0 0.0
          %428 = vmatpush.xpose.msra.mxu0 0.0
          %429 = vmatpush.xpose.msra.mxu0 0.0
          %v430 = vand.u32 %v311, 4294901760
          %v431 = vsub.f32 %v311, %v430
          %v432 = vand.u32 %v431, 4294901760
          %433 = vmatpush.xpose.msra.mxu0 %v432
          %v434 = vand.u32 %v306, 4294901760
          %435 = vmatmul.f32.gmra.mxu0 %v434
          %v436 = vpop.f32.mrf.mxu0
          %v437 = vadd.f32 %v413, %v436
          %438 = vdwg.mxu0
          %439 = vmatpush.xpose.msra.mxu0 0.0
          %440 = vmatpush.xpose.msra.mxu0 0.0
          %441 = vmatpush.xpose.msra.mxu0 0.0
          %442 = vmatpush.xpose.msra.mxu0 0.0
          %443 = vmatpush.xpose.msra.mxu0 0.0
          %444 = vmatpush.xpose.msra.mxu0 0.0
          %445 = vmatpush.xpose.msra.mxu0 0.0
          %446 = vmatpush.xpose.msra.mxu0 0.0
          %447 = vmatpush.xpose.msra.mxu0 0.0
          %448 = vmatpush.xpose.msra.mxu0 0.0
          %449 = vmatpush.xpose.msra.mxu0 0.0
          %450 = vmatpush.xpose.msra.mxu0 0.0
          %451 = vmatpush.xpose.msra.mxu0 0.0
          %452 = vmatpush.xpose.msra.mxu0 0.0
          %453 = vmatpush.xpose.msra.mxu0 0.0
          %v454 = vand.u32 %v311, 4294901760
          %455 = vmatpush.xpose.msra.mxu0 %v454
          %v456 = vand.u32 %v306, 4294901760
          %457 = vmatmul.f32.gmra.mxu0 %v456
          %v458 = vpop.f32.mrf.mxu0
          %v459 = vadd.f32 %v437, %v458
          %460 = vdwg.mxu0
          %461 = vmatpush.xpose.msra.mxu0 0.0
          %462 = vmatpush.xpose.msra.mxu0 0.0
          %463 = vmatpush.xpose.msra.mxu0 0.0
          %464 = vmatpush.xpose.msra.mxu0 0.0
          %465 = vmatpush.xpose.msra.mxu0 0.0
          %466 = vmatpush.xpose.msra.mxu0 0.0
          %467 = vmatpush.xpose.msra.mxu0 0.0
          %468 = vmatpush.xpose.msra.mxu0 0.0
          %469 = vmatpush.xpose.msra.mxu0 0.0
          %470 = vmatpush.xpose.msra.mxu0 0.0
          %471 = vmatpush.xpose.msra.mxu0 0.0
          %472 = vmatpush.xpose.msra.mxu0 0.0
          %473 = vmatpush.xpose.msra.mxu0 0.0
          %474 = vmatpush.xpose.msra.mxu0 0.0
          %475 = vmatpush.xpose.msra.mxu0 0.0
          %v476 = vand.u32 %v312, 4294901760
          %477 = vmatpush.xpose.msra.mxu0 %v476
          %v478 = vand.u32 %v307, 4294901760
          %v479 = vsub.f32 %v307, %v478
          %v480 = vand.u32 %v479, 4294901760
          %v481 = vsub.f32 %v479, %v480
          %v482 = vand.u32 %v481, 4294901760
          %483 = vmatmul.f32.gmra.mxu0 %v482
          %v484 = vpop.f32.mrf.mxu0
          %v485 = vadd.f32 %v459, %v484
          %486 = vdwg.mxu0
          %487 = vmatpush.xpose.msra.mxu0 0.0
          %488 = vmatpush.xpose.msra.mxu0 0.0
          %489 = vmatpush.xpose.msra.mxu0 0.0
          %490 = vmatpush.xpose.msra.mxu0 0.0
          %491 = vmatpush.xpose.msra.mxu0 0.0
          %492 = vmatpush.xpose.msra.mxu0 0.0
          %493 = vmatpush.xpose.msra.mxu0 0.0
          %494 = vmatpush.xpose.msra.mxu0 0.0
          %495 = vmatpush.xpose.msra.mxu0 0.0
          %496 = vmatpush.xpose.msra.mxu0 0.0
          %497 = vmatpush.xpose.msra.mxu0 0.0
          %498 = vmatpush.xpose.msra.mxu0 0.0
          %499 = vmatpush.xpose.msra.mxu0 0.0
          %500 = vmatpush.xpose.msra.mxu0 0.0
          %501 = vmatpush.xpose.msra.mxu0 0.0
          %v502 = vand.u32 %v312, 4294901760
          %v503 = vsub.f32 %v312, %v502
          %v504 = vand.u32 %v503, 4294901760
          %v505 = vsub.f32 %v503, %v504
          %v506 = vand.u32 %v505, 4294901760
          %507 = vmatpush.xpose.msra.mxu0 %v506
          %v508 = vand.u32 %v307, 4294901760
          %509 = vmatmul.f32.gmra.mxu0 %v508
          %v510 = vpop.f32.mrf.mxu0
          %v511 = vadd.f32 %v485, %v510
          %512 = vdwg.mxu0
          %513 = vmatpush.xpose.msra.mxu0 0.0
          %514 = vmatpush.xpose.msra.mxu0 0.0
          %515 = vmatpush.xpose.msra.mxu0 0.0
          %516 = vmatpush.xpose.msra.mxu0 0.0
          %517 = vmatpush.xpose.msra.mxu0 0.0
          %518 = vmatpush.xpose.msra.mxu0 0.0
          %519 = vmatpush.xpose.msra.mxu0 0.0
          %520 = vmatpush.xpose.msra.mxu0 0.0
          %521 = vmatpush.xpose.msra.mxu0 0.0
          %522 = vmatpush.xpose.msra.mxu0 0.0
          %523 = vmatpush.xpose.msra.mxu0 0.0
          %524 = vmatpush.xpose.msra.mxu0 0.0
          %525 = vmatpush.xpose.msra.mxu0 0.0
          %526 = vmatpush.xpose.msra.mxu0 0.0
          %527 = vmatpush.xpose.msra.mxu0 0.0
          %v528 = vand.u32 %v312, 4294901760
          %v529 = vsub.f32 %v312, %v528
          %530 = vmatpush.xpose.msra.mxu0 %v529
          %v531 = vand.u32 %v307, 4294901760
          %v532 = vsub.f32 %v307, %v531
          %533 = vmatmul.f32.gmra.mxu0 %v532
          %v534 = vpop.f32.mrf.mxu0
          %v535 = vadd.f32 %v511, %v534
          %536 = vdwg.mxu0
          %537 = vmatpush.xpose.msra.mxu0 0.0
          %538 = vmatpush.xpose.msra.mxu0 0.0
          %539 = vmatpush.xpose.msra.mxu0 0.0
          %540 = vmatpush.xpose.msra.mxu0 0.0
          %541 = vmatpush.xpose.msra.mxu0 0.0
          %542 = vmatpush.xpose.msra.mxu0 0.0
          %543 = vmatpush.xpose.msra.mxu0 0.0
          %544 = vmatpush.xpose.msra.mxu0 0.0
          %545 = vmatpush.xpose.msra.mxu0 0.0
          %546 = vmatpush.xpose.msra.mxu0 0.0
          %547 = vmatpush.xpose.msra.mxu0 0.0
          %548 = vmatpush.xpose.msra.mxu0 0.0
          %549 = vmatpush.xpose.msra.mxu0 0.0
          %550 = vmatpush.xpose.msra.mxu0 0.0
          %551 = vmatpush.xpose.msra.mxu0 0.0
          %v552 = vand.u32 %v312, 4294901760
          %553 = vmatpush.xpose.msra.mxu0 %v552
          %v554 = vand.u32 %v307, 4294901760
          %v555 = vsub.f32 %v307, %v554
          %v556 = vand.u32 %v555, 4294901760
          %557 = vmatmul.f32.gmra.mxu0 %v556
          %v558 = vpop.f32.mrf.mxu0
          %v559 = vadd.f32 %v535, %v558
          %560 = vdwg.mxu0
          %561 = vmatpush.xpose.msra.mxu0 0.0
          %562 = vmatpush.xpose.msra.mxu0 0.0
          %563 = vmatpush.xpose.msra.mxu0 0.0
          %564 = vmatpush.xpose.msra.mxu0 0.0
          %565 = vmatpush.xpose.msra.mxu0 0.0
          %566 = vmatpush.xpose.msra.mxu0 0.0
          %567 = vmatpush.xpose.msra.mxu0 0.0
          %568 = vmatpush.xpose.msra.mxu0 0.0
          %569 = vmatpush.xpose.msra.mxu0 0.0
          %570 = vmatpush.xpose.msra.mxu0 0.0
          %571 = vmatpush.xpose.msra.mxu0 0.0
          %572 = vmatpush.xpose.msra.mxu0 0.0
          %573 = vmatpush.xpose.msra.mxu0 0.0
          %574 = vmatpush.xpose.msra.mxu0 0.0
          %575 = vmatpush.xpose.msra.mxu0 0.0
          %v576 = vand.u32 %v312, 4294901760
          %v577 = vsub.f32 %v312, %v576
          %v578 = vand.u32 %v577, 4294901760
          %579 = vmatpush.xpose.msra.mxu0 %v578
          %v580 = vand.u32 %v307, 4294901760
          %581 = vmatmul.f32.gmra.mxu0 %v580
          %v582 = vpop.f32.mrf.mxu0
          %v583 = vadd.f32 %v559, %v582
          %584 = vdwg.mxu0
          %585 = vmatpush.xpose.msra.mxu0 0.0
          %586 = vmatpush.xpose.msra.mxu0 0.0
          %587 = vmatpush.xpose.msra.mxu0 0.0
          %588 = vmatpush.xpose.msra.mxu0 0.0
          %589 = vmatpush.xpose.msra.mxu0 0.0
          %590 = vmatpush.xpose.msra.mxu0 0.0
          %591 = vmatpush.xpose.msra.mxu0 0.0
          %592 = vmatpush.xpose.msra.mxu0 0.0
          %593 = vmatpush.xpose.msra.mxu0 0.0
          %594 = vmatpush.xpose.msra.mxu0 0.0
          %595 = vmatpush.xpose.msra.mxu0 0.0
          %596 = vmatpush.xpose.msra.mxu0 0.0
          %597 = vmatpush.xpose.msra.mxu0 0.0
          %598 = vmatpush.xpose.msra.mxu0 0.0
          %599 = vmatpush.xpose.msra.mxu0 0.0
          %v600 = vand.u32 %v312, 4294901760
          %601 = vmatpush.xpose.msra.mxu0 %v600
          %v602 = vand.u32 %v307, 4294901760
          %603 = vmatmul.f32.gmra.mxu0 %v602
          %v604 = vpop.f32.mrf.mxu0
          %v605 = vadd.f32 %v583, %v604
          %606 = vdwg.mxu0
          %v607 = vadd.f32 %v303, %v605
          %vm608 = vcmask 18432
          %609 = vst.msk [vmem:[#allocation2] sm:$0x7] %vm608, %v607
          %s610 = sld [smem:[#allocation6 + %s59]]
          %p611 = scmp.eq.s32.totalorder %s610, 1
          // Predicated region
          $region45: #{tpu_custom_call.1} parent=39 // pred_check
            %p612 = pneg %p611
          $region46: #{tpu_custom_call.1} parent=39 // pred_check_branch
            %614 = sbr.rel (%p612) target = $region48
          $region47: #{tpu_custom_call.1} parent=39 // pred_region
            %v615 = vld [vmem:[#allocation2] sm:$0x7]
            %v616 = vld [vmem:[%s276] sm:$0x7]
            %618 = vset.pattern.permute.xlu0 1
            %619 = vperm.xlu0 %618, %v616
            %v620 = vpop.permute.xlu0 %619
            %v622 = vmul.f32 %v615, %v620
            %v623 = vsel %vm608, %v622, -inf
            %624 = vmax.xlane.f32.xlu0 %v623
            %v625 = vpop.xlane.xlu0 %624
            %v626 = vsub.f32 %v622, %v625
            %v627 = vmul.f32 %v626, 1.442695
            %v628 = vpow.pop %v627
            %v629 = vsel %vm608, %v628, 0.0
            %630 = vadd.xlane.f32.xlu0 %v629
            %v631 = vpop.xlane.xlu0 %630
            %v632 = vrcp.pop %v631
            %v633 = vmul.f32 %v631, %v632
            %v634 = vsub.f32 1.0, %v633
            %v635 = vmul.f32 %v632, %v634
            %v636 = vadd.f32 %v632, %v635
            %vm637 = vweird.f32 %v631
            %vm638 = vweird.f32 %v632
            %vm639 = vmor %vm637, %vm638
            %v640 = vsel %vm639, %v632, %v636
            %v641 = vand.u32 2147483647, %v631
            %vm642 = vcmp.eq.f32.partialorder %v641, 8.507059e+37
            %v643 = vand.u32 %v631, 2147483648
            %v644 = vor.u32 1.1754944e-38, %v643
            %v645 = vsel %vm642, %v644, %v640
            %v646 = vmul.f32 %v628, %v645
            %v647 = vlaneseq
            %v648 = vshrl.u32 %v647, 7
            %v649 = vlaneseq
            %v650 = vand.u32 %v649, 127
            %vm651 = vcmp.eq.s32.totalorder %v648, %v650
            %v652 = vsel %vm651, 1.0, 0.0
            %653 = vset.pattern.permute.xlu0 0
            %654 = vperm.xlu0 %653, %v616
            %v655 = vpop.permute.xlu0 %654
            %v657 = vmul.f32 %v655, %v646
            %658 = vset.pattern.permute.xlu0 2
            %659 = vperm.xlu0 %658, %v616
            %v660 = vpop.permute.xlu0 %659
            %v662 = vmul.f32 %v660, %v652
            %v663 = vadd.f32 %v657, %v662
            %664 = vst.msk [vmem:[#allocation2] sm:$0x7] %vm608, %v663
          $region48: #{tpu_custom_call.1} parent=39 // pred_fallthru
            _
        $region40: #{tpu_custom_call.1} parent=31 // pred_fallthru
          _
        %p665 = scmp.eq.s32.totalorder %s290, 1
        // Predicated region
        $region49: #{tpu_custom_call.1} parent=31 // pred_check
          %p666 = pneg %p665
        $region50: #{tpu_custom_call.1} parent=31 // pred_check_branch
          %668 = sbr.rel (%p666) target = $region52
        $region51: #{tpu_custom_call.1} parent=31 // pred_region
          %v669 = vld [vmem:[%s237] sm:$0x77]
          %v670 = vld [vmem:[#allocation2] sm:$0x7]
          %v671 = vld [vmem:[%s283] sm:$0x77]
          %673 = vst [vmem:[#allocation1] ss:$2 sm:$0xff] %v671
          %v674 = vld.sshfl [vmem:[#allocation1] sm:$0xff pattern:$0x75316420]
          %v675 = vld.sshfl [vmem:[#allocation1 + $0x8] sm:$0xff pattern:$0x75316420]
          %vm676 = vcmask 23552
          %v678 = vsel %vm676, %v670, 0
          %vm680 = vcmask 1042432
          %v681 = vsel %vm680, %v674, 0
          %v683 = vsel %vm680, %v675, 0
          %685 = vmatpush.msra.mxu0 0.0
          %686 = vmatpush.msra.mxu0 0.0
          %687 = vmatpush.msra.mxu0 0.0
          %688 = vmatpush.msra.mxu0 0.0
          %689 = vmatpush.msra.mxu0 0.0
          %690 = vmatpush.msra.mxu0 0.0
          %691 = vmatpush.msra.mxu0 0.0
          %692 = vmatpush.msra.mxu0 0.0
          %693 = vmatpush.msra.mxu0 0.0
          %694 = vmatpush.msra.mxu0 0.0
          %695 = vmatpush.msra.mxu0 0.0
          %696 = vmatpush.msra.mxu0 0.0
          %697 = vmatpush.msra.mxu0 0.0
          %698 = vmatpush.msra.mxu0 0.0
          %699 = vmatpush.msra.mxu0 0.0
          %v700 = vand.u32 %v681, 4294901760
          %701 = vmatpush.msra.mxu0 %v700
          %v702 = vand.u32 %v678, 4294901760
          %v703 = vsub.f32 %v678, %v702
          %v704 = vand.u32 %v703, 4294901760
          %v705 = vsub.f32 %v703, %v704
          %v706 = vand.u32 %v705, 4294901760
          %707 = vmatmul.f32.gmra.mxu0 %v706
          %v708 = vpop.f32.mrf.mxu0
          %v709 = vadd.f32 0.0, %v708
          %710 = vdwg.mxu0
          %711 = vmatpush.msra.mxu0 0.0
          %712 = vmatpush.msra.mxu0 0.0
          %713 = vmatpush.msra.mxu0 0.0
          %714 = vmatpush.msra.mxu0 0.0
          %715 = vmatpush.msra.mxu0 0.0
          %716 = vmatpush.msra.mxu0 0.0
          %717 = vmatpush.msra.mxu0 0.0
          %718 = vmatpush.msra.mxu0 0.0
          %719 = vmatpush.msra.mxu0 0.0
          %720 = vmatpush.msra.mxu0 0.0
          %721 = vmatpush.msra.mxu0 0.0
          %722 = vmatpush.msra.mxu0 0.0
          %723 = vmatpush.msra.mxu0 0.0
          %724 = vmatpush.msra.mxu0 0.0
          %725 = vmatpush.msra.mxu0 0.0
          %v726 = vand.u32 %v681, 4294901760
          %v727 = vsub.f32 %v681, %v726
          %v728 = vand.u32 %v727, 4294901760
          %v729 = vsub.f32 %v727, %v728
          %v730 = vand.u32 %v729, 4294901760
          %731 = vmatpush.msra.mxu0 %v730
          %v732 = vand.u32 %v678, 4294901760
          %733 = vmatmul.f32.gmra.mxu0 %v732
          %v734 = vpop.f32.mrf.mxu0
          %v735 = vadd.f32 %v709, %v734
          %736 = vdwg.mxu0
          %737 = vmatpush.msra.mxu0 0.0
          %738 = vmatpush.msra.mxu0 0.0
          %739 = vmatpush.msra.mxu0 0.0
          %740 = vmatpush.msra.mxu0 0.0
          %741 = vmatpush.msra.mxu0 0.0
          %742 = vmatpush.msra.mxu0 0.0
          %743 = vmatpush.msra.mxu0 0.0
          %744 = vmatpush.msra.mxu0 0.0
          %745 = vmatpush.msra.mxu0 0.0
          %746 = vmatpush.msra.mxu0 0.0
          %747 = vmatpush.msra.mxu0 0.0
          %748 = vmatpush.msra.mxu0 0.0
          %749 = vmatpush.msra.mxu0 0.0
          %750 = vmatpush.msra.mxu0 0.0
          %751 = vmatpush.msra.mxu0 0.0
          %v752 = vand.u32 %v681, 4294901760
          %v753 = vsub.f32 %v681, %v752
          %754 = vmatpush.msra.mxu0 %v753
          %v755 = vand.u32 %v678, 4294901760
          %v756 = vsub.f32 %v678, %v755
          %757 = vmatmul.f32.gmra.mxu0 %v756
          %v758 = vpop.f32.mrf.mxu0
          %v759 = vadd.f32 %v735, %v758
          %760 = vdwg.mxu0
          %761 = vmatpush.msra.mxu0 0.0
          %762 = vmatpush.msra.mxu0 0.0
          %763 = vmatpush.msra.mxu0 0.0
          %764 = vmatpush.msra.mxu0 0.0
          %765 = vmatpush.msra.mxu0 0.0
          %766 = vmatpush.msra.mxu0 0.0
          %767 = vmatpush.msra.mxu0 0.0
          %768 = vmatpush.msra.mxu0 0.0
          %769 = vmatpush.msra.mxu0 0.0
          %770 = vmatpush.msra.mxu0 0.0
          %771 = vmatpush.msra.mxu0 0.0
          %772 = vmatpush.msra.mxu0 0.0
          %773 = vmatpush.msra.mxu0 0.0
          %774 = vmatpush.msra.mxu0 0.0
          %775 = vmatpush.msra.mxu0 0.0
          %v776 = vand.u32 %v681, 4294901760
          %777 = vmatpush.msra.mxu0 %v776
          %v778 = vand.u32 %v678, 4294901760
          %v779 = vsub.f32 %v678, %v778
          %v780 = vand.u32 %v779, 4294901760
          %781 = vmatmul.f32.gmra.mxu0 %v780
          %v782 = vpop.f32.mrf.mxu0
          %v783 = vadd.f32 %v759, %v782
          %784 = vdwg.mxu0
          %785 = vmatpush.msra.mxu0 0.0
          %786 = vmatpush.msra.mxu0 0.0
          %787 = vmatpush.msra.mxu0 0.0
          %788 = vmatpush.msra.mxu0 0.0
          %789 = vmatpush.msra.mxu0 0.0
          %790 = vmatpush.msra.mxu0 0.0
          %791 = vmatpush.msra.mxu0 0.0
          %792 = vmatpush.msra.mxu0 0.0
          %793 = vmatpush.msra.mxu0 0.0
          %794 = vmatpush.msra.mxu0 0.0
          %795 = vmatpush.msra.mxu0 0.0
          %796 = vmatpush.msra.mxu0 0.0
          %797 = vmatpush.msra.mxu0 0.0
          %798 = vmatpush.msra.mxu0 0.0
          %799 = vmatpush.msra.mxu0 0.0
          %v800 = vand.u32 %v681, 4294901760
          %v801 = vsub.f32 %v681, %v800
          %v802 = vand.u32 %v801, 4294901760
          %803 = vmatpush.msra.mxu0 %v802
          %v804 = vand.u32 %v678, 4294901760
          %805 = vmatmul.f32.gmra.mxu0 %v804
          %v806 = vpop.f32.mrf.mxu0
          %v807 = vadd.f32 %v783, %v806
          %808 = vdwg.mxu0
          %809 = vmatpush.msra.mxu0 0.0
          %810 = vmatpush.msra.mxu0 0.0
          %811 = vmatpush.msra.mxu0 0.0
          %812 = vmatpush.msra.mxu0 0.0
          %813 = vmatpush.msra.mxu0 0.0
          %814 = vmatpush.msra.mxu0 0.0
          %815 = vmatpush.msra.mxu0 0.0
          %816 = vmatpush.msra.mxu0 0.0
          %817 = vmatpush.msra.mxu0 0.0
          %818 = vmatpush.msra.mxu0 0.0
          %819 = vmatpush.msra.mxu0 0.0
          %820 = vmatpush.msra.mxu0 0.0
          %821 = vmatpush.msra.mxu0 0.0
          %822 = vmatpush.msra.mxu0 0.0
          %823 = vmatpush.msra.mxu0 0.0
          %v824 = vand.u32 %v681, 4294901760
          %825 = vmatpush.msra.mxu0 %v824
          %v826 = vand.u32 %v678, 4294901760
          %827 = vmatmul.f32.gmra.mxu0 %v826
          %v828 = vpop.f32.mrf.mxu0
          %v829 = vadd.f32 %v807, %v828
          %830 = vdwg.mxu0
          %831 = vmatpush.msra.mxu0 0.0
          %832 = vmatpush.msra.mxu0 0.0
          %833 = vmatpush.msra.mxu0 0.0
          %834 = vmatpush.msra.mxu0 0.0
          %835 = vmatpush.msra.mxu0 0.0
          %836 = vmatpush.msra.mxu0 0.0
          %837 = vmatpush.msra.mxu0 0.0
          %838 = vmatpush.msra.mxu0 0.0
          %839 = vmatpush.msra.mxu0 0.0
          %840 = vmatpush.msra.mxu0 0.0
          %841 = vmatpush.msra.mxu0 0.0
          %842 = vmatpush.msra.mxu0 0.0
          %843 = vmatpush.msra.mxu0 0.0
          %844 = vmatpush.msra.mxu0 0.0
          %845 = vmatpush.msra.mxu0 0.0
          %v846 = vand.u32 %v683, 4294901760
          %847 = vmatpush.msra.mxu0 %v846
          %v848 = vand.u32 %v678, 4294901760
          %v849 = vsub.f32 %v678, %v848
          %v850 = vand.u32 %v849, 4294901760
          %v851 = vsub.f32 %v849, %v850
          %v852 = vand.u32 %v851, 4294901760
          %853 = vmatmul.f32.gmra.mxu0 %v852
          %v854 = vpop.f32.mrf.mxu0
          %v855 = vadd.f32 0.0, %v854
          %856 = vdwg.mxu0
          %857 = vmatpush.msra.mxu0 0.0
          %858 = vmatpush.msra.mxu0 0.0
          %859 = vmatpush.msra.mxu0 0.0
          %860 = vmatpush.msra.mxu0 0.0
          %861 = vmatpush.msra.mxu0 0.0
          %862 = vmatpush.msra.mxu0 0.0
          %863 = vmatpush.msra.mxu0 0.0
          %864 = vmatpush.msra.mxu0 0.0
          %865 = vmatpush.msra.mxu0 0.0
          %866 = vmatpush.msra.mxu0 0.0
          %867 = vmatpush.msra.mxu0 0.0
          %868 = vmatpush.msra.mxu0 0.0
          %869 = vmatpush.msra.mxu0 0.0
          %870 = vmatpush.msra.mxu0 0.0
          %871 = vmatpush.msra.mxu0 0.0
          %v872 = vand.u32 %v683, 4294901760
          %v873 = vsub.f32 %v683, %v872
          %v874 = vand.u32 %v873, 4294901760
          %v875 = vsub.f32 %v873, %v874
          %v876 = vand.u32 %v875, 4294901760
          %877 = vmatpush.msra.mxu0 %v876
          %v878 = vand.u32 %v678, 4294901760
          %879 = vmatmul.f32.gmra.mxu0 %v878
          %v880 = vpop.f32.mrf.mxu0
          %v881 = vadd.f32 %v855, %v880
          %882 = vdwg.mxu0
          %883 = vmatpush.msra.mxu0 0.0
          %884 = vmatpush.msra.mxu0 0.0
          %885 = vmatpush.msra.mxu0 0.0
          %886 = vmatpush.msra.mxu0 0.0
          %887 = vmatpush.msra.mxu0 0.0
          %888 = vmatpush.msra.mxu0 0.0
          %889 = vmatpush.msra.mxu0 0.0
          %890 = vmatpush.msra.mxu0 0.0
          %891 = vmatpush.msra.mxu0 0.0
          %892 = vmatpush.msra.mxu0 0.0
          %893 = vmatpush.msra.mxu0 0.0
          %894 = vmatpush.msra.mxu0 0.0
          %895 = vmatpush.msra.mxu0 0.0
          %896 = vmatpush.msra.mxu0 0.0
          %897 = vmatpush.msra.mxu0 0.0
          %v898 = vand.u32 %v683, 4294901760
          %v899 = vsub.f32 %v683, %v898
          %900 = vmatpush.msra.mxu0 %v899
          %v901 = vand.u32 %v678, 4294901760
          %v902 = vsub.f32 %v678, %v901
          %903 = vmatmul.f32.gmra.mxu0 %v902
          %v904 = vpop.f32.mrf.mxu0
          %v905 = vadd.f32 %v881, %v904
          %906 = vdwg.mxu0
          %907 = vmatpush.msra.mxu0 0.0
          %908 = vmatpush.msra.mxu0 0.0
          %909 = vmatpush.msra.mxu0 0.0
          %910 = vmatpush.msra.mxu0 0.0
          %911 = vmatpush.msra.mxu0 0.0
          %912 = vmatpush.msra.mxu0 0.0
          %913 = vmatpush.msra.mxu0 0.0
          %914 = vmatpush.msra.mxu0 0.0
          %915 = vmatpush.msra.mxu0 0.0
          %916 = vmatpush.msra.mxu0 0.0
          %917 = vmatpush.msra.mxu0 0.0
          %918 = vmatpush.msra.mxu0 0.0
          %919 = vmatpush.msra.mxu0 0.0
          %920 = vmatpush.msra.mxu0 0.0
          %921 = vmatpush.msra.mxu0 0.0
          %v922 = vand.u32 %v683, 4294901760
          %923 = vmatpush.msra.mxu0 %v922
          %v924 = vand.u32 %v678, 4294901760
          %v925 = vsub.f32 %v678, %v924
          %v926 = vand.u32 %v925, 4294901760
          %927 = vmatmul.f32.gmra.mxu0 %v926
          %v928 = vpop.f32.mrf.mxu0
          %v929 = vadd.f32 %v905, %v928
          %930 = vdwg.mxu0
          %931 = vmatpush.msra.mxu0 0.0
          %932 = vmatpush.msra.mxu0 0.0
          %933 = vmatpush.msra.mxu0 0.0
          %934 = vmatpush.msra.mxu0 0.0
          %935 = vmatpush.msra.mxu0 0.0
          %936 = vmatpush.msra.mxu0 0.0
          %937 = vmatpush.msra.mxu0 0.0
          %938 = vmatpush.msra.mxu0 0.0
          %939 = vmatpush.msra.mxu0 0.0
          %940 = vmatpush.msra.mxu0 0.0
          %941 = vmatpush.msra.mxu0 0.0
          %942 = vmatpush.msra.mxu0 0.0
          %943 = vmatpush.msra.mxu0 0.0
          %944 = vmatpush.msra.mxu0 0.0
          %945 = vmatpush.msra.mxu0 0.0
          %v946 = vand.u32 %v683, 4294901760
          %v947 = vsub.f32 %v683, %v946
          %v948 = vand.u32 %v947, 4294901760
          %949 = vmatpush.msra.mxu0 %v948
          %v950 = vand.u32 %v678, 4294901760
          %951 = vmatmul.f32.gmra.mxu0 %v950
          %v952 = vpop.f32.mrf.mxu0
          %v953 = vadd.f32 %v929, %v952
          %954 = vdwg.mxu0
          %955 = vmatpush.msra.mxu0 0.0
          %956 = vmatpush.msra.mxu0 0.0
          %957 = vmatpush.msra.mxu0 0.0
          %958 = vmatpush.msra.mxu0 0.0
          %959 = vmatpush.msra.mxu0 0.0
          %960 = vmatpush.msra.mxu0 0.0
          %961 = vmatpush.msra.mxu0 0.0
          %962 = vmatpush.msra.mxu0 0.0
          %963 = vmatpush.msra.mxu0 0.0
          %964 = vmatpush.msra.mxu0 0.0
          %965 = vmatpush.msra.mxu0 0.0
          %966 = vmatpush.msra.mxu0 0.0
          %967 = vmatpush.msra.mxu0 0.0
          %968 = vmatpush.msra.mxu0 0.0
          %969 = vmatpush.msra.mxu0 0.0
          %v970 = vand.u32 %v683, 4294901760
          %971 = vmatpush.msra.mxu0 %v970
          %v972 = vand.u32 %v678, 4294901760
          %973 = vmatmul.f32.gmra.mxu0 %v972
          %v974 = vpop.f32.mrf.mxu0
          %v975 = vadd.f32 %v953, %v974
          %976 = vdwg.mxu0
          %v979 = vrot.slane %v975, 4
          %vm980 = vcmask 1043456
          %v981 = vsel %vm980, %v829, %v979
          %v983 = vadd.f32 %v669, %v981
          %984 = vst [vmem:[%s271] sm:$0x77] %v983
        $region52: #{tpu_custom_call.1} parent=31 // pred_fallthru
          _
        %p985 = scmp.eq.s32.totalorder %s290, 2
        // Predicated region
        $region53: #{tpu_custom_call.1} parent=31 // pred_check
          %p986 = pneg %p985
        $region54: #{tpu_custom_call.1} parent=31 // pred_check_branch
          %988 = sbr.rel (%p986) target = $region56
        $region55: #{tpu_custom_call.1} parent=31 // pred_region
          %v989 = vld [vmem:[%s283] sm:$0x77]
          %991 = vst [vmem:[#allocation1] ss:$2 sm:$0xff] %v989
          %v992 = vld.sshfl [vmem:[#allocation1] sm:$0xff pattern:$0x75316420]
          %v993 = vld.sshfl [vmem:[#allocation1 + $0x8] sm:$0xff pattern:$0x75316420]
          %996 = vst [vmem:[#allocation1] ss:$2 sm:$0xff] %v989
          %v997 = vld.sshfl [vmem:[#allocation1] sm:$0xff pattern:$0x75316420]
          %v998 = vld.sshfl [vmem:[#allocation1 + $0x8] sm:$0xff pattern:$0x75316420]
          %1001 = vmatpush.xpose.msra.mxu0 0.0
          %1002 = vmatpush.xpose.msra.mxu0 0.0
          %1003 = vmatpush.xpose.msra.mxu0 0.0
          %1004 = vmatpush.xpose.msra.mxu0 0.0
          %1005 = vmatpush.xpose.msra.mxu0 0.0
          %1006 = vmatpush.xpose.msra.mxu0 0.0
          %1007 = vmatpush.xpose.msra.mxu0 0.0
          %1008 = vmatpush.xpose.msra.mxu0 0.0
          %1009 = vmatpush.xpose.msra.mxu0 0.0
          %1010 = vmatpush.xpose.msra.mxu0 0.0
          %1011 = vmatpush.xpose.msra.mxu0 0.0
          %1012 = vmatpush.xpose.msra.mxu0 0.0
          %1013 = vmatpush.xpose.msra.mxu0 0.0
          %1014 = vmatpush.xpose.msra.mxu0 0.0
          %1015 = vmatpush.xpose.msra.mxu0 0.0
          %v1016 = vand.u32 %v997, 4294901760
          %1017 = vmatpush.xpose.msra.mxu0 %v1016
          %v1018 = vand.u32 %v992, 4294901760
          %v1019 = vsub.f32 %v992, %v1018
          %v1020 = vand.u32 %v1019, 4294901760
          %v1021 = vsub.f32 %v1019, %v1020
          %v1022 = vand.u32 %v1021, 4294901760
          %1023 = vmatmul.f32.gmra.mxu0 %v1022
          %v1024 = vpop.f32.mrf.mxu0
          %v1025 = vadd.f32 0.0, %v1024
          %1026 = vdwg.mxu0
          %1027 = vmatpush.xpose.msra.mxu0 0.0
          %1028 = vmatpush.xpose.msra.mxu0 0.0
          %1029 = vmatpush.xpose.msra.mxu0 0.0
          %1030 = vmatpush.xpose.msra.mxu0 0.0
          %1031 = vmatpush.xpose.msra.mxu0 0.0
          %1032 = vmatpush.xpose.msra.mxu0 0.0
          %1033 = vmatpush.xpose.msra.mxu0 0.0
          %1034 = vmatpush.xpose.msra.mxu0 0.0
          %1035 = vmatpush.xpose.msra.mxu0 0.0
          %1036 = vmatpush.xpose.msra.mxu0 0.0
          %1037 = vmatpush.xpose.msra.mxu0 0.0
          %1038 = vmatpush.xpose.msra.mxu0 0.0
          %1039 = vmatpush.xpose.msra.mxu0 0.0
          %1040 = vmatpush.xpose.msra.mxu0 0.0
          %1041 = vmatpush.xpose.msra.mxu0 0.0
          %v1042 = vand.u32 %v997, 4294901760
          %v1043 = vsub.f32 %v997, %v1042
          %v1044 = vand.u32 %v1043, 4294901760
          %v1045 = vsub.f32 %v1043, %v1044
          %v1046 = vand.u32 %v1045, 4294901760
          %1047 = vmatpush.xpose.msra.mxu0 %v1046
          %v1048 = vand.u32 %v992, 4294901760
          %1049 = vmatmul.f32.gmra.mxu0 %v1048
          %v1050 = vpop.f32.mrf.mxu0
          %v1051 = vadd.f32 %v1025, %v1050
          %1052 = vdwg.mxu0
          %1053 = vmatpush.xpose.msra.mxu0 0.0
          %1054 = vmatpush.xpose.msra.mxu0 0.0
          %1055 = vmatpush.xpose.msra.mxu0 0.0
          %1056 = vmatpush.xpose.msra.mxu0 0.0
          %1057 = vmatpush.xpose.msra.mxu0 0.0
          %1058 = vmatpush.xpose.msra.mxu0 0.0
          %1059 = vmatpush.xpose.msra.mxu0 0.0
          %1060 = vmatpush.xpose.msra.mxu0 0.0
          %1061 = vmatpush.xpose.msra.mxu0 0.0
          %1062 = vmatpush.xpose.msra.mxu0 0.0
          %1063 = vmatpush.xpose.msra.mxu0 0.0
          %1064 = vmatpush.xpose.msra.mxu0 0.0
          %1065 = vmatpush.xpose.msra.mxu0 0.0
          %1066 = vmatpush.xpose.msra.mxu0 0.0
          %1067 = vmatpush.xpose.msra.mxu0 0.0
          %v1068 = vand.u32 %v997, 4294901760
          %v1069 = vsub.f32 %v997, %v1068
          %1070 = vmatpush.xpose.msra.mxu0 %v1069
          %v1071 = vand.u32 %v992, 4294901760
          %v1072 = vsub.f32 %v992, %v1071
          %1073 = vmatmul.f32.gmra.mxu0 %v1072
          %v1074 = vpop.f32.mrf.mxu0
          %v1075 = vadd.f32 %v1051, %v1074
          %1076 = vdwg.mxu0
          %1077 = vmatpush.xpose.msra.mxu0 0.0
          %1078 = vmatpush.xpose.msra.mxu0 0.0
          %1079 = vmatpush.xpose.msra.mxu0 0.0
          %1080 = vmatpush.xpose.msra.mxu0 0.0
          %1081 = vmatpush.xpose.msra.mxu0 0.0
          %1082 = vmatpush.xpose.msra.mxu0 0.0
          %1083 = vmatpush.xpose.msra.mxu0 0.0
          %1084 = vmatpush.xpose.msra.mxu0 0.0
          %1085 = vmatpush.xpose.msra.mxu0 0.0
          %1086 = vmatpush.xpose.msra.mxu0 0.0
          %1087 = vmatpush.xpose.msra.mxu0 0.0
          %1088 = vmatpush.xpose.msra.mxu0 0.0
          %1089 = vmatpush.xpose.msra.mxu0 0.0
          %1090 = vmatpush.xpose.msra.mxu0 0.0
          %1091 = vmatpush.xpose.msra.mxu0 0.0
          %v1092 = vand.u32 %v997, 4294901760
          %1093 = vmatpush.xpose.msra.mxu0 %v1092
          %v1094 = vand.u32 %v992, 4294901760
          %v1095 = vsub.f32 %v992, %v1094
          %v1096 = vand.u32 %v1095, 4294901760
          %1097 = vmatmul.f32.gmra.mxu0 %v1096
          %v1098 = vpop.f32.mrf.mxu0
          %v1099 = vadd.f32 %v1075, %v1098
          %1100 = vdwg.mxu0
          %1101 = vmatpush.xpose.msra.mxu0 0.0
          %1102 = vmatpush.xpose.msra.mxu0 0.0
          %1103 = vmatpush.xpose.msra.mxu0 0.0
          %1104 = vmatpush.xpose.msra.mxu0 0.0
          %1105 = vmatpush.xpose.msra.mxu0 0.0
          %1106 = vmatpush.xpose.msra.mxu0 0.0
          %1107 = vmatpush.xpose.msra.mxu0 0.0
          %1108 = vmatpush.xpose.msra.mxu0 0.0
          %1109 = vmatpush.xpose.msra.mxu0 0.0
          %1110 = vmatpush.xpose.msra.mxu0 0.0
          %1111 = vmatpush.xpose.msra.mxu0 0.0
          %1112 = vmatpush.xpose.msra.mxu0 0.0
          %1113 = vmatpush.xpose.msra.mxu0 0.0
          %1114 = vmatpush.xpose.msra.mxu0 0.0
          %1115 = vmatpush.xpose.msra.mxu0 0.0
          %v1116 = vand.u32 %v997, 4294901760
          %v1117 = vsub.f32 %v997, %v1116
          %v1118 = vand.u32 %v1117, 4294901760
          %1119 = vmatpush.xpose.msra.mxu0 %v1118
          %v1120 = vand.u32 %v992, 4294901760
          %1121 = vmatmul.f32.gmra.mxu0 %v1120
          %v1122 = vpop.f32.mrf.mxu0
          %v1123 = vadd.f32 %v1099, %v1122
          %1124 = vdwg.mxu0
          %1125 = vmatpush.xpose.msra.mxu0 0.0
          %1126 = vmatpush.xpose.msra.mxu0 0.0
          %1127 = vmatpush.xpose.msra.mxu0 0.0
          %1128 = vmatpush.xpose.msra.mxu0 0.0
          %1129 = vmatpush.xpose.msra.mxu0 0.0
          %1130 = vmatpush.xpose.msra.mxu0 0.0
          %1131 = vmatpush.xpose.msra.mxu0 0.0
          %1132 = vmatpush.xpose.msra.mxu0 0.0
          %1133 = vmatpush.xpose.msra.mxu0 0.0
          %1134 = vmatpush.xpose.msra.mxu0 0.0
          %1135 = vmatpush.xpose.msra.mxu0 0.0
          %1136 = vmatpush.xpose.msra.mxu0 0.0
          %1137 = vmatpush.xpose.msra.mxu0 0.0
          %1138 = vmatpush.xpose.msra.mxu0 0.0
          %1139 = vmatpush.xpose.msra.mxu0 0.0
          %v1140 = vand.u32 %v997, 4294901760
          %1141 = vmatpush.xpose.msra.mxu0 %v1140
          %v1142 = vand.u32 %v992, 4294901760
          %1143 = vmatmul.f32.gmra.mxu0 %v1142
          %v1144 = vpop.f32.mrf.mxu0
          %v1145 = vadd.f32 %v1123, %v1144
          %1146 = vdwg.mxu0
          %1147 = vmatpush.xpose.msra.mxu0 0.0
          %1148 = vmatpush.xpose.msra.mxu0 0.0
          %1149 = vmatpush.xpose.msra.mxu0 0.0
          %1150 = vmatpush.xpose.msra.mxu0 0.0
          %1151 = vmatpush.xpose.msra.mxu0 0.0
          %1152 = vmatpush.xpose.msra.mxu0 0.0
          %1153 = vmatpush.xpose.msra.mxu0 0.0
          %1154 = vmatpush.xpose.msra.mxu0 0.0
          %1155 = vmatpush.xpose.msra.mxu0 0.0
          %1156 = vmatpush.xpose.msra.mxu0 0.0
          %1157 = vmatpush.xpose.msra.mxu0 0.0
          %1158 = vmatpush.xpose.msra.mxu0 0.0
          %1159 = vmatpush.xpose.msra.mxu0 0.0
          %1160 = vmatpush.xpose.msra.mxu0 0.0
          %1161 = vmatpush.xpose.msra.mxu0 0.0
          %v1162 = vand.u32 %v998, 4294901760
          %1163 = vmatpush.xpose.msra.mxu0 %v1162
          %v1164 = vand.u32 %v993, 4294901760
          %v1165 = vsub.f32 %v993, %v1164
          %v1166 = vand.u32 %v1165, 4294901760
          %v1167 = vsub.f32 %v1165, %v1166
          %v1168 = vand.u32 %v1167, 4294901760
          %1169 = vmatmul.f32.gmra.mxu0 %v1168
          %v1170 = vpop.f32.mrf.mxu0
          %v1171 = vadd.f32 %v1145, %v1170
          %1172 = vdwg.mxu0
          %1173 = vmatpush.xpose.msra.mxu0 0.0
          %1174 = vmatpush.xpose.msra.mxu0 0.0
          %1175 = vmatpush.xpose.msra.mxu0 0.0
          %1176 = vmatpush.xpose.msra.mxu0 0.0
          %1177 = vmatpush.xpose.msra.mxu0 0.0
          %1178 = vmatpush.xpose.msra.mxu0 0.0
          %1179 = vmatpush.xpose.msra.mxu0 0.0
          %1180 = vmatpush.xpose.msra.mxu0 0.0
          %1181 = vmatpush.xpose.msra.mxu0 0.0
          %1182 = vmatpush.xpose.msra.mxu0 0.0
          %1183 = vmatpush.xpose.msra.mxu0 0.0
          %1184 = vmatpush.xpose.msra.mxu0 0.0
          %1185 = vmatpush.xpose.msra.mxu0 0.0
          %1186 = vmatpush.xpose.msra.mxu0 0.0
          %1187 = vmatpush.xpose.msra.mxu0 0.0
          %v1188 = vand.u32 %v998, 4294901760
          %v1189 = vsub.f32 %v998, %v1188
          %v1190 = vand.u32 %v1189, 4294901760
          %v1191 = vsub.f32 %v1189, %v1190
          %v1192 = vand.u32 %v1191, 4294901760
          %1193 = vmatpush.xpose.msra.mxu0 %v1192
          %v1194 = vand.u32 %v993, 4294901760
          %1195 = vmatmul.f32.gmra.mxu0 %v1194
          %v1196 = vpop.f32.mrf.mxu0
          %v1197 = vadd.f32 %v1171, %v1196
          %1198 = vdwg.mxu0
          %1199 = vmatpush.xpose.msra.mxu0 0.0
          %1200 = vmatpush.xpose.msra.mxu0 0.0
          %1201 = vmatpush.xpose.msra.mxu0 0.0
          %1202 = vmatpush.xpose.msra.mxu0 0.0
          %1203 = vmatpush.xpose.msra.mxu0 0.0
          %1204 = vmatpush.xpose.msra.mxu0 0.0
          %1205 = vmatpush.xpose.msra.mxu0 0.0
          %1206 = vmatpush.xpose.msra.mxu0 0.0
          %1207 = vmatpush.xpose.msra.mxu0 0.0
          %1208 = vmatpush.xpose.msra.mxu0 0.0
          %1209 = vmatpush.xpose.msra.mxu0 0.0
          %1210 = vmatpush.xpose.msra.mxu0 0.0
          %1211 = vmatpush.xpose.msra.mxu0 0.0
          %1212 = vmatpush.xpose.msra.mxu0 0.0
          %1213 = vmatpush.xpose.msra.mxu0 0.0
          %v1214 = vand.u32 %v998, 4294901760
          %v1215 = vsub.f32 %v998, %v1214
          %1216 = vmatpush.xpose.msra.mxu0 %v1215
          %v1217 = vand.u32 %v993, 4294901760
          %v1218 = vsub.f32 %v993, %v1217
          %1219 = vmatmul.f32.gmra.mxu0 %v1218
          %v1220 = vpop.f32.mrf.mxu0
          %v1221 = vadd.f32 %v1197, %v1220
          %1222 = vdwg.mxu0
          %1223 = vmatpush.xpose.msra.mxu0 0.0
          %1224 = vmatpush.xpose.msra.mxu0 0.0
          %1225 = vmatpush.xpose.msra.mxu0 0.0
          %1226 = vmatpush.xpose.msra.mxu0 0.0
          %1227 = vmatpush.xpose.msra.mxu0 0.0
          %1228 = vmatpush.xpose.msra.mxu0 0.0
          %1229 = vmatpush.xpose.msra.mxu0 0.0
          %1230 = vmatpush.xpose.msra.mxu0 0.0
          %1231 = vmatpush.xpose.msra.mxu0 0.0
          %1232 = vmatpush.xpose.msra.mxu0 0.0
          %1233 = vmatpush.xpose.msra.mxu0 0.0
          %1234 = vmatpush.xpose.msra.mxu0 0.0
          %1235 = vmatpush.xpose.msra.mxu0 0.0
          %1236 = vmatpush.xpose.msra.mxu0 0.0
          %1237 = vmatpush.xpose.msra.mxu0 0.0
          %v1238 = vand.u32 %v998, 4294901760
          %1239 = vmatpush.xpose.msra.mxu0 %v1238
          %v1240 = vand.u32 %v993, 4294901760
          %v1241 = vsub.f32 %v993, %v1240
          %v1242 = vand.u32 %v1241, 4294901760
          %1243 = vmatmul.f32.gmra.mxu0 %v1242
          %v1244 = vpop.f32.mrf.mxu0
          %v1245 = vadd.f32 %v1221, %v1244
          %1246 = vdwg.mxu0
          %1247 = vmatpush.xpose.msra.mxu0 0.0
          %1248 = vmatpush.xpose.msra.mxu0 0.0
          %1249 = vmatpush.xpose.msra.mxu0 0.0
          %1250 = vmatpush.xpose.msra.mxu0 0.0
          %1251 = vmatpush.xpose.msra.mxu0 0.0
          %1252 = vmatpush.xpose.msra.mxu0 0.0
          %1253 = vmatpush.xpose.msra.mxu0 0.0
          %1254 = vmatpush.xpose.msra.mxu0 0.0
          %1255 = vmatpush.xpose.msra.mxu0 0.0
          %1256 = vmatpush.xpose.msra.mxu0 0.0
          %1257 = vmatpush.xpose.msra.mxu0 0.0
          %1258 = vmatpush.xpose.msra.mxu0 0.0
          %1259 = vmatpush.xpose.msra.mxu0 0.0
          %1260 = vmatpush.xpose.msra.mxu0 0.0
          %1261 = vmatpush.xpose.msra.mxu0 0.0
          %v1262 = vand.u32 %v998, 4294901760
          %v1263 = vsub.f32 %v998, %v1262
          %v1264 = vand.u32 %v1263, 4294901760
          %1265 = vmatpush.xpose.msra.mxu0 %v1264
          %v1266 = vand.u32 %v993, 4294901760
          %1267 = vmatmul.f32.gmra.mxu0 %v1266
          %v1268 = vpop.f32.mrf.mxu0
          %v1269 = vadd.f32 %v1245, %v1268
          %1270 = vdwg.mxu0
          %1271 = vmatpush.xpose.msra.mxu0 0.0
          %1272 = vmatpush.xpose.msra.mxu0 0.0
          %1273 = vmatpush.xpose.msra.mxu0 0.0
          %1274 = vmatpush.xpose.msra.mxu0 0.0
          %1275 = vmatpush.xpose.msra.mxu0 0.0
          %1276 = vmatpush.xpose.msra.mxu0 0.0
          %1277 = vmatpush.xpose.msra.mxu0 0.0
          %1278 = vmatpush.xpose.msra.mxu0 0.0
          %1279 = vmatpush.xpose.msra.mxu0 0.0
          %1280 = vmatpush.xpose.msra.mxu0 0.0
          %1281 = vmatpush.xpose.msra.mxu0 0.0
          %1282 = vmatpush.xpose.msra.mxu0 0.0
          %1283 = vmatpush.xpose.msra.mxu0 0.0
          %1284 = vmatpush.xpose.msra.mxu0 0.0
          %1285 = vmatpush.xpose.msra.mxu0 0.0
          %v1286 = vand.u32 %v998, 4294901760
          %1287 = vmatpush.xpose.msra.mxu0 %v1286
          %v1288 = vand.u32 %v993, 4294901760
          %1289 = vmatmul.f32.gmra.mxu0 %v1288
          %v1290 = vpop.f32.mrf.mxu0
          %v1291 = vadd.f32 %v1269, %v1290
          %1292 = vdwg.mxu0
          %v1293 = vld [vmem:[%s276] sm:$0x7]
          %1295 = vset.pattern.permute.xlu0 1
          %1296 = vperm.xlu0 %1295, %v1293
          %v1297 = vpop.permute.xlu0 %1296
          %v1299 = vmul.f32 %v1291, %v1297
          %vm1300 = vcmask 18432
          %v1301 = vsel %vm1300, %v1299, -inf
          %1302 = vmax.xlane.f32.xlu0 %v1301
          %v1303 = vpop.xlane.xlu0 %1302
          %v1304 = vsub.f32 %v1299, %v1303
          %v1305 = vmul.f32 %v1304, 1.442695
          %v1306 = vpow.pop %v1305
          %v1307 = vsel %vm1300, %v1306, 0.0
          %1308 = vadd.xlane.f32.xlu0 %v1307
          %v1309 = vpop.xlane.xlu0 %1308
          %v1310 = vrcp.pop %v1309
          %v1311 = vmul.f32 %v1309, %v1310
          %v1312 = vsub.f32 1.0, %v1311
          %v1313 = vmul.f32 %v1310, %v1312
          %v1314 = vadd.f32 %v1310, %v1313
          %vm1315 = vweird.f32 %v1309
          %vm1316 = vweird.f32 %v1310
          %vm1317 = vmor %vm1315, %vm1316
          %v1318 = vsel %vm1317, %v1310, %v1314
          %v1319 = vand.u32 2147483647, %v1309
          %vm1320 = vcmp.eq.f32.partialorder %v1319, 8.507059e+37
          %v1321 = vand.u32 %v1309, 2147483648
          %v1322 = vor.u32 1.1754944e-38, %v1321
          %v1323 = vsel %vm1320, %v1322, %v1318
          %v1324 = vmul.f32 %v1306, %v1323
          %v1325 = vlaneseq
          %v1326 = vshrl.u32 %v1325, 7
          %v1327 = vlaneseq
          %v1328 = vand.u32 %v1327, 127
          %vm1329 = vcmp.eq.s32.totalorder %v1326, %v1328
          %v1330 = vsel %vm1329, 1.0, 0.0
          %1331 = vset.pattern.permute.xlu0 0
          %1332 = vperm.xlu0 %1331, %v1293
          %v1333 = vpop.permute.xlu0 %1332
          %v1335 = vmul.f32 %v1333, %v1324
          %1336 = vset.pattern.permute.xlu0 2
          %1337 = vperm.xlu0 %1336, %v1293
          %v1338 = vpop.permute.xlu0 %1337
          %v1340 = vmul.f32 %v1338, %v1330
          %v1341 = vadd.f32 %v1335, %v1340
          %v1342 = vld [vmem:[%s237] sm:$0x77]
          %1343 = vst [vmem:[#allocation1] ss:$2 sm:$0xff] %v989
          %v1344 = vld.sshfl [vmem:[#allocation1] sm:$0xff pattern:$0x75316420]
          %v1345 = vld.sshfl [vmem:[#allocation1 + $0x8] sm:$0xff pattern:$0x75316420]
          %vm1346 = vcmask 23552
          %v1348 = vsel %vm1346, %v1341, 0
          %vm1350 = vcmask 1042432
          %v1351 = vsel %vm1350, %v1344, 0
          %v1353 = vsel %vm1350, %v1345, 0
          %1355 = vmatpush.msra.mxu0 0.0
          %1356 = vmatpush.msra.mxu0 0.0
          %1357 = vmatpush.msra.mxu0 0.0
          %1358 = vmatpush.msra.mxu0 0.0
          %1359 = vmatpush.msra.mxu0 0.0
          %1360 = vmatpush.msra.mxu0 0.0
          %1361 = vmatpush.msra.mxu0 0.0
          %1362 = vmatpush.msra.mxu0 0.0
          %1363 = vmatpush.msra.mxu0 0.0
          %1364 = vmatpush.msra.mxu0 0.0
          %1365 = vmatpush.msra.mxu0 0.0
          %1366 = vmatpush.msra.mxu0 0.0
          %1367 = vmatpush.msra.mxu0 0.0
          %1368 = vmatpush.msra.mxu0 0.0
          %1369 = vmatpush.msra.mxu0 0.0
          %v1370 = vand.u32 %v1351, 4294901760
          %1371 = vmatpush.msra.mxu0 %v1370
          %v1372 = vand.u32 %v1348, 4294901760
          %v1373 = vsub.f32 %v1348, %v1372
          %v1374 = vand.u32 %v1373, 4294901760
          %v1375 = vsub.f32 %v1373, %v1374
          %v1376 = vand.u32 %v1375, 4294901760
          %1377 = vmatmul.f32.gmra.mxu0 %v1376
          %v1378 = vpop.f32.mrf.mxu0
          %v1379 = vadd.f32 0.0, %v1378
          %1380 = vdwg.mxu0
          %1381 = vmatpush.msra.mxu0 0.0
          %1382 = vmatpush.msra.mxu0 0.0
          %1383 = vmatpush.msra.mxu0 0.0
          %1384 = vmatpush.msra.mxu0 0.0
          %1385 = vmatpush.msra.mxu0 0.0
          %1386 = vmatpush.msra.mxu0 0.0
          %1387 = vmatpush.msra.mxu0 0.0
          %1388 = vmatpush.msra.mxu0 0.0
          %1389 = vmatpush.msra.mxu0 0.0
          %1390 = vmatpush.msra.mxu0 0.0
          %1391 = vmatpush.msra.mxu0 0.0
          %1392 = vmatpush.msra.mxu0 0.0
          %1393 = vmatpush.msra.mxu0 0.0
          %1394 = vmatpush.msra.mxu0 0.0
          %1395 = vmatpush.msra.mxu0 0.0
          %v1396 = vand.u32 %v1351, 4294901760
          %v1397 = vsub.f32 %v1351, %v1396
          %v1398 = vand.u32 %v1397, 4294901760
          %v1399 = vsub.f32 %v1397, %v1398
          %v1400 = vand.u32 %v1399, 4294901760
          %1401 = vmatpush.msra.mxu0 %v1400
          %v1402 = vand.u32 %v1348, 4294901760
          %1403 = vmatmul.f32.gmra.mxu0 %v1402
          %v1404 = vpop.f32.mrf.mxu0
          %v1405 = vadd.f32 %v1379, %v1404
          %1406 = vdwg.mxu0
          %1407 = vmatpush.msra.mxu0 0.0
          %1408 = vmatpush.msra.mxu0 0.0
          %1409 = vmatpush.msra.mxu0 0.0
          %1410 = vmatpush.msra.mxu0 0.0
          %1411 = vmatpush.msra.mxu0 0.0
          %1412 = vmatpush.msra.mxu0 0.0
          %1413 = vmatpush.msra.mxu0 0.0
          %1414 = vmatpush.msra.mxu0 0.0
          %1415 = vmatpush.msra.mxu0 0.0
          %1416 = vmatpush.msra.mxu0 0.0
          %1417 = vmatpush.msra.mxu0 0.0
          %1418 = vmatpush.msra.mxu0 0.0
          %1419 = vmatpush.msra.mxu0 0.0
          %1420 = vmatpush.msra.mxu0 0.0
          %1421 = vmatpush.msra.mxu0 0.0
          %v1422 = vand.u32 %v1351, 4294901760
          %v1423 = vsub.f32 %v1351, %v1422
          %1424 = vmatpush.msra.mxu0 %v1423
          %v1425 = vand.u32 %v1348, 4294901760
          %v1426 = vsub.f32 %v1348, %v1425
          %1427 = vmatmul.f32.gmra.mxu0 %v1426
          %v1428 = vpop.f32.mrf.mxu0
          %v1429 = vadd.f32 %v1405, %v1428
          %1430 = vdwg.mxu0
          %1431 = vmatpush.msra.mxu0 0.0
          %1432 = vmatpush.msra.mxu0 0.0
          %1433 = vmatpush.msra.mxu0 0.0
          %1434 = vmatpush.msra.mxu0 0.0
          %1435 = vmatpush.msra.mxu0 0.0
          %1436 = vmatpush.msra.mxu0 0.0
          %1437 = vmatpush.msra.mxu0 0.0
          %1438 = vmatpush.msra.mxu0 0.0
          %1439 = vmatpush.msra.mxu0 0.0
          %1440 = vmatpush.msra.mxu0 0.0
          %1441 = vmatpush.msra.mxu0 0.0
          %1442 = vmatpush.msra.mxu0 0.0
          %1443 = vmatpush.msra.mxu0 0.0
          %1444 = vmatpush.msra.mxu0 0.0
          %1445 = vmatpush.msra.mxu0 0.0
          %v1446 = vand.u32 %v1351, 4294901760
          %1447 = vmatpush.msra.mxu0 %v1446
          %v1448 = vand.u32 %v1348, 4294901760
          %v1449 = vsub.f32 %v1348, %v1448
          %v1450 = vand.u32 %v1449, 4294901760
          %1451 = vmatmul.f32.gmra.mxu0 %v1450
          %v1452 = vpop.f32.mrf.mxu0
          %v1453 = vadd.f32 %v1429, %v1452
          %1454 = vdwg.mxu0
          %1455 = vmatpush.msra.mxu0 0.0
          %1456 = vmatpush.msra.mxu0 0.0
          %1457 = vmatpush.msra.mxu0 0.0
          %1458 = vmatpush.msra.mxu0 0.0
          %1459 = vmatpush.msra.mxu0 0.0
          %1460 = vmatpush.msra.mxu0 0.0
          %1461 = vmatpush.msra.mxu0 0.0
          %1462 = vmatpush.msra.mxu0 0.0
          %1463 = vmatpush.msra.mxu0 0.0
          %1464 = vmatpush.msra.mxu0 0.0
          %1465 = vmatpush.msra.mxu0 0.0
          %1466 = vmatpush.msra.mxu0 0.0
          %1467 = vmatpush.msra.mxu0 0.0
          %1468 = vmatpush.msra.mxu0 0.0
          %1469 = vmatpush.msra.mxu0 0.0
          %v1470 = vand.u32 %v1351, 4294901760
          %v1471 = vsub.f32 %v1351, %v1470
          %v1472 = vand.u32 %v1471, 4294901760
          %1473 = vmatpush.msra.mxu0 %v1472
          %v1474 = vand.u32 %v1348, 4294901760
          %1475 = vmatmul.f32.gmra.mxu0 %v1474
          %v1476 = vpop.f32.mrf.mxu0
          %v1477 = vadd.f32 %v1453, %v1476
          %1478 = vdwg.mxu0
          %1479 = vmatpush.msra.mxu0 0.0
          %1480 = vmatpush.msra.mxu0 0.0
          %1481 = vmatpush.msra.mxu0 0.0
          %1482 = vmatpush.msra.mxu0 0.0
          %1483 = vmatpush.msra.mxu0 0.0
          %1484 = vmatpush.msra.mxu0 0.0
          %1485 = vmatpush.msra.mxu0 0.0
          %1486 = vmatpush.msra.mxu0 0.0
          %1487 = vmatpush.msra.mxu0 0.0
          %1488 = vmatpush.msra.mxu0 0.0
          %1489 = vmatpush.msra.mxu0 0.0
          %1490 = vmatpush.msra.mxu0 0.0
          %1491 = vmatpush.msra.mxu0 0.0
          %1492 = vmatpush.msra.mxu0 0.0
          %1493 = vmatpush.msra.mxu0 0.0
          %v1494 = vand.u32 %v1351, 4294901760
          %1495 = vmatpush.msra.mxu0 %v1494
          %v1496 = vand.u32 %v1348, 4294901760
          %1497 = vmatmul.f32.gmra.mxu0 %v1496
          %v1498 = vpop.f32.mrf.mxu0
          %v1499 = vadd.f32 %v1477, %v1498
          %1500 = vdwg.mxu0
          %1501 = vmatpush.msra.mxu0 0.0
          %1502 = vmatpush.msra.mxu0 0.0
          %1503 = vmatpush.msra.mxu0 0.0
          %1504 = vmatpush.msra.mxu0 0.0
          %1505 = vmatpush.msra.mxu0 0.0
          %1506 = vmatpush.msra.mxu0 0.0
          %1507 = vmatpush.msra.mxu0 0.0
          %1508 = vmatpush.msra.mxu0 0.0
          %1509 = vmatpush.msra.mxu0 0.0
          %1510 = vmatpush.msra.mxu0 0.0
          %1511 = vmatpush.msra.mxu0 0.0
          %1512 = vmatpush.msra.mxu0 0.0
          %1513 = vmatpush.msra.mxu0 0.0
          %1514 = vmatpush.msra.mxu0 0.0
          %1515 = vmatpush.msra.mxu0 0.0
          %v1516 = vand.u32 %v1353, 4294901760
          %1517 = vmatpush.msra.mxu0 %v1516
          %v1518 = vand.u32 %v1348, 4294901760
          %v1519 = vsub.f32 %v1348, %v1518
          %v1520 = vand.u32 %v1519, 4294901760
          %v1521 = vsub.f32 %v1519, %v1520
          %v1522 = vand.u32 %v1521, 4294901760
          %1523 = vmatmul.f32.gmra.mxu0 %v1522
          %v1524 = vpop.f32.mrf.mxu0
          %v1525 = vadd.f32 0.0, %v1524
          %1526 = vdwg.mxu0
          %1527 = vmatpush.msra.mxu0 0.0
          %1528 = vmatpush.msra.mxu0 0.0
          %1529 = vmatpush.msra.mxu0 0.0
          %1530 = vmatpush.msra.mxu0 0.0
          %1531 = vmatpush.msra.mxu0 0.0
          %1532 = vmatpush.msra.mxu0 0.0
          %1533 = vmatpush.msra.mxu0 0.0
          %1534 = vmatpush.msra.mxu0 0.0
          %1535 = vmatpush.msra.mxu0 0.0
          %1536 = vmatpush.msra.mxu0 0.0
          %1537 = vmatpush.msra.mxu0 0.0
          %1538 = vmatpush.msra.mxu0 0.0
          %1539 = vmatpush.msra.mxu0 0.0
          %1540 = vmatpush.msra.mxu0 0.0
          %1541 = vmatpush.msra.mxu0 0.0
          %v1542 = vand.u32 %v1353, 4294901760
          %v1543 = vsub.f32 %v1353, %v1542
          %v1544 = vand.u32 %v1543, 4294901760
          %v1545 = vsub.f32 %v1543, %v1544
          %v1546 = vand.u32 %v1545, 4294901760
          %1547 = vmatpush.msra.mxu0 %v1546
          %v1548 = vand.u32 %v1348, 4294901760
          %1549 = vmatmul.f32.gmra.mxu0 %v1548
          %v1550 = vpop.f32.mrf.mxu0
          %v1551 = vadd.f32 %v1525, %v1550
          %1552 = vdwg.mxu0
          %1553 = vmatpush.msra.mxu0 0.0
          %1554 = vmatpush.msra.mxu0 0.0
          %1555 = vmatpush.msra.mxu0 0.0
          %1556 = vmatpush.msra.mxu0 0.0
          %1557 = vmatpush.msra.mxu0 0.0
          %1558 = vmatpush.msra.mxu0 0.0
          %1559 = vmatpush.msra.mxu0 0.0
          %1560 = vmatpush.msra.mxu0 0.0
          %1561 = vmatpush.msra.mxu0 0.0
          %1562 = vmatpush.msra.mxu0 0.0
          %1563 = vmatpush.msra.mxu0 0.0
          %1564 = vmatpush.msra.mxu0 0.0
          %1565 = vmatpush.msra.mxu0 0.0
          %1566 = vmatpush.msra.mxu0 0.0
          %1567 = vmatpush.msra.mxu0 0.0
          %v1568 = vand.u32 %v1353, 4294901760
          %v1569 = vsub.f32 %v1353, %v1568
          %1570 = vmatpush.msra.mxu0 %v1569
          %v1571 = vand.u32 %v1348, 4294901760
          %v1572 = vsub.f32 %v1348, %v1571
          %1573 = vmatmul.f32.gmra.mxu0 %v1572
          %v1574 = vpop.f32.mrf.mxu0
          %v1575 = vadd.f32 %v1551, %v1574
          %1576 = vdwg.mxu0
          %1577 = vmatpush.msra.mxu0 0.0
          %1578 = vmatpush.msra.mxu0 0.0
          %1579 = vmatpush.msra.mxu0 0.0
          %1580 = vmatpush.msra.mxu0 0.0
          %1581 = vmatpush.msra.mxu0 0.0
          %1582 = vmatpush.msra.mxu0 0.0
          %1583 = vmatpush.msra.mxu0 0.0
          %1584 = vmatpush.msra.mxu0 0.0
          %1585 = vmatpush.msra.mxu0 0.0
          %1586 = vmatpush.msra.mxu0 0.0
          %1587 = vmatpush.msra.mxu0 0.0
          %1588 = vmatpush.msra.mxu0 0.0
          %1589 = vmatpush.msra.mxu0 0.0
          %1590 = vmatpush.msra.mxu0 0.0
          %1591 = vmatpush.msra.mxu0 0.0
          %v1592 = vand.u32 %v1353, 4294901760
          %1593 = vmatpush.msra.mxu0 %v1592
          %v1594 = vand.u32 %v1348, 4294901760
          %v1595 = vsub.f32 %v1348, %v1594
          %v1596 = vand.u32 %v1595, 4294901760
          %1597 = vmatmul.f32.gmra.mxu0 %v1596
          %v1598 = vpop.f32.mrf.mxu0
          %v1599 = vadd.f32 %v1575, %v1598
          %1600 = vdwg.mxu0
          %1601 = vmatpush.msra.mxu0 0.0
          %1602 = vmatpush.msra.mxu0 0.0
          %1603 = vmatpush.msra.mxu0 0.0
          %1604 = vmatpush.msra.mxu0 0.0
          %1605 = vmatpush.msra.mxu0 0.0
          %1606 = vmatpush.msra.mxu0 0.0
          %1607 = vmatpush.msra.mxu0 0.0
          %1608 = vmatpush.msra.mxu0 0.0
          %1609 = vmatpush.msra.mxu0 0.0
          %1610 = vmatpush.msra.mxu0 0.0
          %1611 = vmatpush.msra.mxu0 0.0
          %1612 = vmatpush.msra.mxu0 0.0
          %1613 = vmatpush.msra.mxu0 0.0
          %1614 = vmatpush.msra.mxu0 0.0
          %1615 = vmatpush.msra.mxu0 0.0
          %v1616 = vand.u32 %v1353, 4294901760
          %v1617 = vsub.f32 %v1353, %v1616
          %v1618 = vand.u32 %v1617, 4294901760
          %1619 = vmatpush.msra.mxu0 %v1618
          %v1620 = vand.u32 %v1348, 4294901760
          %1621 = vmatmul.f32.gmra.mxu0 %v1620
          %v1622 = vpop.f32.mrf.mxu0
          %v1623 = vadd.f32 %v1599, %v1622
          %1624 = vdwg.mxu0
          %1625 = vmatpush.msra.mxu0 0.0
          %1626 = vmatpush.msra.mxu0 0.0
          %1627 = vmatpush.msra.mxu0 0.0
          %1628 = vmatpush.msra.mxu0 0.0
          %1629 = vmatpush.msra.mxu0 0.0
          %1630 = vmatpush.msra.mxu0 0.0
          %1631 = vmatpush.msra.mxu0 0.0
          %1632 = vmatpush.msra.mxu0 0.0
          %1633 = vmatpush.msra.mxu0 0.0
          %1634 = vmatpush.msra.mxu0 0.0
          %1635 = vmatpush.msra.mxu0 0.0
          %1636 = vmatpush.msra.mxu0 0.0
          %1637 = vmatpush.msra.mxu0 0.0
          %1638 = vmatpush.msra.mxu0 0.0
          %1639 = vmatpush.msra.mxu0 0.0
          %v1640 = vand.u32 %v1353, 4294901760
          %1641 = vmatpush.msra.mxu0 %v1640
          %v1642 = vand.u32 %v1348, 4294901760
          %1643 = vmatmul.f32.gmra.mxu0 %v1642
          %v1644 = vpop.f32.mrf.mxu0
          %v1645 = vadd.f32 %v1623, %v1644
          %1646 = vdwg.mxu0
          %v1649 = vrot.slane %v1645, 4
          %vm1650 = vcmask 1043456
          %v1651 = vsel %vm1650, %v1499, %v1649
          %v1653 = vadd.f32 %v1342, %v1651
          %1654 = vst [vmem:[%s271] sm:$0x77] %v1653
        $region56: #{tpu_custom_call.1} parent=31 // pred_fallthru
          _
        %s1655 = sand.u32 %s153, 1
        %s1656 = scalar_lea.sflag [#allocation12], %s1655
        %s1657 = sand.u32 %s153, 1
        %s1658 = smul.addr %s1657, 8
        %s1659 = scalar_lea.vmem [#allocation13], %s1658
        // Predicated region
        $region57: #{tpu_custom_call.1} parent=31 // pred_check
          %p1660 = pneg %p163
        $region58: #{tpu_custom_call.1} parent=31 // pred_check_branch
          %1662 = sbr.rel (%p1660) target = $region60
        $region59: #{tpu_custom_call.1} parent=31 // pred_region
          %s1663 = sld [smem:[#allocation9 + %s59]]
          %s1664 = smul.u32 2, %s1663
          %1666 = vsyncadd %s1656, 0
          %s1667 = smul.addr %s1664, 4
          %s1668 = scalar_lea.hbm %s9, %s1667
          %s1670 = sshll.u32 %s1659, 4
          %s1671 = int_to_ptr.vmem [resolvable:$true] %s1670
          %s1672 = sshll.u32 %s1668, 4
          %s1673 = int_to_ptr.hbm [resolvable:$true] %s1672
          %1675 = dma.vmem_to_hbm [thread:$0]  %s1671, 128, %s1673, %s1656
        $region60: #{tpu_custom_call.1} parent=31 // pred_fallthru
          _
      $region32: #{tpu_custom_call.1} parent=5 // pred_fallthru
        _
      %p1676 = scmp.le.s32.totalorder 2, %s54
      // Predicated region
      $region61: #{tpu_custom_call.1} parent=5 // pred_check
        %p1677 = pneg %p1676
      $region62: #{tpu_custom_call.1} parent=5 // pred_check_branch
        %1679 = sbr.rel (%p1677) target = $region64
      $region63: #{tpu_custom_call.1} parent=5 // pred_region
        %s1680 = ssub.s32 %s54, 2
        // Predicated region
        $region65: #{tpu_custom_call.1} parent=63 // pred_check
          %p1681 = pneg %p169
        $region66: #{tpu_custom_call.1} parent=63 // pred_check_branch
          %1683 = sbr.rel (%p1681) target = $region68
        $region67: #{tpu_custom_call.1} parent=63 // pred_region
          %s1684 = sand.u32 %s154, 1
          %s1685 = scalar_lea.sflag [#allocation12], %s1684
          %s1686 = sand.u32 %s154, 1
          %s1687 = smul.addr %s1686, 8
          %s1688 = scalar_lea.vmem [#allocation13], %s1687
          %1690 = dma.done %s1685, 128
        $region68: #{tpu_custom_call.1} parent=63 // pred_fallthru
          _
      $region64: #{tpu_custom_call.1} parent=5 // pred_fallthru
        _
    $region6: #{tpu_custom_call.1} parent=1 // loop_footer
      %s58 = sadd.s32 1, %s54
    $region7: #{tpu_custom_call.1} parent=1 // loop_footer_branch
      %53 = sbr.rel target = $region3
    $region8: #{tpu_custom_call.1} parent=1 // loop_exit
      _
    %1691 = vsyncpa [#allocation11], 1
    %s1692 = scalar_lea.sflag [#allocation11], 1
    %1693 = vsyncpa %s1692, 1
    %1694 = vsyncpa [#allocation12], 1
    %s1695 = scalar_lea.sflag [#allocation12], 1
    %1696 = vsyncpa %s1695, 1

// kernel: tpu_custom_call.1
$region0: #{tpu_custom_call.1}
  #allocation0 [shape = 'u32[]', space=smem, size = 0x4, offset = 0x4, fixed_abs, tag = 'smem constant byte address 0x4 - core index']
  #allocation1 [shape = 'u32[72,128]{1,0:T(1,128)}', space=vmem, size = 0x9000, scoped, tag = 'internal scratch']
  #allocation2 [shape = 'f32[3,3]{1,0:T(4,128)}', space=vmem, size = 0x800, scoped, tag = 'scratch operand']
  #allocation3 [shape = 's32[1]{0}', space=sflag, size = 0x4, scoped, tag = 'scoped memory for tpu_custom_call.1']
  #allocation4 [shape = 'u8[512]{0}', space=smem, size = 0x200, scoped, tag = 'prefetched SMEM operand 0']
  #allocation5 [shape = 'u8[512]{0}', space=smem, size = 0x200, scoped, tag = 'prefetched SMEM operand 1']
  #allocation6 [shape = 'u8[512]{0}', space=smem, size = 0x200, scoped, tag = 'prefetched SMEM operand 2']
  #allocation7 [shape = 'u8[512]{0}', space=smem, size = 0x200, scoped, tag = 'prefetched SMEM operand 3']
  #allocation8 [shape = 'u8[512]{0}', space=smem, size = 0x200, scoped, tag = 'prefetched SMEM operand 4']
  #allocation9 [shape = 'u8[512]{0}', space=smem, size = 0x200, scoped, tag = 'prefetched SMEM operand 5']
  %s0 = inlined_call_operand.vmem [shape: s32[6], index: 0, kind: input, shape index: {}]
  %s1 = inlined_call_operand.vmem [shape: s32[6], index: 1, kind: input, shape index: {}]
  %s2 = inlined_call_operand.vmem [shape: s32[6], index: 2, kind: input, shape index: {}]
  %s3 = inlined_call_operand.vmem [shape: s32[6], index: 3, kind: input, shape index: {}]
  %s4 = inlined_call_operand.vmem [shape: s32[6], index: 4, kind: input, shape index: {}]
  %s5 = inlined_call_operand.vmem [shape: s32[6], index: 5, kind: input, shape index: {}]
  %s6 = inlined_call_operand.vmem [shape: f32[6,3,3], index: 6, kind: input, shape index: {}]
  %s7 = inlined_call_operand.hbm [shape: f32[3,1536], index: 7, kind: input, shape index: {}]
  %s8 = inlined_call_operand.hbm [shape: f32[3,1536], index: 8, kind: input, shape index: {}]
  %s9 = inlined_call_operand.hbm [shape: f32[3,1536], index: 9, kind: output, shape index: {}]
  %s10 = sld [smem:[#allocation0]]
  $region73: #{tpu_custom_call.1} parent=0
    _
  %s12 = ssub.s32 1, %s10
  %s13 = scalar_select 0, %s12, %s10
  %s15 = sshll.u32 %s0, 4
  %s16 = int_to_ptr.vmem [resolvable:$true] %s15
  %18 = dma.vmem_to_smem %s16, 16, [#allocation4], [#allocation3]
  %s20 = sshll.u32 %s1, 4
  %s21 = int_to_ptr.vmem [resolvable:$true] %s20
  %23 = dma.vmem_to_smem %s21, 16, [#allocation5], [#allocation3]
  %s25 = sshll.u32 %s2, 4
  %s26 = int_to_ptr.vmem [resolvable:$true] %s25
  %28 = dma.vmem_to_smem %s26, 16, [#allocation6], [#allocation3]
  %s30 = sshll.u32 %s3, 4
  %s31 = int_to_ptr.vmem [resolvable:$true] %s30
  %33 = dma.vmem_to_smem %s31, 16, [#allocation7], [#allocation3]
  %s35 = sshll.u32 %s4, 4
  %s36 = int_to_ptr.vmem [resolvable:$true] %s35
  %38 = dma.vmem_to_smem %s36, 16, [#allocation8], [#allocation3]
  %s40 = sshll.u32 %s5, 4
  %s41 = int_to_ptr.vmem [resolvable:$true] %s40
  %43 = dma.vmem_to_smem %s41, 16, [#allocation9], [#allocation3]
  %45 = dma.done [#allocation3], 96
  %46 = sfence
  $region1: #{tpu_custom_call.1} parent=0
    #allocation10 [shape = 'u8[8192]{0}', space=vmem, size = 0x2000, scoped, tag = 'input window, operand 7']
    #allocation11 [shape = 's32[2]{0}', space=sflag, size = 0x8, scoped, tag = 'scoped memory for tpu_custom_call.1']
    #allocation12 [shape = 's32[2]{0}', space=sflag, size = 0x8, scoped, tag = 'scoped memory for tpu_custom_call.1']
    #allocation13 [shape = 'u8[8192]{0}', space=vmem, size = 0x2000, scoped, tag = 'input window, operand 8']
    #allocation14 [shape = 's32[2]{0}', space=sflag, size = 0x8, scoped, tag = 'scoped memory for tpu_custom_call.1']
    #allocation15 [shape = 'u8[8192]{0}', space=vmem, size = 0x2000, scoped, tag = 'output window, operand 0']
    %47 = vsyncpa [#allocation11], 0
    %s48 = scalar_lea.sflag [#allocation11], 1
    %49 = vsyncpa %s48, 0
    %50 = vsyncpa [#allocation14], 0
    %s51 = scalar_lea.sflag [#allocation14], 1
    %52 = vsyncpa %s51, 0
    %53 = vsyncpa [#allocation12], 0
    %s54 = scalar_lea.sflag [#allocation12], 1
    %55 = vsyncpa %s54, 0
    loop: start=0, step=1, limit=8
    $region2: #{tpu_custom_call.1} parent=1 // loop_pre_header
      _
    $region3: #{tpu_custom_call.1} parent=1 // loop_header
      %s57 = sphi 0, %s61
      %p58 = scmp.ge.s32.totalorder %s57, 8
      %s69 = sphi 0, %s71
      %s72 = sphi 0, %s69
      %s73 = sphi 0, %s72
      %s89 = sphi 0, %s73
      %s97 = sphi 0, %s99
      %s100 = sphi 0, %s97
      %s101 = sphi 0, %s100
      %s117 = sphi 0, %s101
      %s125 = sphi 0, %s127
      %s128 = sphi 0, %s125
      %s129 = sphi 0, %s128
      %s145 = sphi 0, %s129
      %s153 = sphi 0, %s155
      %s156 = sphi 0, %s153
      %s157 = sphi 0, %s156
      %s173 = sphi 0, %s157
    $region4: #{tpu_custom_call.1} parent=1 // loop_header_branch
      %60 = sbr.rel (%p58) target = $region8
    $region5: #{tpu_custom_call.1} parent=1 // loop_body
      %s62 = ssub.s32 %s57, 1
      %s63 = ssub.s32 %s57, 2
      %s64 = sadd.s32 %s57, 1
      %s65 = sld [smem:[#allocation7 + %s57]]
      %s66 = sld [smem:[#allocation7 + %s64]]
      %s67 = ssub.s32 %s65, %s66
      %p68 = scmp.eq.s32.totalorder %s67, 0
      %s70 = sadd.s32 %s69, 1
      %s71 = scalar_select %p68, %s69, %s70
      %p74 = pneg %p68
      %p75 = scmp.eq.s32.totalorder %s57, 5
      %p76 = por %p74, %p75
      %p77 = scmp.ne.s32.totalorder %s69, %s72
      %p78 = scmp.eq.s32.totalorder %s57, 0
      %p79 = por %p77, %p78
      %p80 = scmp.ne.s32.totalorder %s69, %s72
      %p81 = scmp.eq.s32.totalorder %s62, 5
      %p82 = por %p80, %p81
      %p83 = scmp.ne.s32.totalorder %s72, %s73
      %p84 = scmp.eq.s32.totalorder %s62, 0
      %p85 = por %p83, %p84
      %p86 = scmp.ne.s32.totalorder %s72, %s73
      %p87 = scmp.eq.s32.totalorder %s63, 5
      %p88 = por %p86, %p87
      %p90 = scmp.ne.s32.totalorder %s73, %s89
      %p91 = scmp.eq.s32.totalorder %s63, 0
      %p92 = por %p90, %p91
      %s93 = sld [smem:[#allocation8 + %s57]]
      %s94 = sld [smem:[#allocation8 + %s64]]
      %s95 = ssub.s32 %s93, %s94
      %p96 = scmp.eq.s32.totalorder %s95, 0
      %s98 = sadd.s32 %s97, 1
      %s99 = scalar_select %p96, %s97, %s98
      %p102 = pneg %p96
      %p103 = scmp.eq.s32.totalorder %s57, 5
      %p104 = por %p102, %p103
      %p105 = scmp.ne.s32.totalorder %s97, %s100
      %p106 = scmp.eq.s32.totalorder %s57, 0
      %p107 = por %p105, %p106
      %p108 = scmp.ne.s32.totalorder %s97, %s100
      %p109 = scmp.eq.s32.totalorder %s62, 5
      %p110 = por %p108, %p109
      %p111 = scmp.ne.s32.totalorder %s100, %s101
      %p112 = scmp.eq.s32.totalorder %s62, 0
      %p113 = por %p111, %p112
      %p114 = scmp.ne.s32.totalorder %s100, %s101
      %p115 = scmp.eq.s32.totalorder %s63, 5
      %p116 = por %p114, %p115
      %p118 = scmp.ne.s32.totalorder %s101, %s117
      %p119 = scmp.eq.s32.totalorder %s63, 0
      %p120 = por %p118, %p119
      %s121 = sld [smem:[#allocation9 + %s57]]
      %s122 = sld [smem:[#allocation9 + %s64]]
      %s123 = ssub.s32 %s121, %s122
      %p124 = scmp.eq.s32.totalorder %s123, 0
      %s126 = sadd.s32 %s125, 1
      %s127 = scalar_select %p124, %s125, %s126
      %p130 = pneg %p124
      %p131 = scmp.eq.s32.totalorder %s57, 5
      %p132 = por %p130, %p131
      %p133 = scmp.ne.s32.totalorder %s125, %s128
      %p134 = scmp.eq.s32.totalorder %s57, 0
      %p135 = por %p133, %p134
      %p136 = scmp.ne.s32.totalorder %s125, %s128
      %p137 = scmp.eq.s32.totalorder %s62, 5
      %p138 = por %p136, %p137
      %p139 = scmp.ne.s32.totalorder %s128, %s129
      %p140 = scmp.eq.s32.totalorder %s62, 0
      %p141 = por %p139, %p140
      %p142 = scmp.ne.s32.totalorder %s128, %s129
      %p143 = scmp.eq.s32.totalorder %s63, 5
      %p144 = por %p142, %p143
      %p146 = scmp.ne.s32.totalorder %s129, %s145
      %p147 = scmp.eq.s32.totalorder %s63, 0
      %p148 = por %p146, %p147
      %s149 = sld [smem:[#allocation9 + %s57]]
      %s150 = sld [smem:[#allocation9 + %s64]]
      %s151 = ssub.s32 %s149, %s150
      %p152 = scmp.eq.s32.totalorder %s151, 0
      %s154 = sadd.s32 %s153, 1
      %s155 = scalar_select %p152, %s153, %s154
      %p158 = pneg %p152
      %p159 = scmp.eq.s32.totalorder %s57, 5
      %p160 = por %p158, %p159
      %p161 = scmp.ne.s32.totalorder %s153, %s156
      %p162 = scmp.eq.s32.totalorder %s57, 0
      %p163 = por %p161, %p162
      %p164 = scmp.ne.s32.totalorder %s153, %s156
      %p165 = scmp.eq.s32.totalorder %s62, 5
      %p166 = por %p164, %p165
      %p167 = scmp.ne.s32.totalorder %s156, %s157
      %p168 = scmp.eq.s32.totalorder %s62, 0
      %p169 = por %p167, %p168
      %p170 = scmp.ne.s32.totalorder %s156, %s157
      %p171 = scmp.eq.s32.totalorder %s63, 5
      %p172 = por %p170, %p171
      %p174 = scmp.ne.s32.totalorder %s157, %s173
      %p175 = scmp.eq.s32.totalorder %s63, 0
      %p176 = por %p174, %p175
      %p177 = scmp.le.s32.totalorder 1, %s57
      %p178 = scmp.lt.s32.totalorder %s57, 7
      %p179 = pnand %p177, %p178
      %p180 = pneg %p179
      // Predicated region
      $region9: #{tpu_custom_call.1} parent=5 // pred_check
        _
      $region10: #{tpu_custom_call.1} parent=5 // pred_check_branch
        %182 = sbr.rel (%p179) target = $region12
      $region11: #{tpu_custom_call.1} parent=5 // pred_region
        %s183 = ssub.s32 %s57, 1
      $region12: #{tpu_custom_call.1} parent=5 // pred_fallthru
        _
      %p184 = scmp.lt.s32.totalorder %s57, 6
      // Predicated region
      $region13: #{tpu_custom_call.1} parent=5 // pred_check
        %p185 = pneg %p184
      $region14: #{tpu_custom_call.1} parent=5 // pred_check_branch
        %187 = sbr.rel (%p185) target = $region16
      $region15: #{tpu_custom_call.1} parent=5 // pred_region
        // Predicated region
        $region17: #{tpu_custom_call.1} parent=15 // pred_check
          %p188 = pneg %p79
        $region18: #{tpu_custom_call.1} parent=15 // pred_check_branch
          %190 = sbr.rel (%p188) target = $region20
        $region19: #{tpu_custom_call.1} parent=15 // pred_region
          %s191 = sld [smem:[#allocation7 + %s57]]
          %p192 = scmp.lt.s32.totalorder %s191, 5
          %s193 = scalar_select %p192, %s191, 5
          %s194 = smul.addr %s193, 4
          %s195 = scalar_lea.vmem %s6, %s194
          %s196 = sld [smem:[#allocation7 + %s57]]
        $region20: #{tpu_custom_call.1} parent=15 // pred_fallthru
          _
        // Predicated region
        $region21: #{tpu_custom_call.1} parent=15 // pred_check
          %p197 = pneg %p107
        $region22: #{tpu_custom_call.1} parent=15 // pred_check_branch
          %199 = sbr.rel (%p197) target = $region24
        $region23: #{tpu_custom_call.1} parent=15 // pred_region
          %s200 = sand.u32 %s97, 1
          %s201 = scalar_lea.sflag [#allocation11], %s200
          %s202 = sand.u32 %s97, 1
          %s203 = smul.addr %s202, 8
          %s204 = scalar_lea.vmem [#allocation10], %s203
          %s205 = sld [smem:[#allocation8 + %s57]]
          %s206 = smul.u32 2, %s205
          %208 = vsyncadd %s201, 0
          %s209 = smul.addr %s206, 4
          %s210 = scalar_lea.hbm %s7, %s209
          %s212 = sshll.u32 %s210, 4
          %s213 = int_to_ptr.hbm [resolvable:$true] %s212
          %s214 = sshll.u32 %s204, 4
          %s215 = int_to_ptr.vmem [resolvable:$true] %s214
          %217 = dma.hbm_to_vmem [thread:$0]  %s213, 128, %s215, %s201
        $region24: #{tpu_custom_call.1} parent=15 // pred_fallthru
          _
        // Predicated region
        $region25: #{tpu_custom_call.1} parent=15 // pred_check
          %p218 = pneg %p135
        $region26: #{tpu_custom_call.1} parent=15 // pred_check_branch
          %220 = sbr.rel (%p218) target = $region28
        $region27: #{tpu_custom_call.1} parent=15 // pred_region
          %s221 = sand.u32 %s125, 1
          %s222 = scalar_lea.sflag [#allocation14], %s221
          %s223 = sand.u32 %s125, 1
          %s224 = smul.addr %s223, 8
          %s225 = scalar_lea.vmem [#allocation13], %s224
          %s226 = sld [smem:[#allocation9 + %s57]]
          %s227 = smul.u32 2, %s226
          %229 = vsyncadd %s222, 0
          %s230 = smul.addr %s227, 4
          %s231 = scalar_lea.hbm %s8, %s230
          %s233 = sshll.u32 %s231, 4
          %s234 = int_to_ptr.hbm [resolvable:$true] %s233
          %s235 = sshll.u32 %s225, 4
          %s236 = int_to_ptr.vmem [resolvable:$true] %s235
          %238 = dma.hbm_to_vmem [thread:$0]  %s234, 128, %s236, %s222
        $region28: #{tpu_custom_call.1} parent=15 // pred_fallthru
          _
      $region16: #{tpu_custom_call.1} parent=5 // pred_fallthru
        _
      %p239 = scmp.le.s32.totalorder 1, %s57
      %p240 = scmp.lt.s32.totalorder %s57, 7
      %p241 = pnand %p239, %p240
      %p242 = pneg %p241
      // Predicated region
      $region29: #{tpu_custom_call.1} parent=5 // pred_check
        _
      $region30: #{tpu_custom_call.1} parent=5 // pred_check_branch
        %244 = sbr.rel (%p241) target = $region32
      $region31: #{tpu_custom_call.1} parent=5 // pred_region
        %s245 = ssub.s32 %s57, 1
        %s246 = sand.u32 %s100, 1
        %s247 = scalar_lea.sflag [#allocation11], %s246
        %s248 = sand.u32 %s100, 1
        %s249 = smul.addr %s248, 8
        %s250 = scalar_lea.vmem [#allocation10], %s249
        // Predicated region
        $region33: #{tpu_custom_call.1} parent=31 // pred_check
          %p251 = pneg %p113
        $region34: #{tpu_custom_call.1} parent=31 // pred_check_branch
          %253 = sbr.rel (%p251) target = $region36
        $region35: #{tpu_custom_call.1} parent=31 // pred_region
          %255 = dma.done %s247, 128
        $region36: #{tpu_custom_call.1} parent=31 // pred_fallthru
          _
        %s256 = sand.u32 %s128, 1
        %s257 = scalar_lea.sflag [#allocation14], %s256
        %s258 = sand.u32 %s128, 1
        %s259 = smul.addr %s258, 8
        %s260 = scalar_lea.vmem [#allocation13], %s259
        // Predicated region
        $region37: #{tpu_custom_call.1} parent=31 // pred_check
          %p261 = pneg %p141
        $region38: #{tpu_custom_call.1} parent=31 // pred_check_branch
          %263 = sbr.rel (%p261) target = $region40
        $region39: #{tpu_custom_call.1} parent=31 // pred_region
          %265 = dma.done %s257, 128
        $region40: #{tpu_custom_call.1} parent=31 // pred_fallthru
          _
        %s266 = sld [smem:[#allocation7 + %s62]]
        %p267 = scmp.lt.s32.totalorder %s266, 5
        %s268 = scalar_select %p267, %s266, 5
        %s269 = smul.addr %s268, 4
        %s270 = scalar_lea.vmem %s6, %s269
        %p271 = pneg %p85
        %p272 = pneg %p82
        %s273 = sand.u32 %s100, 1
        %s274 = scalar_lea.sflag [#allocation11], %s273
        %s275 = sand.u32 %s100, 1
        %s276 = smul.addr %s275, 8
        %s277 = scalar_lea.vmem [#allocation10], %s276
        %p278 = pneg %p113
        %p279 = pneg %p110
        %s280 = sand.u32 %s128, 1
        %s281 = scalar_lea.sflag [#allocation14], %s280
        %s282 = sand.u32 %s128, 1
        %s283 = smul.addr %s282, 8
        %s284 = scalar_lea.vmem [#allocation13], %s283
        %p285 = pneg %p141
        %p286 = pneg %p138
        %p287 = pneg %p169
        %p288 = pneg %p166
        %s289 = sand.u32 %s156, 1
        %s290 = scalar_lea.sflag [#allocation12], %s289
        %s291 = sand.u32 %s156, 1
        %s292 = smul.addr %s291, 8
        %s293 = scalar_lea.vmem [#allocation15], %s292
        %s294 = sld [smem:[#allocation7 + %s62]]
        %p295 = scmp.lt.s32.totalorder %s294, 5
        %s296 = scalar_select %p295, %s294, 5
        %s297 = smul.addr %s296, 4
        %s298 = scalar_lea.vmem %s6, %s297
        %s299 = sld [smem:[#allocation7 + %s62]]
        %s300 = sld [smem:[#allocation8 + %s62]]
        %s301 = smul.u32 2, %s300
        %s302 = sld [smem:[#allocation9 + %s62]]
        %s303 = smul.u32 2, %s302
        %s304 = sld [smem:[#allocation9 + %s62]]
        %s305 = smul.u32 2, %s304
        %s306 = sld [smem:[#allocation4 + %s62]]
        %p307 = scmp.eq.s32.totalorder %s306, 0
        // Predicated region
        $region41: #{tpu_custom_call.1} parent=31 // pred_check
          %p308 = pneg %p307
        $region42: #{tpu_custom_call.1} parent=31 // pred_check_branch
          %310 = sbr.rel (%p308) target = $region44
        $region43: #{tpu_custom_call.1} parent=31 // pred_region
          %s311 = sld [smem:[#allocation5 + %s62]]
          %p312 = scmp.eq.s32.totalorder %s311, 1
          // Predicated region
          $region45: #{tpu_custom_call.1} parent=43 // pred_check
            %p313 = pneg %p312
          $region46: #{tpu_custom_call.1} parent=43 // pred_check_branch
            %315 = sbr.rel (%p313) target = $region48
          $region47: #{tpu_custom_call.1} parent=43 // pred_region
            %vm316 = vcmask 18432
            %317 = vst.msk [vmem:[#allocation2] sm:$0x7] %vm316, 0.0
          $region48: #{tpu_custom_call.1} parent=43 // pred_fallthru
            _
          %v318 = vld [vmem:[%s250] sm:$0x77]
          %v319 = vld [vmem:[#allocation2] sm:$0x7]
          %321 = vst [vmem:[#allocation1] ss:$2 sm:$0xff] %v318
          %v322 = vld.sshfl [vmem:[#allocation1] sm:$0xff pattern:$0x75316420]
          %v323 = vld.sshfl [vmem:[#allocation1 + $0x8] sm:$0xff pattern:$0x75316420]
          %326 = vst [vmem:[#allocation1] ss:$2 sm:$0xff] %v318
          %v327 = vld.sshfl [vmem:[#allocation1] sm:$0xff pattern:$0x75316420]
          %v328 = vld.sshfl [vmem:[#allocation1 + $0x8] sm:$0xff pattern:$0x75316420]
          %331 = vmatpush.xpose.msra.mxu0 0.0
          %332 = vmatpush.xpose.msra.mxu0 0.0
          %333 = vmatpush.xpose.msra.mxu0 0.0
          %334 = vmatpush.xpose.msra.mxu0 0.0
          %335 = vmatpush.xpose.msra.mxu0 0.0
          %336 = vmatpush.xpose.msra.mxu0 0.0
          %337 = vmatpush.xpose.msra.mxu0 0.0
          %338 = vmatpush.xpose.msra.mxu0 0.0
          %339 = vmatpush.xpose.msra.mxu0 0.0
          %340 = vmatpush.xpose.msra.mxu0 0.0
          %341 = vmatpush.xpose.msra.mxu0 0.0
          %342 = vmatpush.xpose.msra.mxu0 0.0
          %343 = vmatpush.xpose.msra.mxu0 0.0
          %344 = vmatpush.xpose.msra.mxu0 0.0
          %345 = vmatpush.xpose.msra.mxu0 0.0
          %v346 = vand.u32 %v327, 4294901760
          %347 = vmatpush.xpose.msra.mxu0 %v346
          %v348 = vand.u32 %v322, 4294901760
          %v349 = vsub.f32 %v322, %v348
          %v350 = vand.u32 %v349, 4294901760
          %v351 = vsub.f32 %v349, %v350
          %v352 = vand.u32 %v351, 4294901760
          %353 = vmatmul.f32.gmra.mxu0 %v352
          %v354 = vpop.f32.mrf.mxu0
          %v355 = vadd.f32 0.0, %v354
          %356 = vdwg.mxu0
          %357 = vmatpush.xpose.msra.mxu0 0.0
          %358 = vmatpush.xpose.msra.mxu0 0.0
          %359 = vmatpush.xpose.msra.mxu0 0.0
          %360 = vmatpush.xpose.msra.mxu0 0.0
          %361 = vmatpush.xpose.msra.mxu0 0.0
          %362 = vmatpush.xpose.msra.mxu0 0.0
          %363 = vmatpush.xpose.msra.mxu0 0.0
          %364 = vmatpush.xpose.msra.mxu0 0.0
          %365 = vmatpush.xpose.msra.mxu0 0.0
          %366 = vmatpush.xpose.msra.mxu0 0.0
          %367 = vmatpush.xpose.msra.mxu0 0.0
          %368 = vmatpush.xpose.msra.mxu0 0.0
          %369 = vmatpush.xpose.msra.mxu0 0.0
          %370 = vmatpush.xpose.msra.mxu0 0.0
          %371 = vmatpush.xpose.msra.mxu0 0.0
          %v372 = vand.u32 %v327, 4294901760
          %v373 = vsub.f32 %v327, %v372
          %v374 = vand.u32 %v373, 4294901760
          %v375 = vsub.f32 %v373, %v374
          %v376 = vand.u32 %v375, 4294901760
          %377 = vmatpush.xpose.msra.mxu0 %v376
          %v378 = vand.u32 %v322, 4294901760
          %379 = vmatmul.f32.gmra.mxu0 %v378
          %v380 = vpop.f32.mrf.mxu0
          %v381 = vadd.f32 %v355, %v380
          %382 = vdwg.mxu0
          %383 = vmatpush.xpose.msra.mxu0 0.0
          %384 = vmatpush.xpose.msra.mxu0 0.0
          %385 = vmatpush.xpose.msra.mxu0 0.0
          %386 = vmatpush.xpose.msra.mxu0 0.0
          %387 = vmatpush.xpose.msra.mxu0 0.0
          %388 = vmatpush.xpose.msra.mxu0 0.0
          %389 = vmatpush.xpose.msra.mxu0 0.0
          %390 = vmatpush.xpose.msra.mxu0 0.0
          %391 = vmatpush.xpose.msra.mxu0 0.0
          %392 = vmatpush.xpose.msra.mxu0 0.0
          %393 = vmatpush.xpose.msra.mxu0 0.0
          %394 = vmatpush.xpose.msra.mxu0 0.0
          %395 = vmatpush.xpose.msra.mxu0 0.0
          %396 = vmatpush.xpose.msra.mxu0 0.0
          %397 = vmatpush.xpose.msra.mxu0 0.0
          %v398 = vand.u32 %v327, 4294901760
          %v399 = vsub.f32 %v327, %v398
          %400 = vmatpush.xpose.msra.mxu0 %v399
          %v401 = vand.u32 %v322, 4294901760
          %v402 = vsub.f32 %v322, %v401
          %403 = vmatmul.f32.gmra.mxu0 %v402
          %v404 = vpop.f32.mrf.mxu0
          %v405 = vadd.f32 %v381, %v404
          %406 = vdwg.mxu0
          %407 = vmatpush.xpose.msra.mxu0 0.0
          %408 = vmatpush.xpose.msra.mxu0 0.0
          %409 = vmatpush.xpose.msra.mxu0 0.0
          %410 = vmatpush.xpose.msra.mxu0 0.0
          %411 = vmatpush.xpose.msra.mxu0 0.0
          %412 = vmatpush.xpose.msra.mxu0 0.0
          %413 = vmatpush.xpose.msra.mxu0 0.0
          %414 = vmatpush.xpose.msra.mxu0 0.0
          %415 = vmatpush.xpose.msra.mxu0 0.0
          %416 = vmatpush.xpose.msra.mxu0 0.0
          %417 = vmatpush.xpose.msra.mxu0 0.0
          %418 = vmatpush.xpose.msra.mxu0 0.0
          %419 = vmatpush.xpose.msra.mxu0 0.0
          %420 = vmatpush.xpose.msra.mxu0 0.0
          %421 = vmatpush.xpose.msra.mxu0 0.0
          %v422 = vand.u32 %v327, 4294901760
          %423 = vmatpush.xpose.msra.mxu0 %v422
          %v424 = vand.u32 %v322, 4294901760
          %v425 = vsub.f32 %v322, %v424
          %v426 = vand.u32 %v425, 4294901760
          %427 = vmatmul.f32.gmra.mxu0 %v426
          %v428 = vpop.f32.mrf.mxu0
          %v429 = vadd.f32 %v405, %v428
          %430 = vdwg.mxu0
          %431 = vmatpush.xpose.msra.mxu0 0.0
          %432 = vmatpush.xpose.msra.mxu0 0.0
          %433 = vmatpush.xpose.msra.mxu0 0.0
          %434 = vmatpush.xpose.msra.mxu0 0.0
          %435 = vmatpush.xpose.msra.mxu0 0.0
          %436 = vmatpush.xpose.msra.mxu0 0.0
          %437 = vmatpush.xpose.msra.mxu0 0.0
          %438 = vmatpush.xpose.msra.mxu0 0.0
          %439 = vmatpush.xpose.msra.mxu0 0.0
          %440 = vmatpush.xpose.msra.mxu0 0.0
          %441 = vmatpush.xpose.msra.mxu0 0.0
          %442 = vmatpush.xpose.msra.mxu0 0.0
          %443 = vmatpush.xpose.msra.mxu0 0.0
          %444 = vmatpush.xpose.msra.mxu0 0.0
          %445 = vmatpush.xpose.msra.mxu0 0.0
          %v446 = vand.u32 %v327, 4294901760
          %v447 = vsub.f32 %v327, %v446
          %v448 = vand.u32 %v447, 4294901760
          %449 = vmatpush.xpose.msra.mxu0 %v448
          %v450 = vand.u32 %v322, 4294901760
          %451 = vmatmul.f32.gmra.mxu0 %v450
          %v452 = vpop.f32.mrf.mxu0
          %v453 = vadd.f32 %v429, %v452
          %454 = vdwg.mxu0
          %455 = vmatpush.xpose.msra.mxu0 0.0
          %456 = vmatpush.xpose.msra.mxu0 0.0
          %457 = vmatpush.xpose.msra.mxu0 0.0
          %458 = vmatpush.xpose.msra.mxu0 0.0
          %459 = vmatpush.xpose.msra.mxu0 0.0
          %460 = vmatpush.xpose.msra.mxu0 0.0
          %461 = vmatpush.xpose.msra.mxu0 0.0
          %462 = vmatpush.xpose.msra.mxu0 0.0
          %463 = vmatpush.xpose.msra.mxu0 0.0
          %464 = vmatpush.xpose.msra.mxu0 0.0
          %465 = vmatpush.xpose.msra.mxu0 0.0
          %466 = vmatpush.xpose.msra.mxu0 0.0
          %467 = vmatpush.xpose.msra.mxu0 0.0
          %468 = vmatpush.xpose.msra.mxu0 0.0
          %469 = vmatpush.xpose.msra.mxu0 0.0
          %v470 = vand.u32 %v327, 4294901760
          %471 = vmatpush.xpose.msra.mxu0 %v470
          %v472 = vand.u32 %v322, 4294901760
          %473 = vmatmul.f32.gmra.mxu0 %v472
          %v474 = vpop.f32.mrf.mxu0
          %v475 = vadd.f32 %v453, %v474
          %476 = vdwg.mxu0
          %477 = vmatpush.xpose.msra.mxu0 0.0
          %478 = vmatpush.xpose.msra.mxu0 0.0
          %479 = vmatpush.xpose.msra.mxu0 0.0
          %480 = vmatpush.xpose.msra.mxu0 0.0
          %481 = vmatpush.xpose.msra.mxu0 0.0
          %482 = vmatpush.xpose.msra.mxu0 0.0
          %483 = vmatpush.xpose.msra.mxu0 0.0
          %484 = vmatpush.xpose.msra.mxu0 0.0
          %485 = vmatpush.xpose.msra.mxu0 0.0
          %486 = vmatpush.xpose.msra.mxu0 0.0
          %487 = vmatpush.xpose.msra.mxu0 0.0
          %488 = vmatpush.xpose.msra.mxu0 0.0
          %489 = vmatpush.xpose.msra.mxu0 0.0
          %490 = vmatpush.xpose.msra.mxu0 0.0
          %491 = vmatpush.xpose.msra.mxu0 0.0
          %v492 = vand.u32 %v328, 4294901760
          %493 = vmatpush.xpose.msra.mxu0 %v492
          %v494 = vand.u32 %v323, 4294901760
          %v495 = vsub.f32 %v323, %v494
          %v496 = vand.u32 %v495, 4294901760
          %v497 = vsub.f32 %v495, %v496
          %v498 = vand.u32 %v497, 4294901760
          %499 = vmatmul.f32.gmra.mxu0 %v498
          %v500 = vpop.f32.mrf.mxu0
          %v501 = vadd.f32 %v475, %v500
          %502 = vdwg.mxu0
          %503 = vmatpush.xpose.msra.mxu0 0.0
          %504 = vmatpush.xpose.msra.mxu0 0.0
          %505 = vmatpush.xpose.msra.mxu0 0.0
          %506 = vmatpush.xpose.msra.mxu0 0.0
          %507 = vmatpush.xpose.msra.mxu0 0.0
          %508 = vmatpush.xpose.msra.mxu0 0.0
          %509 = vmatpush.xpose.msra.mxu0 0.0
          %510 = vmatpush.xpose.msra.mxu0 0.0
          %511 = vmatpush.xpose.msra.mxu0 0.0
          %512 = vmatpush.xpose.msra.mxu0 0.0
          %513 = vmatpush.xpose.msra.mxu0 0.0
          %514 = vmatpush.xpose.msra.mxu0 0.0
          %515 = vmatpush.xpose.msra.mxu0 0.0
          %516 = vmatpush.xpose.msra.mxu0 0.0
          %517 = vmatpush.xpose.msra.mxu0 0.0
          %v518 = vand.u32 %v328, 4294901760
          %v519 = vsub.f32 %v328, %v518
          %v520 = vand.u32 %v519, 4294901760
          %v521 = vsub.f32 %v519, %v520
          %v522 = vand.u32 %v521, 4294901760
          %523 = vmatpush.xpose.msra.mxu0 %v522
          %v524 = vand.u32 %v323, 4294901760
          %525 = vmatmul.f32.gmra.mxu0 %v524
          %v526 = vpop.f32.mrf.mxu0
          %v527 = vadd.f32 %v501, %v526
          %528 = vdwg.mxu0
          %529 = vmatpush.xpose.msra.mxu0 0.0
          %530 = vmatpush.xpose.msra.mxu0 0.0
          %531 = vmatpush.xpose.msra.mxu0 0.0
          %532 = vmatpush.xpose.msra.mxu0 0.0
          %533 = vmatpush.xpose.msra.mxu0 0.0
          %534 = vmatpush.xpose.msra.mxu0 0.0
          %535 = vmatpush.xpose.msra.mxu0 0.0
          %536 = vmatpush.xpose.msra.mxu0 0.0
          %537 = vmatpush.xpose.msra.mxu0 0.0
          %538 = vmatpush.xpose.msra.mxu0 0.0
          %539 = vmatpush.xpose.msra.mxu0 0.0
          %540 = vmatpush.xpose.msra.mxu0 0.0
          %541 = vmatpush.xpose.msra.mxu0 0.0
          %542 = vmatpush.xpose.msra.mxu0 0.0
          %543 = vmatpush.xpose.msra.mxu0 0.0
          %v544 = vand.u32 %v328, 4294901760
          %v545 = vsub.f32 %v328, %v544
          %546 = vmatpush.xpose.msra.mxu0 %v545
          %v547 = vand.u32 %v323, 4294901760
          %v548 = vsub.f32 %v323, %v547
          %549 = vmatmul.f32.gmra.mxu0 %v548
          %v550 = vpop.f32.mrf.mxu0
          %v551 = vadd.f32 %v527, %v550
          %552 = vdwg.mxu0
          %553 = vmatpush.xpose.msra.mxu0 0.0
          %554 = vmatpush.xpose.msra.mxu0 0.0
          %555 = vmatpush.xpose.msra.mxu0 0.0
          %556 = vmatpush.xpose.msra.mxu0 0.0
          %557 = vmatpush.xpose.msra.mxu0 0.0
          %558 = vmatpush.xpose.msra.mxu0 0.0
          %559 = vmatpush.xpose.msra.mxu0 0.0
          %560 = vmatpush.xpose.msra.mxu0 0.0
          %561 = vmatpush.xpose.msra.mxu0 0.0
          %562 = vmatpush.xpose.msra.mxu0 0.0
          %563 = vmatpush.xpose.msra.mxu0 0.0
          %564 = vmatpush.xpose.msra.mxu0 0.0
          %565 = vmatpush.xpose.msra.mxu0 0.0
          %566 = vmatpush.xpose.msra.mxu0 0.0
          %567 = vmatpush.xpose.msra.mxu0 0.0
          %v568 = vand.u32 %v328, 4294901760
          %569 = vmatpush.xpose.msra.mxu0 %v568
          %v570 = vand.u32 %v323, 4294901760
          %v571 = vsub.f32 %v323, %v570
          %v572 = vand.u32 %v571, 4294901760
          %573 = vmatmul.f32.gmra.mxu0 %v572
          %v574 = vpop.f32.mrf.mxu0
          %v575 = vadd.f32 %v551, %v574
          %576 = vdwg.mxu0
          %577 = vmatpush.xpose.msra.mxu0 0.0
          %578 = vmatpush.xpose.msra.mxu0 0.0
          %579 = vmatpush.xpose.msra.mxu0 0.0
          %580 = vmatpush.xpose.msra.mxu0 0.0
          %581 = vmatpush.xpose.msra.mxu0 0.0
          %582 = vmatpush.xpose.msra.mxu0 0.0
          %583 = vmatpush.xpose.msra.mxu0 0.0
          %584 = vmatpush.xpose.msra.mxu0 0.0
          %585 = vmatpush.xpose.msra.mxu0 0.0
          %586 = vmatpush.xpose.msra.mxu0 0.0
          %587 = vmatpush.xpose.msra.mxu0 0.0
          %588 = vmatpush.xpose.msra.mxu0 0.0
          %589 = vmatpush.xpose.msra.mxu0 0.0
          %590 = vmatpush.xpose.msra.mxu0 0.0
          %591 = vmatpush.xpose.msra.mxu0 0.0
          %v592 = vand.u32 %v328, 4294901760
          %v593 = vsub.f32 %v328, %v592
          %v594 = vand.u32 %v593, 4294901760
          %595 = vmatpush.xpose.msra.mxu0 %v594
          %v596 = vand.u32 %v323, 4294901760
          %597 = vmatmul.f32.gmra.mxu0 %v596
          %v598 = vpop.f32.mrf.mxu0
          %v599 = vadd.f32 %v575, %v598
          %600 = vdwg.mxu0
          %601 = vmatpush.xpose.msra.mxu0 0.0
          %602 = vmatpush.xpose.msra.mxu0 0.0
          %603 = vmatpush.xpose.msra.mxu0 0.0
          %604 = vmatpush.xpose.msra.mxu0 0.0
          %605 = vmatpush.xpose.msra.mxu0 0.0
          %606 = vmatpush.xpose.msra.mxu0 0.0
          %607 = vmatpush.xpose.msra.mxu0 0.0
          %608 = vmatpush.xpose.msra.mxu0 0.0
          %609 = vmatpush.xpose.msra.mxu0 0.0
          %610 = vmatpush.xpose.msra.mxu0 0.0
          %611 = vmatpush.xpose.msra.mxu0 0.0
          %612 = vmatpush.xpose.msra.mxu0 0.0
          %613 = vmatpush.xpose.msra.mxu0 0.0
          %614 = vmatpush.xpose.msra.mxu0 0.0
          %615 = vmatpush.xpose.msra.mxu0 0.0
          %v616 = vand.u32 %v328, 4294901760
          %617 = vmatpush.xpose.msra.mxu0 %v616
          %v618 = vand.u32 %v323, 4294901760
          %619 = vmatmul.f32.gmra.mxu0 %v618
          %v620 = vpop.f32.mrf.mxu0
          %v621 = vadd.f32 %v599, %v620
          %622 = vdwg.mxu0
          %v623 = vadd.f32 %v319, %v621
          %vm624 = vcmask 18432
          %625 = vst.msk [vmem:[#allocation2] sm:$0x7] %vm624, %v623
          %s626 = sld [smem:[#allocation6 + %s62]]
          %p627 = scmp.eq.s32.totalorder %s626, 1
          // Predicated region
          $region49: #{tpu_custom_call.1} parent=43 // pred_check
            %p628 = pneg %p627
          $region50: #{tpu_custom_call.1} parent=43 // pred_check_branch
            %630 = sbr.rel (%p628) target = $region52
          $region51: #{tpu_custom_call.1} parent=43 // pred_region
            %v631 = vld [vmem:[#allocation2] sm:$0x7]
            %v632 = vld [vmem:[%s298] sm:$0x7]
            %634 = vset.pattern.permute.xlu0 1
            %635 = vperm.xlu0 %634, %v632
            %v636 = vpop.permute.xlu0 %635
            %v638 = vmul.f32 %v631, %v636
            %v639 = vsel %vm624, %v638, -inf
            %640 = vmax.xlane.f32.xlu0 %v639
            %v641 = vpop.xlane.xlu0 %640
            %v642 = vsub.f32 %v638, %v641
            %v643 = vmul.f32 %v642, 1.442695
            %v644 = vpow.pop %v643
            %v645 = vsel %vm624, %v644, 0.0
            %646 = vadd.xlane.f32.xlu0 %v645
            %v647 = vpop.xlane.xlu0 %646
            %v648 = vrcp.pop %v647
            %v649 = vmul.f32 %v647, %v648
            %v650 = vsub.f32 1.0, %v649
            %v651 = vmul.f32 %v648, %v650
            %v652 = vadd.f32 %v648, %v651
            %vm653 = vweird.f32 %v647
            %vm654 = vweird.f32 %v648
            %vm655 = vmor %vm653, %vm654
            %v656 = vsel %vm655, %v648, %v652
            %v657 = vand.u32 2147483647, %v647
            %vm658 = vcmp.eq.f32.partialorder %v657, 8.507059e+37
            %v659 = vand.u32 %v647, 2147483648
            %v660 = vor.u32 1.1754944e-38, %v659
            %v661 = vsel %vm658, %v660, %v656
            %v662 = vmul.f32 %v644, %v661
            %v663 = vlaneseq
            %v664 = vshrl.u32 %v663, 7
            %v665 = vlaneseq
            %v666 = vand.u32 %v665, 127
            %vm667 = vcmp.eq.s32.totalorder %v664, %v666
            %v668 = vsel %vm667, 1.0, 0.0
            %669 = vset.pattern.permute.xlu0 0
            %670 = vperm.xlu0 %669, %v632
            %v671 = vpop.permute.xlu0 %670
            %v673 = vmul.f32 %v671, %v662
            %674 = vset.pattern.permute.xlu0 2
            %675 = vperm.xlu0 %674, %v632
            %v676 = vpop.permute.xlu0 %675
            %v678 = vmul.f32 %v676, %v668
            %v679 = vadd.f32 %v673, %v678
            %680 = vst.msk [vmem:[#allocation2] sm:$0x7] %vm624, %v679
          $region52: #{tpu_custom_call.1} parent=43 // pred_fallthru
            _
        $region44: #{tpu_custom_call.1} parent=31 // pred_fallthru
          _
        %p681 = scmp.eq.s32.totalorder %s306, 1
        // Predicated region
        $region53: #{tpu_custom_call.1} parent=31 // pred_check
          %p682 = pneg %p681
        $region54: #{tpu_custom_call.1} parent=31 // pred_check_branch
          %684 = sbr.rel (%p682) target = $region56
        $region55: #{tpu_custom_call.1} parent=31 // pred_region
          %v685 = vld [vmem:[%s260] sm:$0x77]
          %v686 = vld [vmem:[#allocation2] sm:$0x7]
          %v687 = vld [vmem:[%s250] sm:$0x77]
          %689 = vst [vmem:[#allocation1] ss:$2 sm:$0xff] %v687
          %v690 = vld.sshfl [vmem:[#allocation1] sm:$0xff pattern:$0x75316420]
          %v691 = vld.sshfl [vmem:[#allocation1 + $0x8] sm:$0xff pattern:$0x75316420]
          %vm692 = vcmask 23552
          %v694 = vsel %vm692, %v686, 0
          %vm696 = vcmask 1042432
          %v697 = vsel %vm696, %v690, 0
          %v699 = vsel %vm696, %v691, 0
          %701 = vmatpush.msra.mxu0 0.0
          %702 = vmatpush.msra.mxu0 0.0
          %703 = vmatpush.msra.mxu0 0.0
          %704 = vmatpush.msra.mxu0 0.0
          %705 = vmatpush.msra.mxu0 0.0
          %706 = vmatpush.msra.mxu0 0.0
          %707 = vmatpush.msra.mxu0 0.0
          %708 = vmatpush.msra.mxu0 0.0
          %709 = vmatpush.msra.mxu0 0.0
          %710 = vmatpush.msra.mxu0 0.0
          %711 = vmatpush.msra.mxu0 0.0
          %712 = vmatpush.msra.mxu0 0.0
          %713 = vmatpush.msra.mxu0 0.0
          %714 = vmatpush.msra.mxu0 0.0
          %715 = vmatpush.msra.mxu0 0.0
          %v716 = vand.u32 %v697, 4294901760
          %717 = vmatpush.msra.mxu0 %v716
          %v718 = vand.u32 %v694, 4294901760
          %v719 = vsub.f32 %v694, %v718
          %v720 = vand.u32 %v719, 4294901760
          %v721 = vsub.f32 %v719, %v720
          %v722 = vand.u32 %v721, 4294901760
          %723 = vmatmul.f32.gmra.mxu0 %v722
          %v724 = vpop.f32.mrf.mxu0
          %v725 = vadd.f32 0.0, %v724
          %726 = vdwg.mxu0
          %727 = vmatpush.msra.mxu0 0.0
          %728 = vmatpush.msra.mxu0 0.0
          %729 = vmatpush.msra.mxu0 0.0
          %730 = vmatpush.msra.mxu0 0.0
          %731 = vmatpush.msra.mxu0 0.0
          %732 = vmatpush.msra.mxu0 0.0
          %733 = vmatpush.msra.mxu0 0.0
          %734 = vmatpush.msra.mxu0 0.0
          %735 = vmatpush.msra.mxu0 0.0
          %736 = vmatpush.msra.mxu0 0.0
          %737 = vmatpush.msra.mxu0 0.0
          %738 = vmatpush.msra.mxu0 0.0
          %739 = vmatpush.msra.mxu0 0.0
          %740 = vmatpush.msra.mxu0 0.0
          %741 = vmatpush.msra.mxu0 0.0
          %v742 = vand.u32 %v697, 4294901760
          %v743 = vsub.f32 %v697, %v742
          %v744 = vand.u32 %v743, 4294901760
          %v745 = vsub.f32 %v743, %v744
          %v746 = vand.u32 %v745, 4294901760
          %747 = vmatpush.msra.mxu0 %v746
          %v748 = vand.u32 %v694, 4294901760
          %749 = vmatmul.f32.gmra.mxu0 %v748
          %v750 = vpop.f32.mrf.mxu0
          %v751 = vadd.f32 %v725, %v750
          %752 = vdwg.mxu0
          %753 = vmatpush.msra.mxu0 0.0
          %754 = vmatpush.msra.mxu0 0.0
          %755 = vmatpush.msra.mxu0 0.0
          %756 = vmatpush.msra.mxu0 0.0
          %757 = vmatpush.msra.mxu0 0.0
          %758 = vmatpush.msra.mxu0 0.0
          %759 = vmatpush.msra.mxu0 0.0
          %760 = vmatpush.msra.mxu0 0.0
          %761 = vmatpush.msra.mxu0 0.0
          %762 = vmatpush.msra.mxu0 0.0
          %763 = vmatpush.msra.mxu0 0.0
          %764 = vmatpush.msra.mxu0 0.0
          %765 = vmatpush.msra.mxu0 0.0
          %766 = vmatpush.msra.mxu0 0.0
          %767 = vmatpush.msra.mxu0 0.0
          %v768 = vand.u32 %v697, 4294901760
          %v769 = vsub.f32 %v697, %v768
          %770 = vmatpush.msra.mxu0 %v769
          %v771 = vand.u32 %v694, 4294901760
          %v772 = vsub.f32 %v694, %v771
          %773 = vmatmul.f32.gmra.mxu0 %v772
          %v774 = vpop.f32.mrf.mxu0
          %v775 = vadd.f32 %v751, %v774
          %776 = vdwg.mxu0
          %777 = vmatpush.msra.mxu0 0.0
          %778 = vmatpush.msra.mxu0 0.0
          %779 = vmatpush.msra.mxu0 0.0
          %780 = vmatpush.msra.mxu0 0.0
          %781 = vmatpush.msra.mxu0 0.0
          %782 = vmatpush.msra.mxu0 0.0
          %783 = vmatpush.msra.mxu0 0.0
          %784 = vmatpush.msra.mxu0 0.0
          %785 = vmatpush.msra.mxu0 0.0
          %786 = vmatpush.msra.mxu0 0.0
          %787 = vmatpush.msra.mxu0 0.0
          %788 = vmatpush.msra.mxu0 0.0
          %789 = vmatpush.msra.mxu0 0.0
          %790 = vmatpush.msra.mxu0 0.0
          %791 = vmatpush.msra.mxu0 0.0
          %v792 = vand.u32 %v697, 4294901760
          %793 = vmatpush.msra.mxu0 %v792
          %v794 = vand.u32 %v694, 4294901760
          %v795 = vsub.f32 %v694, %v794
          %v796 = vand.u32 %v795, 4294901760
          %797 = vmatmul.f32.gmra.mxu0 %v796
          %v798 = vpop.f32.mrf.mxu0
          %v799 = vadd.f32 %v775, %v798
          %800 = vdwg.mxu0
          %801 = vmatpush.msra.mxu0 0.0
          %802 = vmatpush.msra.mxu0 0.0
          %803 = vmatpush.msra.mxu0 0.0
          %804 = vmatpush.msra.mxu0 0.0
          %805 = vmatpush.msra.mxu0 0.0
          %806 = vmatpush.msra.mxu0 0.0
          %807 = vmatpush.msra.mxu0 0.0
          %808 = vmatpush.msra.mxu0 0.0
          %809 = vmatpush.msra.mxu0 0.0
          %810 = vmatpush.msra.mxu0 0.0
          %811 = vmatpush.msra.mxu0 0.0
          %812 = vmatpush.msra.mxu0 0.0
          %813 = vmatpush.msra.mxu0 0.0
          %814 = vmatpush.msra.mxu0 0.0
          %815 = vmatpush.msra.mxu0 0.0
          %v816 = vand.u32 %v697, 4294901760
          %v817 = vsub.f32 %v697, %v816
          %v818 = vand.u32 %v817, 4294901760
          %819 = vmatpush.msra.mxu0 %v818
          %v820 = vand.u32 %v694, 4294901760
          %821 = vmatmul.f32.gmra.mxu0 %v820
          %v822 = vpop.f32.mrf.mxu0
          %v823 = vadd.f32 %v799, %v822
          %824 = vdwg.mxu0
          %825 = vmatpush.msra.mxu0 0.0
          %826 = vmatpush.msra.mxu0 0.0
          %827 = vmatpush.msra.mxu0 0.0
          %828 = vmatpush.msra.mxu0 0.0
          %829 = vmatpush.msra.mxu0 0.0
          %830 = vmatpush.msra.mxu0 0.0
          %831 = vmatpush.msra.mxu0 0.0
          %832 = vmatpush.msra.mxu0 0.0
          %833 = vmatpush.msra.mxu0 0.0
          %834 = vmatpush.msra.mxu0 0.0
          %835 = vmatpush.msra.mxu0 0.0
          %836 = vmatpush.msra.mxu0 0.0
          %837 = vmatpush.msra.mxu0 0.0
          %838 = vmatpush.msra.mxu0 0.0
          %839 = vmatpush.msra.mxu0 0.0
          %v840 = vand.u32 %v697, 4294901760
          %841 = vmatpush.msra.mxu0 %v840
          %v842 = vand.u32 %v694, 4294901760
          %843 = vmatmul.f32.gmra.mxu0 %v842
          %v844 = vpop.f32.mrf.mxu0
          %v845 = vadd.f32 %v823, %v844
          %846 = vdwg.mxu0
          %847 = vmatpush.msra.mxu0 0.0
          %848 = vmatpush.msra.mxu0 0.0
          %849 = vmatpush.msra.mxu0 0.0
          %850 = vmatpush.msra.mxu0 0.0
          %851 = vmatpush.msra.mxu0 0.0
          %852 = vmatpush.msra.mxu0 0.0
          %853 = vmatpush.msra.mxu0 0.0
          %854 = vmatpush.msra.mxu0 0.0
          %855 = vmatpush.msra.mxu0 0.0
          %856 = vmatpush.msra.mxu0 0.0
          %857 = vmatpush.msra.mxu0 0.0
          %858 = vmatpush.msra.mxu0 0.0
          %859 = vmatpush.msra.mxu0 0.0
          %860 = vmatpush.msra.mxu0 0.0
          %861 = vmatpush.msra.mxu0 0.0
          %v862 = vand.u32 %v699, 4294901760
          %863 = vmatpush.msra.mxu0 %v862
          %v864 = vand.u32 %v694, 4294901760
          %v865 = vsub.f32 %v694, %v864
          %v866 = vand.u32 %v865, 4294901760
          %v867 = vsub.f32 %v865, %v866
          %v868 = vand.u32 %v867, 4294901760
          %869 = vmatmul.f32.gmra.mxu0 %v868
          %v870 = vpop.f32.mrf.mxu0
          %v871 = vadd.f32 0.0, %v870
          %872 = vdwg.mxu0
          %873 = vmatpush.msra.mxu0 0.0
          %874 = vmatpush.msra.mxu0 0.0
          %875 = vmatpush.msra.mxu0 0.0
          %876 = vmatpush.msra.mxu0 0.0
          %877 = vmatpush.msra.mxu0 0.0
          %878 = vmatpush.msra.mxu0 0.0
          %879 = vmatpush.msra.mxu0 0.0
          %880 = vmatpush.msra.mxu0 0.0
          %881 = vmatpush.msra.mxu0 0.0
          %882 = vmatpush.msra.mxu0 0.0
          %883 = vmatpush.msra.mxu0 0.0
          %884 = vmatpush.msra.mxu0 0.0
          %885 = vmatpush.msra.mxu0 0.0
          %886 = vmatpush.msra.mxu0 0.0
          %887 = vmatpush.msra.mxu0 0.0
          %v888 = vand.u32 %v699, 4294901760
          %v889 = vsub.f32 %v699, %v888
          %v890 = vand.u32 %v889, 4294901760
          %v891 = vsub.f32 %v889, %v890
          %v892 = vand.u32 %v891, 4294901760
          %893 = vmatpush.msra.mxu0 %v892
          %v894 = vand.u32 %v694, 4294901760
          %895 = vmatmul.f32.gmra.mxu0 %v894
          %v896 = vpop.f32.mrf.mxu0
          %v897 = vadd.f32 %v871, %v896
          %898 = vdwg.mxu0
          %899 = vmatpush.msra.mxu0 0.0
          %900 = vmatpush.msra.mxu0 0.0
          %901 = vmatpush.msra.mxu0 0.0
          %902 = vmatpush.msra.mxu0 0.0
          %903 = vmatpush.msra.mxu0 0.0
          %904 = vmatpush.msra.mxu0 0.0
          %905 = vmatpush.msra.mxu0 0.0
          %906 = vmatpush.msra.mxu0 0.0
          %907 = vmatpush.msra.mxu0 0.0
          %908 = vmatpush.msra.mxu0 0.0
          %909 = vmatpush.msra.mxu0 0.0
          %910 = vmatpush.msra.mxu0 0.0
          %911 = vmatpush.msra.mxu0 0.0
          %912 = vmatpush.msra.mxu0 0.0
          %913 = vmatpush.msra.mxu0 0.0
          %v914 = vand.u32 %v699, 4294901760
          %v915 = vsub.f32 %v699, %v914
          %916 = vmatpush.msra.mxu0 %v915
          %v917 = vand.u32 %v694, 4294901760
          %v918 = vsub.f32 %v694, %v917
          %919 = vmatmul.f32.gmra.mxu0 %v918
          %v920 = vpop.f32.mrf.mxu0
          %v921 = vadd.f32 %v897, %v920
          %922 = vdwg.mxu0
          %923 = vmatpush.msra.mxu0 0.0
          %924 = vmatpush.msra.mxu0 0.0
          %925 = vmatpush.msra.mxu0 0.0
          %926 = vmatpush.msra.mxu0 0.0
          %927 = vmatpush.msra.mxu0 0.0
          %928 = vmatpush.msra.mxu0 0.0
          %929 = vmatpush.msra.mxu0 0.0
          %930 = vmatpush.msra.mxu0 0.0
          %931 = vmatpush.msra.mxu0 0.0
          %932 = vmatpush.msra.mxu0 0.0
          %933 = vmatpush.msra.mxu0 0.0
          %934 = vmatpush.msra.mxu0 0.0
          %935 = vmatpush.msra.mxu0 0.0
          %936 = vmatpush.msra.mxu0 0.0
          %937 = vmatpush.msra.mxu0 0.0
          %v938 = vand.u32 %v699, 4294901760
          %939 = vmatpush.msra.mxu0 %v938
          %v940 = vand.u32 %v694, 4294901760
          %v941 = vsub.f32 %v694, %v940
          %v942 = vand.u32 %v941, 4294901760
          %943 = vmatmul.f32.gmra.mxu0 %v942
          %v944 = vpop.f32.mrf.mxu0
          %v945 = vadd.f32 %v921, %v944
          %946 = vdwg.mxu0
          %947 = vmatpush.msra.mxu0 0.0
          %948 = vmatpush.msra.mxu0 0.0
          %949 = vmatpush.msra.mxu0 0.0
          %950 = vmatpush.msra.mxu0 0.0
          %951 = vmatpush.msra.mxu0 0.0
          %952 = vmatpush.msra.mxu0 0.0
          %953 = vmatpush.msra.mxu0 0.0
          %954 = vmatpush.msra.mxu0 0.0
          %955 = vmatpush.msra.mxu0 0.0
          %956 = vmatpush.msra.mxu0 0.0
          %957 = vmatpush.msra.mxu0 0.0
          %958 = vmatpush.msra.mxu0 0.0
          %959 = vmatpush.msra.mxu0 0.0
          %960 = vmatpush.msra.mxu0 0.0
          %961 = vmatpush.msra.mxu0 0.0
          %v962 = vand.u32 %v699, 4294901760
          %v963 = vsub.f32 %v699, %v962
          %v964 = vand.u32 %v963, 4294901760
          %965 = vmatpush.msra.mxu0 %v964
          %v966 = vand.u32 %v694, 4294901760
          %967 = vmatmul.f32.gmra.mxu0 %v966
          %v968 = vpop.f32.mrf.mxu0
          %v969 = vadd.f32 %v945, %v968
          %970 = vdwg.mxu0
          %971 = vmatpush.msra.mxu0 0.0
          %972 = vmatpush.msra.mxu0 0.0
          %973 = vmatpush.msra.mxu0 0.0
          %974 = vmatpush.msra.mxu0 0.0
          %975 = vmatpush.msra.mxu0 0.0
          %976 = vmatpush.msra.mxu0 0.0
          %977 = vmatpush.msra.mxu0 0.0
          %978 = vmatpush.msra.mxu0 0.0
          %979 = vmatpush.msra.mxu0 0.0
          %980 = vmatpush.msra.mxu0 0.0
          %981 = vmatpush.msra.mxu0 0.0
          %982 = vmatpush.msra.mxu0 0.0
          %983 = vmatpush.msra.mxu0 0.0
          %984 = vmatpush.msra.mxu0 0.0
          %985 = vmatpush.msra.mxu0 0.0
          %v986 = vand.u32 %v699, 4294901760
          %987 = vmatpush.msra.mxu0 %v986
          %v988 = vand.u32 %v694, 4294901760
          %989 = vmatmul.f32.gmra.mxu0 %v988
          %v990 = vpop.f32.mrf.mxu0
          %v991 = vadd.f32 %v969, %v990
          %992 = vdwg.mxu0
          %v995 = vrot.slane %v991, 4
          %vm996 = vcmask 1043456
          %v997 = vsel %vm996, %v845, %v995
          %v999 = vadd.f32 %v685, %v997
          %1000 = vst [vmem:[%s293] sm:$0x77] %v999
        $region56: #{tpu_custom_call.1} parent=31 // pred_fallthru
          _
        %p1001 = scmp.eq.s32.totalorder %s306, 2
        // Predicated region
        $region57: #{tpu_custom_call.1} parent=31 // pred_check
          %p1002 = pneg %p1001
        $region58: #{tpu_custom_call.1} parent=31 // pred_check_branch
          %1004 = sbr.rel (%p1002) target = $region60
        $region59: #{tpu_custom_call.1} parent=31 // pred_region
          %v1005 = vld [vmem:[%s250] sm:$0x77]
          %1007 = vst [vmem:[#allocation1] ss:$2 sm:$0xff] %v1005
          %v1008 = vld.sshfl [vmem:[#allocation1] sm:$0xff pattern:$0x75316420]
          %v1009 = vld.sshfl [vmem:[#allocation1 + $0x8] sm:$0xff pattern:$0x75316420]
          %1012 = vst [vmem:[#allocation1] ss:$2 sm:$0xff] %v1005
          %v1013 = vld.sshfl [vmem:[#allocation1] sm:$0xff pattern:$0x75316420]
          %v1014 = vld.sshfl [vmem:[#allocation1 + $0x8] sm:$0xff pattern:$0x75316420]
          %1017 = vmatpush.xpose.msra.mxu0 0.0
          %1018 = vmatpush.xpose.msra.mxu0 0.0
          %1019 = vmatpush.xpose.msra.mxu0 0.0
          %1020 = vmatpush.xpose.msra.mxu0 0.0
          %1021 = vmatpush.xpose.msra.mxu0 0.0
          %1022 = vmatpush.xpose.msra.mxu0 0.0
          %1023 = vmatpush.xpose.msra.mxu0 0.0
          %1024 = vmatpush.xpose.msra.mxu0 0.0
          %1025 = vmatpush.xpose.msra.mxu0 0.0
          %1026 = vmatpush.xpose.msra.mxu0 0.0
          %1027 = vmatpush.xpose.msra.mxu0 0.0
          %1028 = vmatpush.xpose.msra.mxu0 0.0
          %1029 = vmatpush.xpose.msra.mxu0 0.0
          %1030 = vmatpush.xpose.msra.mxu0 0.0
          %1031 = vmatpush.xpose.msra.mxu0 0.0
          %v1032 = vand.u32 %v1013, 4294901760
          %1033 = vmatpush.xpose.msra.mxu0 %v1032
          %v1034 = vand.u32 %v1008, 4294901760
          %v1035 = vsub.f32 %v1008, %v1034
          %v1036 = vand.u32 %v1035, 4294901760
          %v1037 = vsub.f32 %v1035, %v1036
          %v1038 = vand.u32 %v1037, 4294901760
          %1039 = vmatmul.f32.gmra.mxu0 %v1038
          %v1040 = vpop.f32.mrf.mxu0
          %v1041 = vadd.f32 0.0, %v1040
          %1042 = vdwg.mxu0
          %1043 = vmatpush.xpose.msra.mxu0 0.0
          %1044 = vmatpush.xpose.msra.mxu0 0.0
          %1045 = vmatpush.xpose.msra.mxu0 0.0
          %1046 = vmatpush.xpose.msra.mxu0 0.0
          %1047 = vmatpush.xpose.msra.mxu0 0.0
          %1048 = vmatpush.xpose.msra.mxu0 0.0
          %1049 = vmatpush.xpose.msra.mxu0 0.0
          %1050 = vmatpush.xpose.msra.mxu0 0.0
          %1051 = vmatpush.xpose.msra.mxu0 0.0
          %1052 = vmatpush.xpose.msra.mxu0 0.0
          %1053 = vmatpush.xpose.msra.mxu0 0.0
          %1054 = vmatpush.xpose.msra.mxu0 0.0
          %1055 = vmatpush.xpose.msra.mxu0 0.0
          %1056 = vmatpush.xpose.msra.mxu0 0.0
          %1057 = vmatpush.xpose.msra.mxu0 0.0
          %v1058 = vand.u32 %v1013, 4294901760
          %v1059 = vsub.f32 %v1013, %v1058
          %v1060 = vand.u32 %v1059, 4294901760
          %v1061 = vsub.f32 %v1059, %v1060
          %v1062 = vand.u32 %v1061, 4294901760
          %1063 = vmatpush.xpose.msra.mxu0 %v1062
          %v1064 = vand.u32 %v1008, 4294901760
          %1065 = vmatmul.f32.gmra.mxu0 %v1064
          %v1066 = vpop.f32.mrf.mxu0
          %v1067 = vadd.f32 %v1041, %v1066
          %1068 = vdwg.mxu0
          %1069 = vmatpush.xpose.msra.mxu0 0.0
          %1070 = vmatpush.xpose.msra.mxu0 0.0
          %1071 = vmatpush.xpose.msra.mxu0 0.0
          %1072 = vmatpush.xpose.msra.mxu0 0.0
          %1073 = vmatpush.xpose.msra.mxu0 0.0
          %1074 = vmatpush.xpose.msra.mxu0 0.0
          %1075 = vmatpush.xpose.msra.mxu0 0.0
          %1076 = vmatpush.xpose.msra.mxu0 0.0
          %1077 = vmatpush.xpose.msra.mxu0 0.0
          %1078 = vmatpush.xpose.msra.mxu0 0.0
          %1079 = vmatpush.xpose.msra.mxu0 0.0
          %1080 = vmatpush.xpose.msra.mxu0 0.0
          %1081 = vmatpush.xpose.msra.mxu0 0.0
          %1082 = vmatpush.xpose.msra.mxu0 0.0
          %1083 = vmatpush.xpose.msra.mxu0 0.0
          %v1084 = vand.u32 %v1013, 4294901760
          %v1085 = vsub.f32 %v1013, %v1084
          %1086 = vmatpush.xpose.msra.mxu0 %v1085
          %v1087 = vand.u32 %v1008, 4294901760
          %v1088 = vsub.f32 %v1008, %v1087
          %1089 = vmatmul.f32.gmra.mxu0 %v1088
          %v1090 = vpop.f32.mrf.mxu0
          %v1091 = vadd.f32 %v1067, %v1090
          %1092 = vdwg.mxu0
          %1093 = vmatpush.xpose.msra.mxu0 0.0
          %1094 = vmatpush.xpose.msra.mxu0 0.0
          %1095 = vmatpush.xpose.msra.mxu0 0.0
          %1096 = vmatpush.xpose.msra.mxu0 0.0
          %1097 = vmatpush.xpose.msra.mxu0 0.0
          %1098 = vmatpush.xpose.msra.mxu0 0.0
          %1099 = vmatpush.xpose.msra.mxu0 0.0
          %1100 = vmatpush.xpose.msra.mxu0 0.0
          %1101 = vmatpush.xpose.msra.mxu0 0.0
          %1102 = vmatpush.xpose.msra.mxu0 0.0
          %1103 = vmatpush.xpose.msra.mxu0 0.0
          %1104 = vmatpush.xpose.msra.mxu0 0.0
          %1105 = vmatpush.xpose.msra.mxu0 0.0
          %1106 = vmatpush.xpose.msra.mxu0 0.0
          %1107 = vmatpush.xpose.msra.mxu0 0.0
          %v1108 = vand.u32 %v1013, 4294901760
          %1109 = vmatpush.xpose.msra.mxu0 %v1108
          %v1110 = vand.u32 %v1008, 4294901760
          %v1111 = vsub.f32 %v1008, %v1110
          %v1112 = vand.u32 %v1111, 4294901760
          %1113 = vmatmul.f32.gmra.mxu0 %v1112
          %v1114 = vpop.f32.mrf.mxu0
          %v1115 = vadd.f32 %v1091, %v1114
          %1116 = vdwg.mxu0
          %1117 = vmatpush.xpose.msra.mxu0 0.0
          %1118 = vmatpush.xpose.msra.mxu0 0.0
          %1119 = vmatpush.xpose.msra.mxu0 0.0
          %1120 = vmatpush.xpose.msra.mxu0 0.0
          %1121 = vmatpush.xpose.msra.mxu0 0.0
          %1122 = vmatpush.xpose.msra.mxu0 0.0
          %1123 = vmatpush.xpose.msra.mxu0 0.0
          %1124 = vmatpush.xpose.msra.mxu0 0.0
          %1125 = vmatpush.xpose.msra.mxu0 0.0
          %1126 = vmatpush.xpose.msra.mxu0 0.0
          %1127 = vmatpush.xpose.msra.mxu0 0.0
          %1128 = vmatpush.xpose.msra.mxu0 0.0
          %1129 = vmatpush.xpose.msra.mxu0 0.0
          %1130 = vmatpush.xpose.msra.mxu0 0.0
          %1131 = vmatpush.xpose.msra.mxu0 0.0
          %v1132 = vand.u32 %v1013, 4294901760
          %v1133 = vsub.f32 %v1013, %v1132
          %v1134 = vand.u32 %v1133, 4294901760
          %1135 = vmatpush.xpose.msra.mxu0 %v1134
          %v1136 = vand.u32 %v1008, 4294901760
          %1137 = vmatmul.f32.gmra.mxu0 %v1136
          %v1138 = vpop.f32.mrf.mxu0
          %v1139 = vadd.f32 %v1115, %v1138
          %1140 = vdwg.mxu0
          %1141 = vmatpush.xpose.msra.mxu0 0.0
          %1142 = vmatpush.xpose.msra.mxu0 0.0
          %1143 = vmatpush.xpose.msra.mxu0 0.0
          %1144 = vmatpush.xpose.msra.mxu0 0.0
          %1145 = vmatpush.xpose.msra.mxu0 0.0
          %1146 = vmatpush.xpose.msra.mxu0 0.0
          %1147 = vmatpush.xpose.msra.mxu0 0.0
          %1148 = vmatpush.xpose.msra.mxu0 0.0
          %1149 = vmatpush.xpose.msra.mxu0 0.0
          %1150 = vmatpush.xpose.msra.mxu0 0.0
          %1151 = vmatpush.xpose.msra.mxu0 0.0
          %1152 = vmatpush.xpose.msra.mxu0 0.0
          %1153 = vmatpush.xpose.msra.mxu0 0.0
          %1154 = vmatpush.xpose.msra.mxu0 0.0
          %1155 = vmatpush.xpose.msra.mxu0 0.0
          %v1156 = vand.u32 %v1013, 4294901760
          %1157 = vmatpush.xpose.msra.mxu0 %v1156
          %v1158 = vand.u32 %v1008, 4294901760
          %1159 = vmatmul.f32.gmra.mxu0 %v1158
          %v1160 = vpop.f32.mrf.mxu0
          %v1161 = vadd.f32 %v1139, %v1160
          %1162 = vdwg.mxu0
          %1163 = vmatpush.xpose.msra.mxu0 0.0
          %1164 = vmatpush.xpose.msra.mxu0 0.0
          %1165 = vmatpush.xpose.msra.mxu0 0.0
          %1166 = vmatpush.xpose.msra.mxu0 0.0
          %1167 = vmatpush.xpose.msra.mxu0 0.0
          %1168 = vmatpush.xpose.msra.mxu0 0.0
          %1169 = vmatpush.xpose.msra.mxu0 0.0
          %1170 = vmatpush.xpose.msra.mxu0 0.0
          %1171 = vmatpush.xpose.msra.mxu0 0.0
          %1172 = vmatpush.xpose.msra.mxu0 0.0
          %1173 = vmatpush.xpose.msra.mxu0 0.0
          %1174 = vmatpush.xpose.msra.mxu0 0.0
          %1175 = vmatpush.xpose.msra.mxu0 0.0
          %1176 = vmatpush.xpose.msra.mxu0 0.0
          %1177 = vmatpush.xpose.msra.mxu0 0.0
          %v1178 = vand.u32 %v1014, 4294901760
          %1179 = vmatpush.xpose.msra.mxu0 %v1178
          %v1180 = vand.u32 %v1009, 4294901760
          %v1181 = vsub.f32 %v1009, %v1180
          %v1182 = vand.u32 %v1181, 4294901760
          %v1183 = vsub.f32 %v1181, %v1182
          %v1184 = vand.u32 %v1183, 4294901760
          %1185 = vmatmul.f32.gmra.mxu0 %v1184
          %v1186 = vpop.f32.mrf.mxu0
          %v1187 = vadd.f32 %v1161, %v1186
          %1188 = vdwg.mxu0
          %1189 = vmatpush.xpose.msra.mxu0 0.0
          %1190 = vmatpush.xpose.msra.mxu0 0.0
          %1191 = vmatpush.xpose.msra.mxu0 0.0
          %1192 = vmatpush.xpose.msra.mxu0 0.0
          %1193 = vmatpush.xpose.msra.mxu0 0.0
          %1194 = vmatpush.xpose.msra.mxu0 0.0
          %1195 = vmatpush.xpose.msra.mxu0 0.0
          %1196 = vmatpush.xpose.msra.mxu0 0.0
          %1197 = vmatpush.xpose.msra.mxu0 0.0
          %1198 = vmatpush.xpose.msra.mxu0 0.0
          %1199 = vmatpush.xpose.msra.mxu0 0.0
          %1200 = vmatpush.xpose.msra.mxu0 0.0
          %1201 = vmatpush.xpose.msra.mxu0 0.0
          %1202 = vmatpush.xpose.msra.mxu0 0.0
          %1203 = vmatpush.xpose.msra.mxu0 0.0
          %v1204 = vand.u32 %v1014, 4294901760
          %v1205 = vsub.f32 %v1014, %v1204
          %v1206 = vand.u32 %v1205, 4294901760
          %v1207 = vsub.f32 %v1205, %v1206
          %v1208 = vand.u32 %v1207, 4294901760
          %1209 = vmatpush.xpose.msra.mxu0 %v1208
          %v1210 = vand.u32 %v1009, 4294901760
          %1211 = vmatmul.f32.gmra.mxu0 %v1210
          %v1212 = vpop.f32.mrf.mxu0
          %v1213 = vadd.f32 %v1187, %v1212
          %1214 = vdwg.mxu0
          %1215 = vmatpush.xpose.msra.mxu0 0.0
          %1216 = vmatpush.xpose.msra.mxu0 0.0
          %1217 = vmatpush.xpose.msra.mxu0 0.0
          %1218 = vmatpush.xpose.msra.mxu0 0.0
          %1219 = vmatpush.xpose.msra.mxu0 0.0
          %1220 = vmatpush.xpose.msra.mxu0 0.0
          %1221 = vmatpush.xpose.msra.mxu0 0.0
          %1222 = vmatpush.xpose.msra.mxu0 0.0
          %1223 = vmatpush.xpose.msra.mxu0 0.0
          %1224 = vmatpush.xpose.msra.mxu0 0.0
          %1225 = vmatpush.xpose.msra.mxu0 0.0
          %1226 = vmatpush.xpose.msra.mxu0 0.0
          %1227 = vmatpush.xpose.msra.mxu0 0.0
          %1228 = vmatpush.xpose.msra.mxu0 0.0
          %1229 = vmatpush.xpose.msra.mxu0 0.0
          %v1230 = vand.u32 %v1014, 4294901760
          %v1231 = vsub.f32 %v1014, %v1230
          %1232 = vmatpush.xpose.msra.mxu0 %v1231
          %v1233 = vand.u32 %v1009, 4294901760
          %v1234 = vsub.f32 %v1009, %v1233
          %1235 = vmatmul.f32.gmra.mxu0 %v1234
          %v1236 = vpop.f32.mrf.mxu0
          %v1237 = vadd.f32 %v1213, %v1236
          %1238 = vdwg.mxu0
          %1239 = vmatpush.xpose.msra.mxu0 0.0
          %1240 = vmatpush.xpose.msra.mxu0 0.0
          %1241 = vmatpush.xpose.msra.mxu0 0.0
          %1242 = vmatpush.xpose.msra.mxu0 0.0
          %1243 = vmatpush.xpose.msra.mxu0 0.0
          %1244 = vmatpush.xpose.msra.mxu0 0.0
          %1245 = vmatpush.xpose.msra.mxu0 0.0
          %1246 = vmatpush.xpose.msra.mxu0 0.0
          %1247 = vmatpush.xpose.msra.mxu0 0.0
          %1248 = vmatpush.xpose.msra.mxu0 0.0
          %1249 = vmatpush.xpose.msra.mxu0 0.0
          %1250 = vmatpush.xpose.msra.mxu0 0.0
          %1251 = vmatpush.xpose.msra.mxu0 0.0
          %1252 = vmatpush.xpose.msra.mxu0 0.0
          %1253 = vmatpush.xpose.msra.mxu0 0.0
          %v1254 = vand.u32 %v1014, 4294901760
          %1255 = vmatpush.xpose.msra.mxu0 %v1254
          %v1256 = vand.u32 %v1009, 4294901760
          %v1257 = vsub.f32 %v1009, %v1256
          %v1258 = vand.u32 %v1257, 4294901760
          %1259 = vmatmul.f32.gmra.mxu0 %v1258
          %v1260 = vpop.f32.mrf.mxu0
          %v1261 = vadd.f32 %v1237, %v1260
          %1262 = vdwg.mxu0
          %1263 = vmatpush.xpose.msra.mxu0 0.0
          %1264 = vmatpush.xpose.msra.mxu0 0.0
          %1265 = vmatpush.xpose.msra.mxu0 0.0
          %1266 = vmatpush.xpose.msra.mxu0 0.0
          %1267 = vmatpush.xpose.msra.mxu0 0.0
          %1268 = vmatpush.xpose.msra.mxu0 0.0
          %1269 = vmatpush.xpose.msra.mxu0 0.0
          %1270 = vmatpush.xpose.msra.mxu0 0.0
          %1271 = vmatpush.xpose.msra.mxu0 0.0
          %1272 = vmatpush.xpose.msra.mxu0 0.0
          %1273 = vmatpush.xpose.msra.mxu0 0.0
          %1274 = vmatpush.xpose.msra.mxu0 0.0
          %1275 = vmatpush.xpose.msra.mxu0 0.0
          %1276 = vmatpush.xpose.msra.mxu0 0.0
          %1277 = vmatpush.xpose.msra.mxu0 0.0
          %v1278 = vand.u32 %v1014, 4294901760
          %v1279 = vsub.f32 %v1014, %v1278
          %v1280 = vand.u32 %v1279, 4294901760
          %1281 = vmatpush.xpose.msra.mxu0 %v1280
          %v1282 = vand.u32 %v1009, 4294901760
          %1283 = vmatmul.f32.gmra.mxu0 %v1282
          %v1284 = vpop.f32.mrf.mxu0
          %v1285 = vadd.f32 %v1261, %v1284
          %1286 = vdwg.mxu0
          %1287 = vmatpush.xpose.msra.mxu0 0.0
          %1288 = vmatpush.xpose.msra.mxu0 0.0
          %1289 = vmatpush.xpose.msra.mxu0 0.0
          %1290 = vmatpush.xpose.msra.mxu0 0.0
          %1291 = vmatpush.xpose.msra.mxu0 0.0
          %1292 = vmatpush.xpose.msra.mxu0 0.0
          %1293 = vmatpush.xpose.msra.mxu0 0.0
          %1294 = vmatpush.xpose.msra.mxu0 0.0
          %1295 = vmatpush.xpose.msra.mxu0 0.0
          %1296 = vmatpush.xpose.msra.mxu0 0.0
          %1297 = vmatpush.xpose.msra.mxu0 0.0
          %1298 = vmatpush.xpose.msra.mxu0 0.0
          %1299 = vmatpush.xpose.msra.mxu0 0.0
          %1300 = vmatpush.xpose.msra.mxu0 0.0
          %1301 = vmatpush.xpose.msra.mxu0 0.0
          %v1302 = vand.u32 %v1014, 4294901760
          %1303 = vmatpush.xpose.msra.mxu0 %v1302
          %v1304 = vand.u32 %v1009, 4294901760
          %1305 = vmatmul.f32.gmra.mxu0 %v1304
          %v1306 = vpop.f32.mrf.mxu0
          %v1307 = vadd.f32 %v1285, %v1306
          %1308 = vdwg.mxu0
          %v1309 = vld [vmem:[%s298] sm:$0x7]
          %1311 = vset.pattern.permute.xlu0 1
          %1312 = vperm.xlu0 %1311, %v1309
          %v1313 = vpop.permute.xlu0 %1312
          %v1315 = vmul.f32 %v1307, %v1313
          %vm1316 = vcmask 18432
          %v1317 = vsel %vm1316, %v1315, -inf
          %1318 = vmax.xlane.f32.xlu0 %v1317
          %v1319 = vpop.xlane.xlu0 %1318
          %v1320 = vsub.f32 %v1315, %v1319
          %v1321 = vmul.f32 %v1320, 1.442695
          %v1322 = vpow.pop %v1321
          %v1323 = vsel %vm1316, %v1322, 0.0
          %1324 = vadd.xlane.f32.xlu0 %v1323
          %v1325 = vpop.xlane.xlu0 %1324
          %v1326 = vrcp.pop %v1325
          %v1327 = vmul.f32 %v1325, %v1326
          %v1328 = vsub.f32 1.0, %v1327
          %v1329 = vmul.f32 %v1326, %v1328
          %v1330 = vadd.f32 %v1326, %v1329
          %vm1331 = vweird.f32 %v1325
          %vm1332 = vweird.f32 %v1326
          %vm1333 = vmor %vm1331, %vm1332
          %v1334 = vsel %vm1333, %v1326, %v1330
          %v1335 = vand.u32 2147483647, %v1325
          %vm1336 = vcmp.eq.f32.partialorder %v1335, 8.507059e+37
          %v1337 = vand.u32 %v1325, 2147483648
          %v1338 = vor.u32 1.1754944e-38, %v1337
          %v1339 = vsel %vm1336, %v1338, %v1334
          %v1340 = vmul.f32 %v1322, %v1339
          %v1341 = vlaneseq
          %v1342 = vshrl.u32 %v1341, 7
          %v1343 = vlaneseq
          %v1344 = vand.u32 %v1343, 127
          %vm1345 = vcmp.eq.s32.totalorder %v1342, %v1344
          %v1346 = vsel %vm1345, 1.0, 0.0
          %1347 = vset.pattern.permute.xlu0 0
          %1348 = vperm.xlu0 %1347, %v1309
          %v1349 = vpop.permute.xlu0 %1348
          %v1351 = vmul.f32 %v1349, %v1340
          %1352 = vset.pattern.permute.xlu0 2
          %1353 = vperm.xlu0 %1352, %v1309
          %v1354 = vpop.permute.xlu0 %1353
          %v1356 = vmul.f32 %v1354, %v1346
          %v1357 = vadd.f32 %v1351, %v1356
          %v1358 = vld [vmem:[%s260] sm:$0x77]
          %1359 = vst [vmem:[#allocation1] ss:$2 sm:$0xff] %v1005
          %v1360 = vld.sshfl [vmem:[#allocation1] sm:$0xff pattern:$0x75316420]
          %v1361 = vld.sshfl [vmem:[#allocation1 + $0x8] sm:$0xff pattern:$0x75316420]
          %vm1362 = vcmask 23552
          %v1364 = vsel %vm1362, %v1357, 0
          %vm1366 = vcmask 1042432
          %v1367 = vsel %vm1366, %v1360, 0
          %v1369 = vsel %vm1366, %v1361, 0
          %1371 = vmatpush.msra.mxu0 0.0
          %1372 = vmatpush.msra.mxu0 0.0
          %1373 = vmatpush.msra.mxu0 0.0
          %1374 = vmatpush.msra.mxu0 0.0
          %1375 = vmatpush.msra.mxu0 0.0
          %1376 = vmatpush.msra.mxu0 0.0
          %1377 = vmatpush.msra.mxu0 0.0
          %1378 = vmatpush.msra.mxu0 0.0
          %1379 = vmatpush.msra.mxu0 0.0
          %1380 = vmatpush.msra.mxu0 0.0
          %1381 = vmatpush.msra.mxu0 0.0
          %1382 = vmatpush.msra.mxu0 0.0
          %1383 = vmatpush.msra.mxu0 0.0
          %1384 = vmatpush.msra.mxu0 0.0
          %1385 = vmatpush.msra.mxu0 0.0
          %v1386 = vand.u32 %v1367, 4294901760
          %1387 = vmatpush.msra.mxu0 %v1386
          %v1388 = vand.u32 %v1364, 4294901760
          %v1389 = vsub.f32 %v1364, %v1388
          %v1390 = vand.u32 %v1389, 4294901760
          %v1391 = vsub.f32 %v1389, %v1390
          %v1392 = vand.u32 %v1391, 4294901760
          %1393 = vmatmul.f32.gmra.mxu0 %v1392
          %v1394 = vpop.f32.mrf.mxu0
          %v1395 = vadd.f32 0.0, %v1394
          %1396 = vdwg.mxu0
          %1397 = vmatpush.msra.mxu0 0.0
          %1398 = vmatpush.msra.mxu0 0.0
          %1399 = vmatpush.msra.mxu0 0.0
          %1400 = vmatpush.msra.mxu0 0.0
          %1401 = vmatpush.msra.mxu0 0.0
          %1402 = vmatpush.msra.mxu0 0.0
          %1403 = vmatpush.msra.mxu0 0.0
          %1404 = vmatpush.msra.mxu0 0.0
          %1405 = vmatpush.msra.mxu0 0.0
          %1406 = vmatpush.msra.mxu0 0.0
          %1407 = vmatpush.msra.mxu0 0.0
          %1408 = vmatpush.msra.mxu0 0.0
          %1409 = vmatpush.msra.mxu0 0.0
          %1410 = vmatpush.msra.mxu0 0.0
          %1411 = vmatpush.msra.mxu0 0.0
          %v1412 = vand.u32 %v1367, 4294901760
          %v1413 = vsub.f32 %v1367, %v1412
          %v1414 = vand.u32 %v1413, 4294901760
          %v1415 = vsub.f32 %v1413, %v1414
          %v1416 = vand.u32 %v1415, 4294901760
          %1417 = vmatpush.msra.mxu0 %v1416
          %v1418 = vand.u32 %v1364, 4294901760
          %1419 = vmatmul.f32.gmra.mxu0 %v1418
          %v1420 = vpop.f32.mrf.mxu0
          %v1421 = vadd.f32 %v1395, %v1420
          %1422 = vdwg.mxu0
          %1423 = vmatpush.msra.mxu0 0.0
          %1424 = vmatpush.msra.mxu0 0.0
          %1425 = vmatpush.msra.mxu0 0.0
          %1426 = vmatpush.msra.mxu0 0.0
          %1427 = vmatpush.msra.mxu0 0.0
          %1428 = vmatpush.msra.mxu0 0.0
          %1429 = vmatpush.msra.mxu0 0.0
          %1430 = vmatpush.msra.mxu0 0.0
          %1431 = vmatpush.msra.mxu0 0.0
          %1432 = vmatpush.msra.mxu0 0.0
          %1433 = vmatpush.msra.mxu0 0.0
          %1434 = vmatpush.msra.mxu0 0.0
          %1435 = vmatpush.msra.mxu0 0.0
          %1436 = vmatpush.msra.mxu0 0.0
          %1437 = vmatpush.msra.mxu0 0.0
          %v1438 = vand.u32 %v1367, 4294901760
          %v1439 = vsub.f32 %v1367, %v1438
          %1440 = vmatpush.msra.mxu0 %v1439
          %v1441 = vand.u32 %v1364, 4294901760
          %v1442 = vsub.f32 %v1364, %v1441
          %1443 = vmatmul.f32.gmra.mxu0 %v1442
          %v1444 = vpop.f32.mrf.mxu0
          %v1445 = vadd.f32 %v1421, %v1444
          %1446 = vdwg.mxu0
          %1447 = vmatpush.msra.mxu0 0.0
          %1448 = vmatpush.msra.mxu0 0.0
          %1449 = vmatpush.msra.mxu0 0.0
          %1450 = vmatpush.msra.mxu0 0.0
          %1451 = vmatpush.msra.mxu0 0.0
          %1452 = vmatpush.msra.mxu0 0.0
          %1453 = vmatpush.msra.mxu0 0.0
          %1454 = vmatpush.msra.mxu0 0.0
          %1455 = vmatpush.msra.mxu0 0.0
          %1456 = vmatpush.msra.mxu0 0.0
          %1457 = vmatpush.msra.mxu0 0.0
          %1458 = vmatpush.msra.mxu0 0.0
          %1459 = vmatpush.msra.mxu0 0.0
          %1460 = vmatpush.msra.mxu0 0.0
          %1461 = vmatpush.msra.mxu0 0.0
          %v1462 = vand.u32 %v1367, 4294901760
          %1463 = vmatpush.msra.mxu0 %v1462
          %v1464 = vand.u32 %v1364, 4294901760
          %v1465 = vsub.f32 %v1364, %v1464
          %v1466 = vand.u32 %v1465, 4294901760
          %1467 = vmatmul.f32.gmra.mxu0 %v1466
          %v1468 = vpop.f32.mrf.mxu0
          %v1469 = vadd.f32 %v1445, %v1468
          %1470 = vdwg.mxu0
          %1471 = vmatpush.msra.mxu0 0.0
          %1472 = vmatpush.msra.mxu0 0.0
          %1473 = vmatpush.msra.mxu0 0.0
          %1474 = vmatpush.msra.mxu0 0.0
          %1475 = vmatpush.msra.mxu0 0.0
          %1476 = vmatpush.msra.mxu0 0.0
          %1477 = vmatpush.msra.mxu0 0.0
          %1478 = vmatpush.msra.mxu0 0.0
          %1479 = vmatpush.msra.mxu0 0.0
          %1480 = vmatpush.msra.mxu0 0.0
          %1481 = vmatpush.msra.mxu0 0.0
          %1482 = vmatpush.msra.mxu0 0.0
          %1483 = vmatpush.msra.mxu0 0.0
          %1484 = vmatpush.msra.mxu0 0.0
          %1485 = vmatpush.msra.mxu0 0.0
          %v1486 = vand.u32 %v1367, 4294901760
          %v1487 = vsub.f32 %v1367, %v1486
          %v1488 = vand.u32 %v1487, 4294901760
          %1489 = vmatpush.msra.mxu0 %v1488
          %v1490 = vand.u32 %v1364, 4294901760
          %1491 = vmatmul.f32.gmra.mxu0 %v1490
          %v1492 = vpop.f32.mrf.mxu0
          %v1493 = vadd.f32 %v1469, %v1492
          %1494 = vdwg.mxu0
          %1495 = vmatpush.msra.mxu0 0.0
          %1496 = vmatpush.msra.mxu0 0.0
          %1497 = vmatpush.msra.mxu0 0.0
          %1498 = vmatpush.msra.mxu0 0.0
          %1499 = vmatpush.msra.mxu0 0.0
          %1500 = vmatpush.msra.mxu0 0.0
          %1501 = vmatpush.msra.mxu0 0.0
          %1502 = vmatpush.msra.mxu0 0.0
          %1503 = vmatpush.msra.mxu0 0.0
          %1504 = vmatpush.msra.mxu0 0.0
          %1505 = vmatpush.msra.mxu0 0.0
          %1506 = vmatpush.msra.mxu0 0.0
          %1507 = vmatpush.msra.mxu0 0.0
          %1508 = vmatpush.msra.mxu0 0.0
          %1509 = vmatpush.msra.mxu0 0.0
          %v1510 = vand.u32 %v1367, 4294901760
          %1511 = vmatpush.msra.mxu0 %v1510
          %v1512 = vand.u32 %v1364, 4294901760
          %1513 = vmatmul.f32.gmra.mxu0 %v1512
          %v1514 = vpop.f32.mrf.mxu0
          %v1515 = vadd.f32 %v1493, %v1514
          %1516 = vdwg.mxu0
          %1517 = vmatpush.msra.mxu0 0.0
          %1518 = vmatpush.msra.mxu0 0.0
          %1519 = vmatpush.msra.mxu0 0.0
          %1520 = vmatpush.msra.mxu0 0.0
          %1521 = vmatpush.msra.mxu0 0.0
          %1522 = vmatpush.msra.mxu0 0.0
          %1523 = vmatpush.msra.mxu0 0.0
          %1524 = vmatpush.msra.mxu0 0.0
          %1525 = vmatpush.msra.mxu0 0.0
          %1526 = vmatpush.msra.mxu0 0.0
          %1527 = vmatpush.msra.mxu0 0.0
          %1528 = vmatpush.msra.mxu0 0.0
          %1529 = vmatpush.msra.mxu0 0.0
          %1530 = vmatpush.msra.mxu0 0.0
          %1531 = vmatpush.msra.mxu0 0.0
          %v1532 = vand.u32 %v1369, 4294901760
          %1533 = vmatpush.msra.mxu0 %v1532
          %v1534 = vand.u32 %v1364, 4294901760
          %v1535 = vsub.f32 %v1364, %v1534
          %v1536 = vand.u32 %v1535, 4294901760
          %v1537 = vsub.f32 %v1535, %v1536
          %v1538 = vand.u32 %v1537, 4294901760
          %1539 = vmatmul.f32.gmra.mxu0 %v1538
          %v1540 = vpop.f32.mrf.mxu0
          %v1541 = vadd.f32 0.0, %v1540
          %1542 = vdwg.mxu0
          %1543 = vmatpush.msra.mxu0 0.0
          %1544 = vmatpush.msra.mxu0 0.0
          %1545 = vmatpush.msra.mxu0 0.0
          %1546 = vmatpush.msra.mxu0 0.0
          %1547 = vmatpush.msra.mxu0 0.0
          %1548 = vmatpush.msra.mxu0 0.0
          %1549 = vmatpush.msra.mxu0 0.0
          %1550 = vmatpush.msra.mxu0 0.0
          %1551 = vmatpush.msra.mxu0 0.0
          %1552 = vmatpush.msra.mxu0 0.0
          %1553 = vmatpush.msra.mxu0 0.0
          %1554 = vmatpush.msra.mxu0 0.0
          %1555 = vmatpush.msra.mxu0 0.0
          %1556 = vmatpush.msra.mxu0 0.0
          %1557 = vmatpush.msra.mxu0 0.0
          %v1558 = vand.u32 %v1369, 4294901760
          %v1559 = vsub.f32 %v1369, %v1558
          %v1560 = vand.u32 %v1559, 4294901760
          %v1561 = vsub.f32 %v1559, %v1560
          %v1562 = vand.u32 %v1561, 4294901760
          %1563 = vmatpush.msra.mxu0 %v1562
          %v1564 = vand.u32 %v1364, 4294901760
          %1565 = vmatmul.f32.gmra.mxu0 %v1564
          %v1566 = vpop.f32.mrf.mxu0
          %v1567 = vadd.f32 %v1541, %v1566
          %1568 = vdwg.mxu0
          %1569 = vmatpush.msra.mxu0 0.0
          %1570 = vmatpush.msra.mxu0 0.0
          %1571 = vmatpush.msra.mxu0 0.0
          %1572 = vmatpush.msra.mxu0 0.0
          %1573 = vmatpush.msra.mxu0 0.0
          %1574 = vmatpush.msra.mxu0 0.0
          %1575 = vmatpush.msra.mxu0 0.0
          %1576 = vmatpush.msra.mxu0 0.0
          %1577 = vmatpush.msra.mxu0 0.0
          %1578 = vmatpush.msra.mxu0 0.0
          %1579 = vmatpush.msra.mxu0 0.0
          %1580 = vmatpush.msra.mxu0 0.0
          %1581 = vmatpush.msra.mxu0 0.0
          %1582 = vmatpush.msra.mxu0 0.0
          %1583 = vmatpush.msra.mxu0 0.0
          %v1584 = vand.u32 %v1369, 4294901760
          %v1585 = vsub.f32 %v1369, %v1584
          %1586 = vmatpush.msra.mxu0 %v1585
          %v1587 = vand.u32 %v1364, 4294901760
          %v1588 = vsub.f32 %v1364, %v1587
          %1589 = vmatmul.f32.gmra.mxu0 %v1588
          %v1590 = vpop.f32.mrf.mxu0
          %v1591 = vadd.f32 %v1567, %v1590
          %1592 = vdwg.mxu0
          %1593 = vmatpush.msra.mxu0 0.0
          %1594 = vmatpush.msra.mxu0 0.0
          %1595 = vmatpush.msra.mxu0 0.0
          %1596 = vmatpush.msra.mxu0 0.0
          %1597 = vmatpush.msra.mxu0 0.0
          %1598 = vmatpush.msra.mxu0 0.0
          %1599 = vmatpush.msra.mxu0 0.0
          %1600 = vmatpush.msra.mxu0 0.0
          %1601 = vmatpush.msra.mxu0 0.0
          %1602 = vmatpush.msra.mxu0 0.0
          %1603 = vmatpush.msra.mxu0 0.0
          %1604 = vmatpush.msra.mxu0 0.0
          %1605 = vmatpush.msra.mxu0 0.0
          %1606 = vmatpush.msra.mxu0 0.0
          %1607 = vmatpush.msra.mxu0 0.0
          %v1608 = vand.u32 %v1369, 4294901760
          %1609 = vmatpush.msra.mxu0 %v1608
          %v1610 = vand.u32 %v1364, 4294901760
          %v1611 = vsub.f32 %v1364, %v1610
          %v1612 = vand.u32 %v1611, 4294901760
          %1613 = vmatmul.f32.gmra.mxu0 %v1612
          %v1614 = vpop.f32.mrf.mxu0
          %v1615 = vadd.f32 %v1591, %v1614
          %1616 = vdwg.mxu0
          %1617 = vmatpush.msra.mxu0 0.0
          %1618 = vmatpush.msra.mxu0 0.0
          %1619 = vmatpush.msra.mxu0 0.0
          %1620 = vmatpush.msra.mxu0 0.0
          %1621 = vmatpush.msra.mxu0 0.0
          %1622 = vmatpush.msra.mxu0 0.0
          %1623 = vmatpush.msra.mxu0 0.0
          %1624 = vmatpush.msra.mxu0 0.0
          %1625 = vmatpush.msra.mxu0 0.0
          %1626 = vmatpush.msra.mxu0 0.0
          %1627 = vmatpush.msra.mxu0 0.0
          %1628 = vmatpush.msra.mxu0 0.0
          %1629 = vmatpush.msra.mxu0 0.0
          %1630 = vmatpush.msra.mxu0 0.0
          %1631 = vmatpush.msra.mxu0 0.0
          %v1632 = vand.u32 %v1369, 4294901760
          %v1633 = vsub.f32 %v1369, %v1632
          %v1634 = vand.u32 %v1633, 4294901760
          %1635 = vmatpush.msra.mxu0 %v1634
          %v1636 = vand.u32 %v1364, 4294901760
          %1637 = vmatmul.f32.gmra.mxu0 %v1636
          %v1638 = vpop.f32.mrf.mxu0
          %v1639 = vadd.f32 %v1615, %v1638
          %1640 = vdwg.mxu0
          %1641 = vmatpush.msra.mxu0 0.0
          %1642 = vmatpush.msra.mxu0 0.0
          %1643 = vmatpush.msra.mxu0 0.0
          %1644 = vmatpush.msra.mxu0 0.0
          %1645 = vmatpush.msra.mxu0 0.0
          %1646 = vmatpush.msra.mxu0 0.0
          %1647 = vmatpush.msra.mxu0 0.0
          %1648 = vmatpush.msra.mxu0 0.0
          %1649 = vmatpush.msra.mxu0 0.0
          %1650 = vmatpush.msra.mxu0 0.0
          %1651 = vmatpush.msra.mxu0 0.0
          %1652 = vmatpush.msra.mxu0 0.0
          %1653 = vmatpush.msra.mxu0 0.0
          %1654 = vmatpush.msra.mxu0 0.0
          %1655 = vmatpush.msra.mxu0 0.0
          %v1656 = vand.u32 %v1369, 4294901760
          %1657 = vmatpush.msra.mxu0 %v1656
          %v1658 = vand.u32 %v1364, 4294901760
          %1659 = vmatmul.f32.gmra.mxu0 %v1658
          %v1660 = vpop.f32.mrf.mxu0
          %v1661 = vadd.f32 %v1639, %v1660
          %1662 = vdwg.mxu0
          %v1665 = vrot.slane %v1661, 4
          %vm1666 = vcmask 1043456
          %v1667 = vsel %vm1666, %v1515, %v1665
          %v1669 = vadd.f32 %v1358, %v1667
          %1670 = vst [vmem:[%s293] sm:$0x77] %v1669
        $region60: #{tpu_custom_call.1} parent=31 // pred_fallthru
          _
        %s1671 = sand.u32 %s156, 1
        %s1672 = scalar_lea.sflag [#allocation12], %s1671
        %s1673 = sand.u32 %s156, 1
        %s1674 = smul.addr %s1673, 8
        %s1675 = scalar_lea.vmem [#allocation15], %s1674
        // Predicated region
        $region61: #{tpu_custom_call.1} parent=31 // pred_check
          %p1676 = pneg %p166
        $region62: #{tpu_custom_call.1} parent=31 // pred_check_branch
          %1678 = sbr.rel (%p1676) target = $region64
        $region63: #{tpu_custom_call.1} parent=31 // pred_region
          %s1679 = sld [smem:[#allocation9 + %s62]]
          %s1680 = smul.u32 2, %s1679
          %1682 = vsyncadd %s1672, 0
          %s1683 = smul.addr %s1680, 4
          %s1684 = scalar_lea.hbm %s9, %s1683
          %s1686 = sshll.u32 %s1675, 4
          %s1687 = int_to_ptr.vmem [resolvable:$true] %s1686
          %s1688 = sshll.u32 %s1684, 4
          %s1689 = int_to_ptr.hbm [resolvable:$true] %s1688
          %1691 = dma.vmem_to_hbm [thread:$0]  %s1687, 128, %s1689, %s1672
        $region64: #{tpu_custom_call.1} parent=31 // pred_fallthru
          _
      $region32: #{tpu_custom_call.1} parent=5 // pred_fallthru
        _
      %p1692 = scmp.le.s32.totalorder 2, %s57
      // Predicated region
      $region65: #{tpu_custom_call.1} parent=5 // pred_check
        %p1693 = pneg %p1692
      $region66: #{tpu_custom_call.1} parent=5 // pred_check_branch
        %1695 = sbr.rel (%p1693) target = $region68
      $region67: #{tpu_custom_call.1} parent=5 // pred_region
        %s1696 = ssub.s32 %s57, 2
        // Predicated region
        $region69: #{tpu_custom_call.1} parent=67 // pred_check
          %p1697 = pneg %p172
        $region70: #{tpu_custom_call.1} parent=67 // pred_check_branch
          %1699 = sbr.rel (%p1697) target = $region72
        $region71: #{tpu_custom_call.1} parent=67 // pred_region
          %s1700 = sand.u32 %s157, 1
          %s1701 = scalar_lea.sflag [#allocation12], %s1700
          %s1702 = sand.u32 %s157, 1
          %s1703 = smul.addr %s1702, 8
          %s1704 = scalar_lea.vmem [#allocation15], %s1703
          %1706 = dma.done %s1701, 128
        $region72: #{tpu_custom_call.1} parent=67 // pred_fallthru
          _
      $region68: #{tpu_custom_call.1} parent=5 // pred_fallthru
        _
    $region6: #{tpu_custom_call.1} parent=1 // loop_footer
      %s61 = sadd.s32 1, %s57
    $region7: #{tpu_custom_call.1} parent=1 // loop_footer_branch
      %56 = sbr.rel target = $region3
    $region8: #{tpu_custom_call.1} parent=1 // loop_exit
      _
    %1707 = vsyncpa [#allocation11], 1
    %s1708 = scalar_lea.sflag [#allocation11], 1
    %1709 = vsyncpa %s1708, 1
    %1710 = vsyncpa [#allocation14], 1
    %s1711 = scalar_lea.sflag [#allocation14], 1
    %1712 = vsyncpa %s1711, 1
    %1713 = vsyncpa [#allocation12], 1
    %s1714 = scalar_lea.sflag [#allocation12], 1
    %1715 = vsyncpa %s1714, 1

</llo_original>
